<compile_context>
chip_gen: v6e
topology: v6e:2x2x1
jax: 0.10.0
libtpu: 0.0.40
codegen_flags: <defaults>
</compile_context>

<pallas_src>
import functools
import math

import numpy as np
import jax
import jax.numpy as jnp
from jax.experimental import pallas as pl
from jax.experimental.pallas import tpu as pltpu


C_PAD = 128  # lane-dense padded code width for encoder outputs


# ---------------------------------------------------------------------------
# Helpers
# ---------------------------------------------------------------------------
def _choose_group_block(m, max_b=8):
    """Clouds per encoder grid step; divides m and keeps >=2 grid steps when m >= 2."""
    cap = min(max_b, max(1, m // 2))
    for d in range(cap, 0, -1):
        if m % d == 0:
            return d
    return 1


# ---------------------------------------------------------------------------
# ResnetPointnet encoder kernel (ONet ResnetPointnet, 5 ResnetBlockFC + max pool)
#   - all clouds of a grid step are processed as one row-batched matmul slab
#   - concat([net, pooled]) is decomposed into split matmuls + per-cloud broadcast add
#   - fc_pos (K=3) done on the VPU; bf16 MXU operands, f32 accumulation
#   - lane-dense (1, Mb, 128) output block
# ---------------------------------------------------------------------------
def _resnet_pointnet_kernel(x_ref, fcpos_w, fcpos_b,
                            b0_fc0_w, b0_sc_w,
                            fc0_wa, fc0_wb, fc0_b,
                            fc1_w, fc1_b,
                            sc_wa, sc_wb,
                            fc_c_w, fc_c_b, out_ref, *, Mb, N):
    bf = jnp.bfloat16
    p = x_ref[...]                                           # (Mb*N, 3) f32
    # fc_pos (3 -> 2H) as 3 broadcast-FMAs on the VPU
    net = (p[:, 0:1] * fcpos_w[0:1, :]
           + p[:, 1:2] * fcpos_w[1:2, :]
           + p[:, 2:3] * fcpos_w[2:3, :]) + fcpos_b[...]     # (Mb*N, 2H)

    # block 0: input already 2H wide, no pooled path
    nh = jnp.dot(jnp.maximum(net, 0.0).astype(bf), b0_fc0_w[...],
                 preferred_element_type=jnp.float32) + fc0_b[0]
    dx = jnp.dot(jnp.maximum(nh, 0.0).astype(bf), fc1_w[0],
                 preferred_element_type=jnp.float32) + fc1_b[0]
    xs = jnp.dot(net.astype(bf), b0_sc_w[...], preferred_element_type=jnp.float32)
    net = xs + dx                                            # (Mb*N, H)
    H = net.shape[-1]

    # blocks 1..4: concat([net, pooled]) @ W == net @ W_a + pooled @ W_b (per-cloud bcast)
    for i in range(1, 5):
        pooled = jnp.max(net.reshape(Mb, N, H), axis=1)      # (Mb, H)
        poo_a = jnp.dot(jnp.maximum(pooled, 0.0).astype(bf), fc0_wb[i - 1],
                        preferred_element_type=jnp.float32)  # (Mb, H)
        poo_s = jnp.dot(pooled.astype(bf), sc_wb[i - 1],
                        preferred_element_type=jnp.float32)  # (Mb, H)
        poo_a = jnp.broadcast_to(poo_a[:, None, :], (Mb, N, H)).reshape(Mb * N, H)
        poo_s = jnp.broadcast_to(poo_s[:, None, :], (Mb, N, H)).reshape(Mb * N, H)
        nh = (jnp.dot(jnp.maximum(net, 0.0).astype(bf), fc0_wa[i - 1],
                      preferred_element_type=jnp.float32) + poo_a + fc0_b[i])
        dx = jnp.dot(jnp.maximum(nh, 0.0).astype(bf), fc1_w[i],
                     preferred_element_type=jnp.float32) + fc1_b[i]
        xs = jnp.dot(net.astype(bf), sc_wa[i - 1],
                     preferred_element_type=jnp.float32) + poo_s
        net = xs + dx

    pooled = jnp.max(net.reshape(Mb, N, H), axis=1)          # (Mb, H)
    c = jnp.dot(jnp.maximum(pooled, 0.0).astype(bf), fc_c_w[...],
                preferred_element_type=jnp.float32) + fc_c_b[...]   # (Mb, C_PAD)
    out_ref[...] = c[None]                                   # lane-dense (1, Mb, 128) store


def resnet_pointnet(params, pts):
    """pts: (M, N, 3) -> (M, c_dim)."""
    M, N, _ = pts.shape
    assert N % 8 == 0, "per-cloud point count must be a multiple of 8"
    h = params['hidden']
    c_dim = params['c_dim']
    h2 = 2 * h
    Mb = _choose_group_block(M)
    n_blk = M // Mb
    x_flat = pts.reshape(M * N, 3)

    def wspec(shape):
        return pl.BlockSpec(shape, lambda m, _s=shape: (0,) * len(_s))

    kern = functools.partial(_resnet_pointnet_kernel, Mb=Mb, N=N)
    out = pl.pallas_call(
        kern,
        out_shape=jax.ShapeDtypeStruct((n_blk, Mb, C_PAD), jnp.float32),
        grid=(n_blk,),
        in_specs=[
            pl.BlockSpec((Mb * N, 3), lambda m: (m, 0)),
            wspec((3, h2)), wspec((1, h2)),
            wspec((h2, h)), wspec((h2, h)),
            wspec((4, h, h)), wspec((4, h, h)), wspec((5, h)),
            wspec((5, h, h)), wspec((5, h)),
            wspec((4, h, h)), wspec((4, h, h)),
            wspec((h, C_PAD)), wspec((1, C_PAD)),
        ],
        out_specs=pl.BlockSpec((1, Mb, C_PAD), lambda m: (m, 0, 0)),
        compiler_params=pltpu.CompilerParams(dimension_semantics=("parallel",)),
    )(x_flat, params['fc_pos_w'], params['fc_pos_b'],
      params['b0_fc0_w'], params['b0_sc_w'],
      params['fc0_wa'], params['fc0_wb'], params['fc0_b'],
      params['fc1_w'], params['fc1_b'],
      params['sc_wa'], params['sc_wb'],
      params['fc_c_w'], params['fc_c_b'])
    return out.reshape(M, C_PAD)[:, :c_dim]


# ---------------------------------------------------------------------------
# NVP homeomorphism decoder (conditional coupling flow) forward / inverse kernels
#   - channel-major (3, lanes) layout, group-aligned lane tiles
#   - per-group code hidden contribution precomputed (tiny JAX einsum), broadcast over the
#     group's lanes in-kernel with VPU FMAs against a 0/1 selection matrix
#   - s/t nets fused into one 2H hidden + block-diagonal (6, 2H) output
# ---------------------------------------------------------------------------
def _make_nvp_kernel(inverse, gb):
    def kernel(q_ref, ch_ref, sel_ref, mask_ref,
               pw, pb, w1p, w2, b2, out_ref):
        bf = jnp.bfloat16
        L = mask_ref.shape[0]
        y = q_ref[...]                                       # (3, tile) f32
        sel = sel_ref[...]                                   # (gb, tile) 0/1 f32
        order = range(L - 1, -1, -1) if inverse else range(L)
        for l in order:
            m = mask_ref[l]                                  # (3, 1)
            y1 = y * m
            pwl = pw[l]                                      # (P, 3)
            proj = (pwl[:, 0:1] * y1[0:1, :]
                    + pwl[:, 1:2] * y1[1:2, :]
                    + pwl[:, 2:3] * y1[2:3, :]) + pb[l]      # (P, tile)
            proj = jnp.maximum(proj, 0.0)
            # per-group code contribution (bias folded in), broadcast over group lanes
            chl = ch_ref[l]                                  # (2H, gb) f32
            code_c = chl[:, 0:1] * sel[0:1, :]
            for g in range(1, gb):
                code_c = code_c + chl[:, g:g + 1] * sel[g:g + 1, :]
            h = code_c + jnp.dot(w1p[l], proj.astype(bf),
                                 preferred_element_type=jnp.float32)   # (2H, tile)
            h = jnp.maximum(h, 0.0)
            st = jnp.dot(w2[l], h.astype(bf),
                         preferred_element_type=jnp.float32) + b2[l]   # (6, tile)
            s = jnp.clip(st[0:3, :], -10.0, 10.0)            # hardtanh_range
            t = st[3:6, :]
            if inverse:
                y = y1 + (1.0 - m) * (y * jnp.exp(s) + t)
            else:
                y = y1 + (1.0 - m) * ((y - t) * jnp.exp(-s))
        out_ref[...] = y
    return kernel


def _nvp_apply(params, masks, code, query, inverse, max_tile=2048):
    """code: (G, C), query: (G, N, 3) -> (G, N, 3)."""
    G, N, _ = query.shape
    L = params['n_layers']
    P = params['proj_dim']
    H2 = 2 * params['hidden']

    # pad per-group point count to a multiple of 32 so lane tiles can be 128-aligned
    N_pad = -(-N // 32) * 32
    if N_pad != N:
        query = jnp.pad(query, ((0, 0), (0, N_pad - N), (0, 0)))
    unit = 128 // math.gcd(N_pad, 128)            # min groups/tile for 128-aligned lanes
    gb_tile = max(unit, (max_tile // N_pad) // unit * unit)
    gb_grid = max(unit, (G // 2) // unit * unit)  # keep >= 2 grid steps when possible
    gb = min(gb_tile, gb_grid, 16)                # bound the per-layer broadcast FMA count
    G_pad = -(-G // gb) * gb
    if G_pad != G:
        query = jnp.pad(query, ((0, G_pad - G), (0, 0), (0, 0)))
        code = jnp.pad(code, ((0, G_pad - G), (0, 0)))
    tile = gb * N_pad
    n_blk = G_pad // gb
    Ltot = G_pad * N_pad

    q_cl = jnp.transpose(query, (2, 0, 1)).reshape(3, Ltot)              # (3, Ltot)
    # per-group code hidden contribution (tiny): (L, 2H, G_pad), blocked along groups
    code_h = (jnp.einsum('lhc,gc->lhg', params['w1_code_T'], code)
              + params['b1'])                                            # (L, 2H, G_pad)
    code_h = jnp.transpose(code_h.reshape(L, H2, n_blk, gb),
                           (2, 0, 1, 3)).reshape(n_blk * L, H2, gb)      # (n_blk*L, 2H, gb)
    sel = jnp.asarray(np.kron(np.eye(gb, dtype=np.float32),
                              np.ones((1, N_pad), np.float32)))          # (gb, tile)

    def wspec(shape):
        return pl.BlockSpec(shape, lambda i, _s=shape: (0,) * len(_s))

    out = pl.pallas_call(
        _make_nvp_kernel(inverse, gb),
        out_shape=jax.ShapeDtypeStruct((3, Ltot), jnp.float32),
        grid=(n_blk,),
        in_specs=[
            pl.BlockSpec((3, tile), lambda i: (0, i)),
            pl.BlockSpec((L, H2, gb), lambda i: (i, 0, 0)),
            wspec((gb, tile)),
            wspec((L, 3, 1)),
            wspec((L, P, 3)), wspec((L, P, 1)),
            wspec((L, H2, P)),
            wspec((L, 6, H2)), wspec((L, 6, 1)),
        ],
        out_specs=pl.BlockSpec((3, tile), lambda i: (0, i)),
        compiler_params=pltpu.CompilerParams(dimension_semantics=("parallel",)),
    )(q_cl, code_h, sel, masks,
      params['proj_w_T'], params['proj_b'],
      params['w1_proj_T'],
      params['w2_bd_T'], params['b2'])

    out = out.reshape(3, G_pad, N_pad)[:, :G, :N]
    return jnp.transpose(out, (1, 2, 0))                                 # (G, N, 3)


def nvp_forward(params, masks, code, query):
    return _nvp_apply(params, masks, code, query, inverse=False)


def nvp_inverse(params, masks, code, query):
    return _nvp_apply(params, masks, code, query, inverse=True)


# ---------------------------------------------------------------------------
# DecoderCBatchNorm kernel (ONet decoder, conditional batch norm, training-mode BN)
#   - channel-major (feat, B*M) layout; logits written lane-dense as (1, B*M)
#   - gamma/beta are per-batch constants: computed once per CBN in the wrapper and
#     broadcast over each batch's M lanes in-kernel (B FMAs)
#   - BN statistics are global over all B*M points, so this stays one un-gridded slab
# TODO(synk): at production B*M this slab should be lane-tiled with a two-pass BN
#             (sum / sum-of-squares accumulated across an 'arbitrary' grid axis, with
#             pad-lane masking) to fit v7x's 64 MiB VMEM; at these sizes it fits easily.
# ---------------------------------------------------------------------------
def _make_decoder_kernel(B):
    def kernel(q_ref, sel_ref, fcp_w, fcp_b,
               g0_ref, be0_ref, fc0w, fc0b,
               g1_ref, be1_ref, fc1w, fc1b,
               gf_ref, bef_ref, fow, fob, out_ref):
        bf = jnp.bfloat16
        relu = lambda v: jnp.maximum(v, 0.0)
        sel = sel_ref[...]                                   # (B, L) 0/1 f32

        def expand(v):                                       # (H, B) -> (H, L)
            acc = v[:, 0:1] * sel[0:1, :]
            for b in range(1, B):
                acc = acc + v[:, b:b + 1] * sel[b:b + 1, :]
            return acc

        def cbn(x, gamma_b, beta_b):
            gamma = expand(gamma_b)
            beta = expand(beta_b)
            mean = jnp.mean(x, axis=1, keepdims=True)        # (H, 1)
            var = jnp.mean(jnp.square(x - mean), axis=1, keepdims=True)
            return gamma * ((x - mean) * jax.lax.rsqrt(var + 1e-5)) + beta

        q = q_ref[...]                                       # (3, L)
        # fc_p (3 -> H) on the VPU
        net = (fcp_w[:, 0:1] * q[0:1, :]
               + fcp_w[:, 1:2] * q[1:2, :]
               + fcp_w[:, 2:3] * q[2:3, :]) + fcp_b[...]     # (H, L)

        for i in range(5):
            h0 = cbn(net, g0_ref[i], be0_ref[i])
            nh = jnp.dot(fc0w[i], relu(h0).astype(bf),
                         preferred_element_type=jnp.float32) + fc0b[i]
            h1 = cbn(nh, g1_ref[i], be1_ref[i])
            dx = jnp.dot(fc1w[i], relu(h1).astype(bf),
                         preferred_element_type=jnp.float32) + fc1b[i]
            net = net + dx                                   # no shortcut (in == out)

        hf = cbn(net, gf_ref[...], bef_ref[...])
        # final (1,H)x(H,L) matmul done as VPU multiply + sublane reduction
        out_ref[...] = (jnp.sum(fow[...] * relu(hf), axis=0, keepdims=True)
                        + fob[...])                          # (1, L)
    return kernel


def decoder_cbn(params, query, c_g):
    """query: (B, Mq, 3), c_g: (B, Cg) -> logits (B, Mq)."""
    B, Mq, _ = query.shape
    q_cl = jnp.transpose(query, (2, 0, 1)).reshape(3, B * Mq)
    # conditional-BN gamma/beta are per-batch constants: tiny einsums outside the kernel
    g0 = jnp.einsum('ihc,bc->ihb', params['blk_g0_w'], c_g) + params['blk_g0_b']
    b0 = jnp.einsum('ihc,bc->ihb', params['blk_b0_w'], c_g) + params['blk_b0_b']
    g1 = jnp.einsum('ihc,bc->ihb', params['blk_g1_w'], c_g) + params['blk_g1_b']
    b1 = jnp.einsum('ihc,bc->ihb', params['blk_b1_w'], c_g) + params['blk_b1_b']
    gf = jnp.einsum('hc,bc->hb', params['fin_g_w'], c_g) + params['fin_g_b']
    bf_ = jnp.einsum('hc,bc->hb', params['fin_b_w'], c_g) + params['fin_b_b']
    sel = jnp.asarray(np.kron(np.eye(B, dtype=np.float32),
                              np.ones((1, Mq), np.float32)))             # (B, B*Mq)
    out = pl.pallas_call(
        _make_decoder_kernel(B),
        out_shape=jax.ShapeDtypeStruct((1, B * Mq), jnp.float32),
    )(q_cl, sel,
      params['fc_p_w'], params['fc_p_b'],
      g0, b0, params['blk_fc0_w'], params['blk_fc0_b'],
      g1, b1, params['blk_fc1_w'], params['blk_fc1_b'],
      gf, bf_, params['fc_out_w'], params['fc_out_b'])
    return out.reshape(B, Mq)


# ---------------------------------------------------------------------------
# Parameter initialization (deterministic, synthetic)
# ---------------------------------------------------------------------------
def _w(key, shape, fan_in, scale=1.0, dtype=jnp.float32):
    return (jax.random.normal(key, shape, jnp.float32)
            * (scale / np.sqrt(fan_in))).astype(dtype)


def init_resnet_pointnet(key, hidden, c_dim):
    ks = jax.random.split(key, 9)
    h, h2 = hidden, 2 * hidden
    bf = jnp.bfloat16
    fc_c_w = jnp.zeros((h, C_PAD), jnp.float32)
    fc_c_w = fc_c_w.at[:, :c_dim].set(_w(ks[8], (h, c_dim), h))
    return dict(
        hidden=hidden, c_dim=c_dim,
        fc_pos_w=_w(ks[0], (3, h2), 3),
        fc_pos_b=jnp.zeros((1, h2), jnp.float32),
        b0_fc0_w=_w(ks[1], (h2, h), h2, dtype=bf),
        b0_sc_w=_w(ks[2], (h2, h), h2, dtype=bf),
        fc0_wa=_w(ks[3], (4, h, h), h2, dtype=bf),
        fc0_wb=_w(ks[4], (4, h, h), h2, dtype=bf),
        fc0_b=jnp.zeros((5, h), jnp.float32),
        fc1_w=_w(ks[5], (5, h, h), h, 0.5, dtype=bf),
        fc1_b=jnp.zeros((5, h), jnp.float32),
        sc_wa=_w(ks[6], (4, h, h), h2, dtype=bf),
        sc_wb=_w(ks[7], (4, h, h), h2, dtype=bf),
        fc_c_w=fc_c_w.astype(bf),
        fc_c_b=jnp.zeros((1, C_PAD), jnp.float32),
    )


def init_nvp(key, n_layers, code_dim, proj_dim, hidden):
    ks = jax.random.split(key, 5)
    L, C, P, H = n_layers, code_dim, proj_dim, hidden
    bf = jnp.bfloat16
    # block-diagonal fused (6, 2H) output weight: rows 0..2 <- s-net, rows 3..5 <- t-net
    s_w2_T = _w(ks[3], (L, 3, H), H, 0.1)
    t_w2_T = _w(ks[4], (L, 3, H), H, 0.1)
    w2 = jnp.zeros((L, 6, 2 * H), jnp.float32)
    w2 = w2.at[:, 0:3, 0:H].set(s_w2_T).at[:, 3:6, H:2 * H].set(t_w2_T)
    return dict(
        n_layers=L, code_dim=C, proj_dim=P, hidden=H,
        proj_w_T=_w(ks[0], (L, P, 3), 3),
        proj_b=jnp.zeros((L, P, 1), jnp.float32),
        w1_code_T=_w(ks[1], (L, 2 * H, C), C + P),   # f32: folded into per-group prologue
        w1_proj_T=_w(ks[2], (L, 2 * H, P), C + P, dtype=bf),
        b1=jnp.zeros((L, 2 * H, 1), jnp.float32),
        w2_bd_T=w2.astype(bf),
        b2=jnp.zeros((L, 6, 1), jnp.float32),
    )


def make_masks(n_layers):
    m = np.zeros((n_layers, 3, 1), np.float32)
    for l in range(n_layers):
        m[l, l % 3, 0] = 1.0                                 # coordinate kept fixed per layer
    return jnp.asarray(m)


def init_decoder(key, c_dim, hidden):
    ks = jax.random.split(key, 10)
    H, Cg = hidden, c_dim
    bf = jnp.bfloat16
    return dict(
        hidden=H, c_dim=Cg,
        fc_p_w=_w(ks[0], (H, 3), 3),
        fc_p_b=jnp.zeros((H, 1), jnp.float32),
        blk_g0_w=_w(ks[1], (5, H, Cg), Cg, 0.1),
        blk_g0_b=jnp.ones((5, H, 1), jnp.float32),
        blk_b0_w=_w(ks[2], (5, H, Cg), Cg, 0.1),
        blk_b0_b=jnp.zeros((5, H, 1), jnp.float32),
        blk_fc0_w=_w(ks[3], (5, H, H), H, dtype=bf),
        blk_fc0_b=jnp.zeros((5, H, 1), jnp.float32),
        blk_g1_w=_w(ks[4], (5, H, Cg), Cg, 0.1),
        blk_g1_b=jnp.ones((5, H, 1), jnp.float32),
        blk_b1_w=_w(ks[5], (5, H, Cg), Cg, 0.1),
        blk_b1_b=jnp.zeros((5, H, 1), jnp.float32),
        blk_fc1_w=_w(ks[6], (5, H, H), H, 0.5, dtype=bf),
        blk_fc1_b=jnp.zeros((5, H, 1), jnp.float32),
        fin_g_w=_w(ks[7], (H, Cg), Cg, 0.1),
        fin_g_b=jnp.ones((H, 1), jnp.float32),
        fin_b_w=_w(ks[8], (H, Cg), Cg, 0.1),
        fin_b_b=jnp.zeros((H, 1), jnp.float32),
        fc_out_w=_w(ks[9], (H, 1), H),
        fc_out_b=jnp.zeros((1, 1), jnp.float32),
    )


# ---------------------------------------------------------------------------
# CaDeX_DFAU forward (training phase semantics)
# ---------------------------------------------------------------------------
def cadex_dfau_forward(params, input_pack, viz_flag=False):
    cfg = params['cfg']
    output = {}
    phase = input_pack['phase']
    seq_t = input_pack['inputs.time']                        # (B, T)
    seq_pc = input_pack['inputs']                            # (B, T, N_in, 3)
    B, T = seq_t.shape
    N_in = seq_pc.shape[2]
    masks = params['nvp_masks']
    nvp = params['nvp']
    is_test = phase.startswith('test')

    # homeomorphism encoder (t_perm_inv = True: per-frame ResnetPointnet)
    c_t = resnet_pointnet(params['homeo_enc'],
                          seq_pc.reshape(B * T, N_in, 3)).reshape(B, T, -1)

    # inputs_cdc = map2canonical(c_t, inputs)
    coords_in = nvp_forward(nvp, masks, c_t.reshape(B * T, -1),
                            seq_pc.reshape(B * T, N_in, 3))
    inputs_cdc = (jax.nn.sigmoid(coords_in) - 0.5) if cfg['compress_cdc'] else coords_in
    inputs_cdc = inputs_cdc.reshape(B, T, N_in, 3)

    # canonical geometry encoder on all canonical points of the sequence
    c_g = resnet_pointnet(params['geo_enc'], inputs_cdc.reshape(B, T * N_in, 3))

    if viz_flag:
        output.update(dict(c_t=c_t, c_g=c_g, seq_t=seq_t, seq_pc=seq_pc))
    if is_test:
        output.update(dict(c_t=c_t, c_g=c_g, seq_t=seq_t))
        return output

    pts = input_pack['points']                               # (B, Tq, Nq, 3)
    pts_t = input_pack['points.time']                        # (B, Tq)
    occ = input_pack['points.occ']                           # (B, Tq, Nq)
    Tq, Nq = pts.shape[1], pts.shape[2]
    idx = (pts_t * (T - 1)).astype(jnp.int32)
    c_homeo = jnp.take_along_axis(c_t, idx[:, :, None], axis=1)          # (B, Tq, C)

    uncompressed_cdc = nvp_forward(nvp, masks, c_homeo.reshape(B * Tq, -1),
                                   pts.reshape(B * Tq, Nq, 3)).reshape(B, Tq, Nq, 3)
    cdc = (jax.nn.sigmoid(uncompressed_cdc) - 0.5) if cfg['compress_cdc'] else uncompressed_cdc
    shift = jnp.sqrt(jnp.sum(jnp.square(uncompressed_cdc - pts), axis=3))  # (B, Tq, Nq)

    # decode_by_cdc  (Bernoulli(logits) -> .probs == sigmoid(logits))
    logits = decoder_cbn(params['dec'], cdc.reshape(B, Tq * Nq, 3), c_g).reshape(B, Tq, Nq)
    occ_hat = jax.nn.sigmoid(logits)
    # binary_cross_entropy on probs, with PyTorch's log clamp at -100 (stable form)
    log_p = jnp.maximum(jax.nn.log_sigmoid(logits), -100.0)
    log_1mp = jnp.maximum(jax.nn.log_sigmoid(-logits), -100.0)
    recon_i = -(occ * log_p + (1.0 - occ) * log_1mp)
    recon = recon_i.mean()

    batch_loss = recon
    output['loss_recon'] = recon
    output['loss_recon_i'] = recon_i.reshape(-1)

    if cfg['loss_corr']:
        pcl = input_pack['pointcloud']                       # (B, T, Npcl, 3)
        Npcl = pcl.shape[2]
        cdc_ff_un = nvp_forward(nvp, masks, c_t[:, 0, :], pcl[:, 0])     # (B, Npcl, 3)
        q_fwd = jnp.broadcast_to(cdc_ff_un[:, None, :, :], (B, T - 1, Npcl, 3))
        cdc_fwd = nvp_inverse(nvp, masks,
                              c_t[:, 1:, :].reshape(B * (T - 1), -1),
                              q_fwd.reshape(B * (T - 1), Npcl, 3)).reshape(B, T - 1, Npcl, 3)
        corr_i = jnp.sum(jnp.abs(cdc_fwd - pcl[:, 1:]), axis=-1)
        corr = corr_i.mean()
        batch_loss = batch_loss + corr
        output['loss_corr'] = corr
        output['loss_corr_i'] = corr_i.reshape(-1)

    if cfg['regularize_shift_len'] > 0.0:
        reg = shift.mean()
        batch_loss = batch_loss + reg * cfg['regularize_shift_len']
        output['loss_reg_shift_len'] = reg

    output['batch_loss'] = batch_loss
    output['cdc_shift'] = shift.reshape(-1)
    if phase.startswith('val'):
        output['occ_hat_iou'] = occ_hat
    return output


# ---------------------------------------------------------------------------
if __name__ == "__main__":
    # Small config
    B, T = 2, 4
    N_in = 32          # input point-cloud points per frame
    Npcl = 32          # pointcloud points per frame (corr loss)
    Tq, Nq = 4, 24     # occupancy query points
    C_T = 32           # homeomorphism code dim
    C_G = 32           # canonical geometry code dim
    HID = 32
    NVP_L, NVP_P, NVP_H = 3, 16, 32

    key = jax.random.PRNGKey(0)
    k_par, k_dat = jax.random.split(key)
    kp = jax.random.split(k_par, 4)
    params = dict(
        cfg=dict(t_perm_inv=True, compress_cdc=True, loss_corr=True,
                 regularize_shift_len=0.5),
        homeo_enc=init_resnet_pointnet(kp[0], HID, C_T),
        geo_enc=init_resnet_pointnet(kp[1], HID, C_G),
        nvp=init_nvp(kp[2], NVP_L, C_T, NVP_P, NVP_H),
        nvp_masks=make_masks(NVP_L),
        dec=init_decoder(kp[3], C_G, HID),
    )

    kd = jax.random.split(k_dat, 6)
    input_pack = {
        'phase': 'train',
        'inputs': jax.random.normal(kd[0], (B, T, N_in, 3), jnp.float32) * 0.5,
        'inputs.time': jnp.broadcast_to(jnp.linspace(0.0, 1.0, T)[None, :], (B, T)),
        'points': jax.random.uniform(kd[1], (B, Tq, Nq, 3), jnp.float32,
                                     minval=-0.5, maxval=0.5),
        'points.time': jax.random.uniform(kd[2], (B, Tq), jnp.float32),
        'points.occ': (jax.random.uniform(kd[3], (B, Tq, Nq), jnp.float32) > 0.5
                       ).astype(jnp.float32),
        'pointcloud': jax.random.normal(kd[4], (B, T, Npcl, 3), jnp.float32) * 0.5,
    }

    out = cadex_dfau_forward(params, input_pack, viz_flag=False)
    jax.block_until_ready(out['batch_loss'])
    if not bool(jnp.isfinite(out['batch_loss'])):
        raise RuntimeError("non-finite batch_loss")
    # TODO(synk): torch.distributions.Bernoulli wrapper is reduced to sigmoid(logits);
    # only .probs is consumed by the reference forward pass.
    print("KERNEL_OK")
</pallas_src>

<mosaic_0001>
module attributes {stable_mosaic.version = 11 : i64} {
  func.func @_resnet_pointnet_kernel(%arg0: i32, %arg1: memref<128x3xf32, #tpu.memory_space<vmem>>, %arg2: memref<3x64xf32, #tpu.memory_space<vmem>>, %arg3: memref<1x64xf32, #tpu.memory_space<vmem>>, %arg4: memref<64x32xbf16, #tpu.memory_space<vmem>>, %arg5: memref<64x32xbf16, #tpu.memory_space<vmem>>, %arg6: memref<4x32x32xbf16, #tpu.memory_space<vmem>>, %arg7: memref<4x32x32xbf16, #tpu.memory_space<vmem>>, %arg8: memref<5x32xf32, #tpu.memory_space<vmem>>, %arg9: memref<5x32x32xbf16, #tpu.memory_space<vmem>>, %arg10: memref<5x32xf32, #tpu.memory_space<vmem>>, %arg11: memref<4x32x32xbf16, #tpu.memory_space<vmem>>, %arg12: memref<4x32x32xbf16, #tpu.memory_space<vmem>>, %arg13: memref<32x128xbf16, #tpu.memory_space<vmem>>, %arg14: memref<1x128xf32, #tpu.memory_space<vmem>>, %arg15: memref<1x4x128xf32, #tpu.memory_space<vmem>>) attributes {dimension_semantics = [#tpu.dimension_semantics<parallel>], iteration_bounds = array<i64: 2>, scalar_prefetch = 0 : i64, scratch_operands = 0 : i64, tpu.core_type = #tpu.core_type<tc>, window_params = [{transform_indices = @transform_0, window_bounds = array<i64: 128, 3>}, {pipeline_mode = #tpu.pipeline_mode<synchronous>, transform_indices = @transform_1, window_bounds = array<i64: 3, 64>}, {pipeline_mode = #tpu.pipeline_mode<synchronous>, transform_indices = @transform_2, window_bounds = array<i64: 1, 64>}, {pipeline_mode = #tpu.pipeline_mode<synchronous>, transform_indices = @transform_3, window_bounds = array<i64: 64, 32>}, {pipeline_mode = #tpu.pipeline_mode<synchronous>, transform_indices = @transform_4, window_bounds = array<i64: 64, 32>}, {pipeline_mode = #tpu.pipeline_mode<synchronous>, transform_indices = @transform_5, window_bounds = array<i64: 4, 32, 32>}, {pipeline_mode = #tpu.pipeline_mode<synchronous>, transform_indices = @transform_6, window_bounds = array<i64: 4, 32, 32>}, {pipeline_mode = #tpu.pipeline_mode<synchronous>, transform_indices = @transform_7, window_bounds = array<i64: 5, 32>}, {pipeline_mode = #tpu.pipeline_mode<synchronous>, transform_indices = @transform_8, window_bounds = array<i64: 5, 32, 32>}, {pipeline_mode = #tpu.pipeline_mode<synchronous>, transform_indices = @transform_9, window_bounds = array<i64: 5, 32>}, {pipeline_mode = #tpu.pipeline_mode<synchronous>, transform_indices = @transform_10, window_bounds = array<i64: 4, 32, 32>}, {pipeline_mode = #tpu.pipeline_mode<synchronous>, transform_indices = @transform_11, window_bounds = array<i64: 4, 32, 32>}, {pipeline_mode = #tpu.pipeline_mode<synchronous>, transform_indices = @transform_12, window_bounds = array<i64: 32, 128>}, {pipeline_mode = #tpu.pipeline_mode<synchronous>, transform_indices = @transform_13, window_bounds = array<i64: 1, 128>}, {transform_indices = @transform_14, window_bounds = array<i64: 1, 4, 128>}]} {
    %c0 = arith.constant 0 : index
    %c0_0 = arith.constant 0 : index
    %0 = vector.load %arg1[%c0, %c0_0] : memref<128x3xf32, #tpu.memory_space<vmem>>, vector<128x3xf32>
    %1 = vector.extract_strided_slice %0 {offsets = [0, 0], sizes = [128, 1], strides = [1, 1]} : vector<128x3xf32> to vector<128x1xf32>
    %c0_1 = arith.constant 0 : index
    %c0_2 = arith.constant 0 : index
    %2 = vector.load %arg2[%c0_1, %c0_2] : memref<3x64xf32, #tpu.memory_space<vmem>>, vector<1x64xf32>
    %3 = vector.broadcast %1 : vector<128x1xf32> to vector<128x64xf32>
    %4 = vector.broadcast %2 : vector<1x64xf32> to vector<128x64xf32>
    %5 = arith.mulf %3, %4 : vector<128x64xf32>
    %6 = vector.extract_strided_slice %0 {offsets = [0, 1], sizes = [128, 1], strides = [1, 1]} : vector<128x3xf32> to vector<128x1xf32>
    %c1 = arith.constant 1 : index
    %c0_3 = arith.constant 0 : index
    %7 = vector.load %arg2[%c1, %c0_3] : memref<3x64xf32, #tpu.memory_space<vmem>>, vector<1x64xf32>
    %8 = vector.broadcast %6 : vector<128x1xf32> to vector<128x64xf32>
    %9 = vector.broadcast %7 : vector<1x64xf32> to vector<128x64xf32>
    %10 = arith.mulf %8, %9 : vector<128x64xf32>
    %11 = arith.addf %5, %10 : vector<128x64xf32>
    %12 = vector.extract_strided_slice %0 {offsets = [0, 2], sizes = [128, 1], strides = [1, 1]} : vector<128x3xf32> to vector<128x1xf32>
    %c2 = arith.constant 2 : index
    %c0_4 = arith.constant 0 : index
    %13 = vector.load %arg2[%c2, %c0_4] : memref<3x64xf32, #tpu.memory_space<vmem>>, vector<1x64xf32>
    %14 = vector.broadcast %12 : vector<128x1xf32> to vector<128x64xf32>
    %15 = vector.broadcast %13 : vector<1x64xf32> to vector<128x64xf32>
    %16 = arith.mulf %14, %15 : vector<128x64xf32>
    %17 = arith.addf %11, %16 : vector<128x64xf32>
    %c0_5 = arith.constant 0 : index
    %c0_6 = arith.constant 0 : index
    %18 = vector.load %arg3[%c0_5, %c0_6] : memref<1x64xf32, #tpu.memory_space<vmem>>, vector<1x64xf32>
    %19 = vector.broadcast %18 : vector<1x64xf32> to vector<128x64xf32>
    %20 = arith.addf %17, %19 : vector<128x64xf32>
    %cst = arith.constant 0.000000e+00 : f32
    %21 = vector.broadcast %cst : f32 to vector<128x64xf32>
    %22 = arith.maximumf %20, %21 : vector<128x64xf32>
    %23 = arith.truncf %22 : vector<128x64xf32> to vector<128x64xbf16>
    %c0_7 = arith.constant 0 : index
    %c0_8 = arith.constant 0 : index
    %24 = vector.load %arg4[%c0_7, %c0_8] : memref<64x32xbf16, #tpu.memory_space<vmem>>, vector<64x32xbf16>
    %cst_9 = arith.constant dense<0.000000e+00> : vector<128x32xf32>
    %25 = tpu.matmul %23, %24, %cst_9 {dimension_numbers = #tpu.dot_dimension_numbers<[1], [0], [0], [1], [0, 0, 1, 1], [], []>} : vector<128x64xbf16>, vector<64x32xbf16>, vector<128x32xf32> -> vector<128x32xf32>
    %c0_10 = arith.constant 0 : index
    %c0_11 = arith.constant 0 : index
    %26 = vector.load %arg8[%c0_10, %c0_11] : memref<5x32xf32, #tpu.memory_space<vmem>>, vector<1x32xf32>
    %27 = vector.shape_cast %26 : vector<1x32xf32> to vector<32xf32>
    %28 = vector.shape_cast %27 : vector<32xf32> to vector<1x32xf32>
    %29 = vector.broadcast %28 : vector<1x32xf32> to vector<128x32xf32>
    %30 = arith.addf %25, %29 : vector<128x32xf32>
    %cst_12 = arith.constant 0.000000e+00 : f32
    %31 = vector.broadcast %cst_12 : f32 to vector<128x32xf32>
    %32 = arith.maximumf %30, %31 : vector<128x32xf32>
    %33 = arith.truncf %32 : vector<128x32xf32> to vector<128x32xbf16>
    %c0_13 = arith.constant 0 : index
    %c0_14 = arith.constant 0 : index
    %c0_15 = arith.constant 0 : index
    %34 = vector.load %arg9[%c0_13, %c0_14, %c0_15] : memref<5x32x32xbf16, #tpu.memory_space<vmem>>, vector<1x32x32xbf16>
    %35 = vector.shape_cast %34 : vector<1x32x32xbf16> to vector<32x32xbf16>
    %cst_16 = arith.constant dense<0.000000e+00> : vector<128x32xf32>
    %36 = tpu.matmul %33, %35, %cst_16 {dimension_numbers = #tpu.dot_dimension_numbers<[1], [0], [0], [1], [0, 0, 1, 1], [], []>} : vector<128x32xbf16>, vector<32x32xbf16>, vector<128x32xf32> -> vector<128x32xf32>
    %c0_17 = arith.constant 0 : index
    %c0_18 = arith.constant 0 : index
    %37 = vector.load %arg10[%c0_17, %c0_18] : memref<5x32xf32, #tpu.memory_space<vmem>>, vector<1x32xf32>
    %38 = vector.shape_cast %37 : vector<1x32xf32> to vector<32xf32>
    %39 = vector.shape_cast %38 : vector<32xf32> to vector<1x32xf32>
    %40 = vector.broadcast %39 : vector<1x32xf32> to vector<128x32xf32>
    %41 = arith.addf %36, %40 : vector<128x32xf32>
    %42 = arith.truncf %20 : vector<128x64xf32> to vector<128x64xbf16>
    %c0_19 = arith.constant 0 : index
    %c0_20 = arith.constant 0 : index
    %43 = vector.load %arg5[%c0_19, %c0_20] : memref<64x32xbf16, #tpu.memory_space<vmem>>, vector<64x32xbf16>
    %cst_21 = arith.constant dense<0.000000e+00> : vector<128x32xf32>
    %44 = tpu.matmul %42, %43, %cst_21 {dimension_numbers = #tpu.dot_dimension_numbers<[1], [0], [0], [1], [0, 0, 1, 1], [], []>} : vector<128x64xbf16>, vector<64x32xbf16>, vector<128x32xf32> -> vector<128x32xf32>
    %45 = arith.addf %44, %41 : vector<128x32xf32>
    %46 = vector.shape_cast %45 : vector<128x32xf32> to vector<4x32x32xf32>
    %cst_22 = arith.constant dense<0xFF800000> : vector<4x32xf32>
    %47 = vector.multi_reduction <maximumf>, %46, %cst_22 [1] : vector<4x32x32xf32> to vector<4x32xf32>
    %cst_23 = arith.constant 0.000000e+00 : f32
    %48 = vector.broadcast %cst_23 : f32 to vector<4x32xf32>
    %49 = arith.maximumf %47, %48 : vector<4x32xf32>
    %50 = arith.truncf %49 : vector<4x32xf32> to vector<4x32xbf16>
    %c0_24 = arith.constant 0 : index
    %c0_25 = arith.constant 0 : index
    %c0_26 = arith.constant 0 : index
    %51 = vector.load %arg7[%c0_24, %c0_25, %c0_26] : memref<4x32x32xbf16, #tpu.memory_space<vmem>>, vector<1x32x32xbf16>
    %52 = vector.shape_cast %51 : vector<1x32x32xbf16> to vector<32x32xbf16>
    %cst_27 = arith.constant dense<0.000000e+00> : vector<4x32xf32>
    %53 = tpu.matmul %50, %52, %cst_27 {dimension_numbers = #tpu.dot_dimension_numbers<[1], [0], [0], [1], [0, 0, 1, 1], [], []>} : vector<4x32xbf16>, vector<32x32xbf16>, vector<4x32xf32> -> vector<4x32xf32>
    %54 = arith.truncf %47 : vector<4x32xf32> to vector<4x32xbf16>
    %c0_28 = arith.constant 0 : index
    %c0_29 = arith.constant 0 : index
    %c0_30 = arith.constant 0 : index
    %55 = vector.load %arg12[%c0_28, %c0_29, %c0_30] : memref<4x32x32xbf16, #tpu.memory_space<vmem>>, vector<1x32x32xbf16>
    %56 = vector.shape_cast %55 : vector<1x32x32xbf16> to vector<32x32xbf16>
    %cst_31 = arith.constant dense<0.000000e+00> : vector<4x32xf32>
    %57 = tpu.matmul %54, %56, %cst_31 {dimension_numbers = #tpu.dot_dimension_numbers<[1], [0], [0], [1], [0, 0, 1, 1], [], []>} : vector<4x32xbf16>, vector<32x32xbf16>, vector<4x32xf32> -> vector<4x32xf32>
    %58 = vector.shape_cast %53 : vector<4x32xf32> to vector<4x1x32xf32>
    %59 = vector.shape_cast %58 : vector<4x1x32xf32> to vector<4x1x32xf32>
    %60 = vector.broadcast %59 : vector<4x1x32xf32> to vector<4x32x32xf32>
    %61 = vector.shape_cast %60 : vector<4x32x32xf32> to vector<128x32xf32>
    %62 = vector.shape_cast %57 : vector<4x32xf32> to vector<4x1x32xf32>
    %63 = vector.shape_cast %62 : vector<4x1x32xf32> to vector<4x1x32xf32>
    %64 = vector.broadcast %63 : vector<4x1x32xf32> to vector<4x32x32xf32>
    %65 = vector.shape_cast %64 : vector<4x32x32xf32> to vector<128x32xf32>
    %cst_32 = arith.constant 0.000000e+00 : f32
    %66 = vector.broadcast %cst_32 : f32 to vector<128x32xf32>
    %67 = arith.maximumf %45, %66 : vector<128x32xf32>
    %68 = arith.truncf %67 : vector<128x32xf32> to vector<128x32xbf16>
    %c0_33 = arith.constant 0 : index
    %c0_34 = arith.constant 0 : index
    %c0_35 = arith.constant 0 : index
    %69 = vector.load %arg6[%c0_33, %c0_34, %c0_35] : memref<4x32x32xbf16, #tpu.memory_space<vmem>>, vector<1x32x32xbf16>
    %70 = vector.shape_cast %69 : vector<1x32x32xbf16> to vector<32x32xbf16>
    %cst_36 = arith.constant dense<0.000000e+00> : vector<128x32xf32>
    %71 = tpu.matmul %68, %70, %cst_36 {dimension_numbers = #tpu.dot_dimension_numbers<[1], [0], [0], [1], [0, 0, 1, 1], [], []>} : vector<128x32xbf16>, vector<32x32xbf16>, vector<128x32xf32> -> vector<128x32xf32>
    %72 = arith.addf %71, %61 : vector<128x32xf32>
    %c1_37 = arith.constant 1 : index
    %c0_38 = arith.constant 0 : index
    %73 = vector.load %arg8[%c1_37, %c0_38] : memref<5x32xf32, #tpu.memory_space<vmem>>, vector<1x32xf32>
    %74 = vector.shape_cast %73 : vector<1x32xf32> to vector<32xf32>
    %75 = vector.shape_cast %74 : vector<32xf32> to vector<1x32xf32>
    %76 = vector.broadcast %75 : vector<1x32xf32> to vector<128x32xf32>
    %77 = arith.addf %72, %76 : vector<128x32xf32>
    %cst_39 = arith.constant 0.000000e+00 : f32
    %78 = vector.broadcast %cst_39 : f32 to vector<128x32xf32>
    %79 = arith.maximumf %77, %78 : vector<128x32xf32>
    %80 = arith.truncf %79 : vector<128x32xf32> to vector<128x32xbf16>
    %c1_40 = arith.constant 1 : index
    %c0_41 = arith.constant 0 : index
    %c0_42 = arith.constant 0 : index
    %81 = vector.load %arg9[%c1_40, %c0_41, %c0_42] : memref<5x32x32xbf16, #tpu.memory_space<vmem>>, vector<1x32x32xbf16>
    %82 = vector.shape_cast %81 : vector<1x32x32xbf16> to vector<32x32xbf16>
    %cst_43 = arith.constant dense<0.000000e+00> : vector<128x32xf32>
    %83 = tpu.matmul %80, %82, %cst_43 {dimension_numbers = #tpu.dot_dimension_numbers<[1], [0], [0], [1], [0, 0, 1, 1], [], []>} : vector<128x32xbf16>, vector<32x32xbf16>, vector<128x32xf32> -> vector<128x32xf32>
    %c1_44 = arith.constant 1 : index
    %c0_45 = arith.constant 0 : index
    %84 = vector.load %arg10[%c1_44, %c0_45] : memref<5x32xf32, #tpu.memory_space<vmem>>, vector<1x32xf32>
    %85 = vector.shape_cast %84 : vector<1x32xf32> to vector<32xf32>
    %86 = vector.shape_cast %85 : vector<32xf32> to vector<1x32xf32>
    %87 = vector.broadcast %86 : vector<1x32xf32> to vector<128x32xf32>
    %88 = arith.addf %83, %87 : vector<128x32xf32>
    %89 = arith.truncf %45 : vector<128x32xf32> to vector<128x32xbf16>
    %c0_46 = arith.constant 0 : index
    %c0_47 = arith.constant 0 : index
    %c0_48 = arith.constant 0 : index
    %90 = vector.load %arg11[%c0_46, %c0_47, %c0_48] : memref<4x32x32xbf16, #tpu.memory_space<vmem>>, vector<1x32x32xbf16>
    %91 = vector.shape_cast %90 : vector<1x32x32xbf16> to vector<32x32xbf16>
    %cst_49 = arith.constant dense<0.000000e+00> : vector<128x32xf32>
    %92 = tpu.matmul %89, %91, %cst_49 {dimension_numbers = #tpu.dot_dimension_numbers<[1], [0], [0], [1], [0, 0, 1, 1], [], []>} : vector<128x32xbf16>, vector<32x32xbf16>, vector<128x32xf32> -> vector<128x32xf32>
    %93 = arith.addf %92, %65 : vector<128x32xf32>
    %94 = arith.addf %93, %88 : vector<128x32xf32>
    %95 = vector.shape_cast %94 : vector<128x32xf32> to vector<4x32x32xf32>
    %cst_50 = arith.constant dense<0xFF800000> : vector<4x32xf32>
    %96 = vector.multi_reduction <maximumf>, %95, %cst_50 [1] : vector<4x32x32xf32> to vector<4x32xf32>
    %cst_51 = arith.constant 0.000000e+00 : f32
    %97 = vector.broadcast %cst_51 : f32 to vector<4x32xf32>
    %98 = arith.maximumf %96, %97 : vector<4x32xf32>
    %99 = arith.truncf %98 : vector<4x32xf32> to vector<4x32xbf16>
    %c1_52 = arith.constant 1 : index
    %c0_53 = arith.constant 0 : index
    %c0_54 = arith.constant 0 : index
    %100 = vector.load %arg7[%c1_52, %c0_53, %c0_54] : memref<4x32x32xbf16, #tpu.memory_space<vmem>>, vector<1x32x32xbf16>
    %101 = vector.shape_cast %100 : vector<1x32x32xbf16> to vector<32x32xbf16>
    %cst_55 = arith.constant dense<0.000000e+00> : vector<4x32xf32>
    %102 = tpu.matmul %99, %101, %cst_55 {dimension_numbers = #tpu.dot_dimension_numbers<[1], [0], [0], [1], [0, 0, 1, 1], [], []>} : vector<4x32xbf16>, vector<32x32xbf16>, vector<4x32xf32> -> vector<4x32xf32>
    %103 = arith.truncf %96 : vector<4x32xf32> to vector<4x32xbf16>
    %c1_56 = arith.constant 1 : index
    %c0_57 = arith.constant 0 : index
    %c0_58 = arith.constant 0 : index
    %104 = vector.load %arg12[%c1_56, %c0_57, %c0_58] : memref<4x32x32xbf16, #tpu.memory_space<vmem>>, vector<1x32x32xbf16>
    %105 = vector.shape_cast %104 : vector<1x32x32xbf16> to vector<32x32xbf16>
    %cst_59 = arith.constant dense<0.000000e+00> : vector<4x32xf32>
    %106 = tpu.matmul %103, %105, %cst_59 {dimension_numbers = #tpu.dot_dimension_numbers<[1], [0], [0], [1], [0, 0, 1, 1], [], []>} : vector<4x32xbf16>, vector<32x32xbf16>, vector<4x32xf32> -> vector<4x32xf32>
    %107 = vector.shape_cast %102 : vector<4x32xf32> to vector<4x1x32xf32>
    %108 = vector.shape_cast %107 : vector<4x1x32xf32> to vector<4x1x32xf32>
    %109 = vector.broadcast %108 : vector<4x1x32xf32> to vector<4x32x32xf32>
    %110 = vector.shape_cast %109 : vector<4x32x32xf32> to vector<128x32xf32>
    %111 = vector.shape_cast %106 : vector<4x32xf32> to vector<4x1x32xf32>
    %112 = vector.shape_cast %111 : vector<4x1x32xf32> to vector<4x1x32xf32>
    %113 = vector.broadcast %112 : vector<4x1x32xf32> to vector<4x32x32xf32>
    %114 = vector.shape_cast %113 : vector<4x32x32xf32> to vector<128x32xf32>
    %cst_60 = arith.constant 0.000000e+00 : f32
    %115 = vector.broadcast %cst_60 : f32 to vector<128x32xf32>
    %116 = arith.maximumf %94, %115 : vector<128x32xf32>
    %117 = arith.truncf %116 : vector<128x32xf32> to vector<128x32xbf16>
    %c1_61 = arith.constant 1 : index
    %c0_62 = arith.constant 0 : index
    %c0_63 = arith.constant 0 : index
    %118 = vector.load %arg6[%c1_61, %c0_62, %c0_63] : memref<4x32x32xbf16, #tpu.memory_space<vmem>>, vector<1x32x32xbf16>
    %119 = vector.shape_cast %118 : vector<1x32x32xbf16> to vector<32x32xbf16>
    %cst_64 = arith.constant dense<0.000000e+00> : vector<128x32xf32>
    %120 = tpu.matmul %117, %119, %cst_64 {dimension_numbers = #tpu.dot_dimension_numbers<[1], [0], [0], [1], [0, 0, 1, 1], [], []>} : vector<128x32xbf16>, vector<32x32xbf16>, vector<128x32xf32> -> vector<128x32xf32>
    %121 = arith.addf %120, %110 : vector<128x32xf32>
    %c2_65 = arith.constant 2 : index
    %c0_66 = arith.constant 0 : index
    %122 = vector.load %arg8[%c2_65, %c0_66] : memref<5x32xf32, #tpu.memory_space<vmem>>, vector<1x32xf32>
    %123 = vector.shape_cast %122 : vector<1x32xf32> to vector<32xf32>
    %124 = vector.shape_cast %123 : vector<32xf32> to vector<1x32xf32>
    %125 = vector.broadcast %124 : vector<1x32xf32> to vector<128x32xf32>
    %126 = arith.addf %121, %125 : vector<128x32xf32>
    %cst_67 = arith.constant 0.000000e+00 : f32
    %127 = vector.broadcast %cst_67 : f32 to vector<128x32xf32>
    %128 = arith.maximumf %126, %127 : vector<128x32xf32>
    %129 = arith.truncf %128 : vector<128x32xf32> to vector<128x32xbf16>
    %c2_68 = arith.constant 2 : index
    %c0_69 = arith.constant 0 : index
    %c0_70 = arith.constant 0 : index
    %130 = vector.load %arg9[%c2_68, %c0_69, %c0_70] : memref<5x32x32xbf16, #tpu.memory_space<vmem>>, vector<1x32x32xbf16>
    %131 = vector.shape_cast %130 : vector<1x32x32xbf16> to vector<32x32xbf16>
    %cst_71 = arith.constant dense<0.000000e+00> : vector<128x32xf32>
    %132 = tpu.matmul %129, %131, %cst_71 {dimension_numbers = #tpu.dot_dimension_numbers<[1], [0], [0], [1], [0, 0, 1, 1], [], []>} : vector<128x32xbf16>, vector<32x32xbf16>, vector<128x32xf32> -> vector<128x32xf32>
    %c2_72 = arith.constant 2 : index
    %c0_73 = arith.constant 0 : index
    %133 = vector.load %arg10[%c2_72, %c0_73] : memref<5x32xf32, #tpu.memory_space<vmem>>, vector<1x32xf32>
    %134 = vector.shape_cast %133 : vector<1x32xf32> to vector<32xf32>
    %135 = vector.shape_cast %134 : vector<32xf32> to vector<1x32xf32>
    %136 = vector.broadcast %135 : vector<1x32xf32> to vector<128x32xf32>
    %137 = arith.addf %132, %136 : vector<128x32xf32>
    %138 = arith.truncf %94 : vector<128x32xf32> to vector<128x32xbf16>
    %c1_74 = arith.constant 1 : index
    %c0_75 = arith.constant 0 : index
    %c0_76 = arith.constant 0 : index
    %139 = vector.load %arg11[%c1_74, %c0_75, %c0_76] : memref<4x32x32xbf16, #tpu.memory_space<vmem>>, vector<1x32x32xbf16>
    %140 = vector.shape_cast %139 : vector<1x32x32xbf16> to vector<32x32xbf16>
    %cst_77 = arith.constant dense<0.000000e+00> : vector<128x32xf32>
    %141 = tpu.matmul %138, %140, %cst_77 {dimension_numbers = #tpu.dot_dimension_numbers<[1], [0], [0], [1], [0, 0, 1, 1], [], []>} : vector<128x32xbf16>, vector<32x32xbf16>, vector<128x32xf32> -> vector<128x32xf32>
    %142 = arith.addf %141, %114 : vector<128x32xf32>
    %143 = arith.addf %142, %137 : vector<128x32xf32>
    %144 = vector.shape_cast %143 : vector<128x32xf32> to vector<4x32x32xf32>
    %cst_78 = arith.constant dense<0xFF800000> : vector<4x32xf32>
    %145 = vector.multi_reduction <maximumf>, %144, %cst_78 [1] : vector<4x32x32xf32> to vector<4x32xf32>
    %cst_79 = arith.constant 0.000000e+00 : f32
    %146 = vector.broadcast %cst_79 : f32 to vector<4x32xf32>
    %147 = arith.maximumf %145, %146 : vector<4x32xf32>
    %148 = arith.truncf %147 : vector<4x32xf32> to vector<4x32xbf16>
    %c2_80 = arith.constant 2 : index
    %c0_81 = arith.constant 0 : index
    %c0_82 = arith.constant 0 : index
    %149 = vector.load %arg7[%c2_80, %c0_81, %c0_82] : memref<4x32x32xbf16, #tpu.memory_space<vmem>>, vector<1x32x32xbf16>
    %150 = vector.shape_cast %149 : vector<1x32x32xbf16> to vector<32x32xbf16>
    %cst_83 = arith.constant dense<0.000000e+00> : vector<4x32xf32>
    %151 = tpu.matmul %148, %150, %cst_83 {dimension_numbers = #tpu.dot_dimension_numbers<[1], [0], [0], [1], [0, 0, 1, 1], [], []>} : vector<4x32xbf16>, vector<32x32xbf16>, vector<4x32xf32> -> vector<4x32xf32>
    %152 = arith.truncf %145 : vector<4x32xf32> to vector<4x32xbf16>
    %c2_84 = arith.constant 2 : index
    %c0_85 = arith.constant 0 : index
    %c0_86 = arith.constant 0 : index
    %153 = vector.load %arg12[%c2_84, %c0_85, %c0_86] : memref<4x32x32xbf16, #tpu.memory_space<vmem>>, vector<1x32x32xbf16>
    %154 = vector.shape_cast %153 : vector<1x32x32xbf16> to vector<32x32xbf16>
    %cst_87 = arith.constant dense<0.000000e+00> : vector<4x32xf32>
    %155 = tpu.matmul %152, %154, %cst_87 {dimension_numbers = #tpu.dot_dimension_numbers<[1], [0], [0], [1], [0, 0, 1, 1], [], []>} : vector<4x32xbf16>, vector<32x32xbf16>, vector<4x32xf32> -> vector<4x32xf32>
    %156 = vector.shape_cast %151 : vector<4x32xf32> to vector<4x1x32xf32>
    %157 = vector.shape_cast %156 : vector<4x1x32xf32> to vector<4x1x32xf32>
    %158 = vector.broadcast %157 : vector<4x1x32xf32> to vector<4x32x32xf32>
    %159 = vector.shape_cast %158 : vector<4x32x32xf32> to vector<128x32xf32>
    %160 = vector.shape_cast %155 : vector<4x32xf32> to vector<4x1x32xf32>
    %161 = vector.shape_cast %160 : vector<4x1x32xf32> to vector<4x1x32xf32>
    %162 = vector.broadcast %161 : vector<4x1x32xf32> to vector<4x32x32xf32>
    %163 = vector.shape_cast %162 : vector<4x32x32xf32> to vector<128x32xf32>
    %cst_88 = arith.constant 0.000000e+00 : f32
    %164 = vector.broadcast %cst_88 : f32 to vector<128x32xf32>
    %165 = arith.maximumf %143, %164 : vector<128x32xf32>
    %166 = arith.truncf %165 : vector<128x32xf32> to vector<128x32xbf16>
    %c2_89 = arith.constant 2 : index
    %c0_90 = arith.constant 0 : index
    %c0_91 = arith.constant 0 : index
    %167 = vector.load %arg6[%c2_89, %c0_90, %c0_91] : memref<4x32x32xbf16, #tpu.memory_space<vmem>>, vector<1x32x32xbf16>
    %168 = vector.shape_cast %167 : vector<1x32x32xbf16> to vector<32x32xbf16>
    %cst_92 = arith.constant dense<0.000000e+00> : vector<128x32xf32>
    %169 = tpu.matmul %166, %168, %cst_92 {dimension_numbers = #tpu.dot_dimension_numbers<[1], [0], [0], [1], [0, 0, 1, 1], [], []>} : vector<128x32xbf16>, vector<32x32xbf16>, vector<128x32xf32> -> vector<128x32xf32>
    %170 = arith.addf %169, %159 : vector<128x32xf32>
    %c3 = arith.constant 3 : index
    %c0_93 = arith.constant 0 : index
    %171 = vector.load %arg8[%c3, %c0_93] : memref<5x32xf32, #tpu.memory_space<vmem>>, vector<1x32xf32>
    %172 = vector.shape_cast %171 : vector<1x32xf32> to vector<32xf32>
    %173 = vector.shape_cast %172 : vector<32xf32> to vector<1x32xf32>
    %174 = vector.broadcast %173 : vector<1x32xf32> to vector<128x32xf32>
    %175 = arith.addf %170, %174 : vector<128x32xf32>
    %cst_94 = arith.constant 0.000000e+00 : f32
    %176 = vector.broadcast %cst_94 : f32 to vector<128x32xf32>
    %177 = arith.maximumf %175, %176 : vector<128x32xf32>
    %178 = arith.truncf %177 : vector<128x32xf32> to vector<128x32xbf16>
    %c3_95 = arith.constant 3 : index
    %c0_96 = arith.constant 0 : index
    %c0_97 = arith.constant 0 : index
    %179 = vector.load %arg9[%c3_95, %c0_96, %c0_97] : memref<5x32x32xbf16, #tpu.memory_space<vmem>>, vector<1x32x32xbf16>
    %180 = vector.shape_cast %179 : vector<1x32x32xbf16> to vector<32x32xbf16>
    %cst_98 = arith.constant dense<0.000000e+00> : vector<128x32xf32>
    %181 = tpu.matmul %178, %180, %cst_98 {dimension_numbers = #tpu.dot_dimension_numbers<[1], [0], [0], [1], [0, 0, 1, 1], [], []>} : vector<128x32xbf16>, vector<32x32xbf16>, vector<128x32xf32> -> vector<128x32xf32>
    %c3_99 = arith.constant 3 : index
    %c0_100 = arith.constant 0 : index
    %182 = vector.load %arg10[%c3_99, %c0_100] : memref<5x32xf32, #tpu.memory_space<vmem>>, vector<1x32xf32>
    %183 = vector.shape_cast %182 : vector<1x32xf32> to vector<32xf32>
    %184 = vector.shape_cast %183 : vector<32xf32> to vector<1x32xf32>
    %185 = vector.broadcast %184 : vector<1x32xf32> to vector<128x32xf32>
    %186 = arith.addf %181, %185 : vector<128x32xf32>
    %187 = arith.truncf %143 : vector<128x32xf32> to vector<128x32xbf16>
    %c2_101 = arith.constant 2 : index
    %c0_102 = arith.constant 0 : index
    %c0_103 = arith.constant 0 : index
    %188 = vector.load %arg11[%c2_101, %c0_102, %c0_103] : memref<4x32x32xbf16, #tpu.memory_space<vmem>>, vector<1x32x32xbf16>
    %189 = vector.shape_cast %188 : vector<1x32x32xbf16> to vector<32x32xbf16>
    %cst_104 = arith.constant dense<0.000000e+00> : vector<128x32xf32>
    %190 = tpu.matmul %187, %189, %cst_104 {dimension_numbers = #tpu.dot_dimension_numbers<[1], [0], [0], [1], [0, 0, 1, 1], [], []>} : vector<128x32xbf16>, vector<32x32xbf16>, vector<128x32xf32> -> vector<128x32xf32>
    %191 = arith.addf %190, %163 : vector<128x32xf32>
    %192 = arith.addf %191, %186 : vector<128x32xf32>
    %193 = vector.shape_cast %192 : vector<128x32xf32> to vector<4x32x32xf32>
    %cst_105 = arith.constant dense<0xFF800000> : vector<4x32xf32>
    %194 = vector.multi_reduction <maximumf>, %193, %cst_105 [1] : vector<4x32x32xf32> to vector<4x32xf32>
    %cst_106 = arith.constant 0.000000e+00 : f32
    %195 = vector.broadcast %cst_106 : f32 to vector<4x32xf32>
    %196 = arith.maximumf %194, %195 : vector<4x32xf32>
    %197 = arith.truncf %196 : vector<4x32xf32> to vector<4x32xbf16>
    %c3_107 = arith.constant 3 : index
    %c0_108 = arith.constant 0 : index
    %c0_109 = arith.constant 0 : index
    %198 = vector.load %arg7[%c3_107, %c0_108, %c0_109] : memref<4x32x32xbf16, #tpu.memory_space<vmem>>, vector<1x32x32xbf16>
    %199 = vector.shape_cast %198 : vector<1x32x32xbf16> to vector<32x32xbf16>
    %cst_110 = arith.constant dense<0.000000e+00> : vector<4x32xf32>
    %200 = tpu.matmul %197, %199, %cst_110 {dimension_numbers = #tpu.dot_dimension_numbers<[1], [0], [0], [1], [0, 0, 1, 1], [], []>} : vector<4x32xbf16>, vector<32x32xbf16>, vector<4x32xf32> -> vector<4x32xf32>
    %201 = arith.truncf %194 : vector<4x32xf32> to vector<4x32xbf16>
    %c3_111 = arith.constant 3 : index
    %c0_112 = arith.constant 0 : index
    %c0_113 = arith.constant 0 : index
    %202 = vector.load %arg12[%c3_111, %c0_112, %c0_113] : memref<4x32x32xbf16, #tpu.memory_space<vmem>>, vector<1x32x32xbf16>
    %203 = vector.shape_cast %202 : vector<1x32x32xbf16> to vector<32x32xbf16>
    %cst_114 = arith.constant dense<0.000000e+00> : vector<4x32xf32>
    %204 = tpu.matmul %201, %203, %cst_114 {dimension_numbers = #tpu.dot_dimension_numbers<[1], [0], [0], [1], [0, 0, 1, 1], [], []>} : vector<4x32xbf16>, vector<32x32xbf16>, vector<4x32xf32> -> vector<4x32xf32>
    %205 = vector.shape_cast %200 : vector<4x32xf32> to vector<4x1x32xf32>
    %206 = vector.shape_cast %205 : vector<4x1x32xf32> to vector<4x1x32xf32>
    %207 = vector.broadcast %206 : vector<4x1x32xf32> to vector<4x32x32xf32>
    %208 = vector.shape_cast %207 : vector<4x32x32xf32> to vector<128x32xf32>
    %209 = vector.shape_cast %204 : vector<4x32xf32> to vector<4x1x32xf32>
    %210 = vector.shape_cast %209 : vector<4x1x32xf32> to vector<4x1x32xf32>
    %211 = vector.broadcast %210 : vector<4x1x32xf32> to vector<4x32x32xf32>
    %212 = vector.shape_cast %211 : vector<4x32x32xf32> to vector<128x32xf32>
    %cst_115 = arith.constant 0.000000e+00 : f32
    %213 = vector.broadcast %cst_115 : f32 to vector<128x32xf32>
    %214 = arith.maximumf %192, %213 : vector<128x32xf32>
    %215 = arith.truncf %214 : vector<128x32xf32> to vector<128x32xbf16>
    %c3_116 = arith.constant 3 : index
    %c0_117 = arith.constant 0 : index
    %c0_118 = arith.constant 0 : index
    %216 = vector.load %arg6[%c3_116, %c0_117, %c0_118] : memref<4x32x32xbf16, #tpu.memory_space<vmem>>, vector<1x32x32xbf16>
    %217 = vector.shape_cast %216 : vector<1x32x32xbf16> to vector<32x32xbf16>
    %cst_119 = arith.constant dense<0.000000e+00> : vector<128x32xf32>
    %218 = tpu.matmul %215, %217, %cst_119 {dimension_numbers = #tpu.dot_dimension_numbers<[1], [0], [0], [1], [0, 0, 1, 1], [], []>} : vector<128x32xbf16>, vector<32x32xbf16>, vector<128x32xf32> -> vector<128x32xf32>
    %219 = arith.addf %218, %208 : vector<128x32xf32>
    %c4 = arith.constant 4 : index
    %c0_120 = arith.constant 0 : index
    %220 = vector.load %arg8[%c4, %c0_120] : memref<5x32xf32, #tpu.memory_space<vmem>>, vector<1x32xf32>
    %221 = vector.shape_cast %220 : vector<1x32xf32> to vector<32xf32>
    %222 = vector.shape_cast %221 : vector<32xf32> to vector<1x32xf32>
    %223 = vector.broadcast %222 : vector<1x32xf32> to vector<128x32xf32>
    %224 = arith.addf %219, %223 : vector<128x32xf32>
    %cst_121 = arith.constant 0.000000e+00 : f32
    %225 = vector.broadcast %cst_121 : f32 to vector<128x32xf32>
    %226 = arith.maximumf %224, %225 : vector<128x32xf32>
    %227 = arith.truncf %226 : vector<128x32xf32> to vector<128x32xbf16>
    %c4_122 = arith.constant 4 : index
    %c0_123 = arith.constant 0 : index
    %c0_124 = arith.constant 0 : index
    %228 = vector.load %arg9[%c4_122, %c0_123, %c0_124] : memref<5x32x32xbf16, #tpu.memory_space<vmem>>, vector<1x32x32xbf16>
    %229 = vector.shape_cast %228 : vector<1x32x32xbf16> to vector<32x32xbf16>
    %cst_125 = arith.constant dense<0.000000e+00> : vector<128x32xf32>
    %230 = tpu.matmul %227, %229, %cst_125 {dimension_numbers = #tpu.dot_dimension_numbers<[1], [0], [0], [1], [0, 0, 1, 1], [], []>} : vector<128x32xbf16>, vector<32x32xbf16>, vector<128x32xf32> -> vector<128x32xf32>
    %c4_126 = arith.constant 4 : index
    %c0_127 = arith.constant 0 : index
    %231 = vector.load %arg10[%c4_126, %c0_127] : memref<5x32xf32, #tpu.memory_space<vmem>>, vector<1x32xf32>
    %232 = vector.shape_cast %231 : vector<1x32xf32> to vector<32xf32>
    %233 = vector.shape_cast %232 : vector<32xf32> to vector<1x32xf32>
    %234 = vector.broadcast %233 : vector<1x32xf32> to vector<128x32xf32>
    %235 = arith.addf %230, %234 : vector<128x32xf32>
    %236 = arith.truncf %192 : vector<128x32xf32> to vector<128x32xbf16>
    %c3_128 = arith.constant 3 : index
    %c0_129 = arith.constant 0 : index
    %c0_130 = arith.constant 0 : index
    %237 = vector.load %arg11[%c3_128, %c0_129, %c0_130] : memref<4x32x32xbf16, #tpu.memory_space<vmem>>, vector<1x32x32xbf16>
    %238 = vector.shape_cast %237 : vector<1x32x32xbf16> to vector<32x32xbf16>
    %cst_131 = arith.constant dense<0.000000e+00> : vector<128x32xf32>
    %239 = tpu.matmul %236, %238, %cst_131 {dimension_numbers = #tpu.dot_dimension_numbers<[1], [0], [0], [1], [0, 0, 1, 1], [], []>} : vector<128x32xbf16>, vector<32x32xbf16>, vector<128x32xf32> -> vector<128x32xf32>
    %240 = arith.addf %239, %212 : vector<128x32xf32>
    %241 = arith.addf %240, %235 : vector<128x32xf32>
    %242 = vector.shape_cast %241 : vector<128x32xf32> to vector<4x32x32xf32>
    %cst_132 = arith.constant dense<0xFF800000> : vector<4x32xf32>
    %243 = vector.multi_reduction <maximumf>, %242, %cst_132 [1] : vector<4x32x32xf32> to vector<4x32xf32>
    %cst_133 = arith.constant 0.000000e+00 : f32
    %244 = vector.broadcast %cst_133 : f32 to vector<4x32xf32>
    %245 = arith.maximumf %243, %244 : vector<4x32xf32>
    %246 = arith.truncf %245 : vector<4x32xf32> to vector<4x32xbf16>
    %c0_134 = arith.constant 0 : index
    %c0_135 = arith.constant 0 : index
    %247 = vector.load %arg13[%c0_134, %c0_135] : memref<32x128xbf16, #tpu.memory_space<vmem>>, vector<32x128xbf16>
    %cst_136 = arith.constant dense<0.000000e+00> : vector<4x128xf32>
    %248 = tpu.matmul %246, %247, %cst_136 {dimension_numbers = #tpu.dot_dimension_numbers<[1], [0], [0], [1], [0, 0, 1, 1], [], []>} : vector<4x32xbf16>, vector<32x128xbf16>, vector<4x128xf32> -> vector<4x128xf32>
    %c0_137 = arith.constant 0 : index
    %c0_138 = arith.constant 0 : index
    %249 = vector.load %arg14[%c0_137, %c0_138] : memref<1x128xf32, #tpu.memory_space<vmem>>, vector<1x128xf32>
    %250 = vector.broadcast %249 : vector<1x128xf32> to vector<4x128xf32>
    %251 = arith.addf %248, %250 : vector<4x128xf32>
    %252 = vector.shape_cast %251 : vector<4x128xf32> to vector<1x4x128xf32>
    %c0_139 = arith.constant 0 : index
    %c0_140 = arith.constant 0 : index
    %c0_141 = arith.constant 0 : index
    %253 = vector.load %arg15[%c0_139, %c0_140, %c0_141] : memref<1x4x128xf32, #tpu.memory_space<vmem>>, vector<1x4x128xf32>
    tpu.vector_store %arg15[%c0_139, %c0_140, %c0_141], %252 {strides = array<i32>} : memref<1x4x128xf32, #tpu.memory_space<vmem>>, vector<1x4x128xf32>,
    return
  }
  func.func @transform_0(%arg0: i32) -> (i32, i32) {
    %c0_i32 = arith.constant 0 : i32
    %c0_i32_0 = arith.constant 0 : i32
    return %arg0, %c0_i32 : i32, i32
  }
  func.func @transform_1(%arg0: i32) -> (i32, i32) {
    %c0_i32 = arith.constant 0 : i32
    %c0_i32_0 = arith.constant 0 : i32
    %c0_i32_1 = arith.constant 0 : i32
    return %c0_i32, %c0_i32_0 : i32, i32
  }
  func.func @transform_2(%arg0: i32) -> (i32, i32) {
    %c0_i32 = arith.constant 0 : i32
    %c0_i32_0 = arith.constant 0 : i32
    %c0_i32_1 = arith.constant 0 : i32
    return %c0_i32, %c0_i32_0 : i32, i32
  }
  func.func @transform_3(%arg0: i32) -> (i32, i32) {
    %c0_i32 = arith.constant 0 : i32
    %c0_i32_0 = arith.constant 0 : i32
    %c0_i32_1 = arith.constant 0 : i32
    return %c0_i32, %c0_i32_0 : i32, i32
  }
  func.func @transform_4(%arg0: i32) -> (i32, i32) {
    %c0_i32 = arith.constant 0 : i32
    %c0_i32_0 = arith.constant 0 : i32
    %c0_i32_1 = arith.constant 0 : i32
    return %c0_i32, %c0_i32_0 : i32, i32
  }
  func.func @transform_5(%arg0: i32) -> (i32, i32, i32) {
    %c0_i32 = arith.constant 0 : i32
    %c0_i32_0 = arith.constant 0 : i32
    %c0_i32_1 = arith.constant 0 : i32
    %c0_i32_2 = arith.constant 0 : i32
    return %c0_i32, %c0_i32_0, %c0_i32_1 : i32, i32, i32
  }
  func.func @transform_6(%arg0: i32) -> (i32, i32, i32) {
    %c0_i32 = arith.constant 0 : i32
    %c0_i32_0 = arith.constant 0 : i32
    %c0_i32_1 = arith.constant 0 : i32
    %c0_i32_2 = arith.constant 0 : i32
    return %c0_i32, %c0_i32_0, %c0_i32_1 : i32, i32, i32
  }
  func.func @transform_7(%arg0: i32) -> (i32, i32) {
    %c0_i32 = arith.constant 0 : i32
    %c0_i32_0 = arith.constant 0 : i32
    %c0_i32_1 = arith.constant 0 : i32
    return %c0_i32, %c0_i32_0 : i32, i32
  }
  func.func @transform_8(%arg0: i32) -> (i32, i32, i32) {
    %c0_i32 = arith.constant 0 : i32
    %c0_i32_0 = arith.constant 0 : i32
    %c0_i32_1 = arith.constant 0 : i32
    %c0_i32_2 = arith.constant 0 : i32
    return %c0_i32, %c0_i32_0, %c0_i32_1 : i32, i32, i32
  }
  func.func @transform_9(%arg0: i32) -> (i32, i32) {
    %c0_i32 = arith.constant 0 : i32
    %c0_i32_0 = arith.constant 0 : i32
    %c0_i32_1 = arith.constant 0 : i32
    return %c0_i32, %c0_i32_0 : i32, i32
  }
  func.func @transform_10(%arg0: i32) -> (i32, i32, i32) {
    %c0_i32 = arith.constant 0 : i32
    %c0_i32_0 = arith.constant 0 : i32
    %c0_i32_1 = arith.constant 0 : i32
    %c0_i32_2 = arith.constant 0 : i32
    return %c0_i32, %c0_i32_0, %c0_i32_1 : i32, i32, i32
  }
  func.func @transform_11(%arg0: i32) -> (i32, i32, i32) {
    %c0_i32 = arith.constant 0 : i32
    %c0_i32_0 = arith.constant 0 : i32
    %c0_i32_1 = arith.constant 0 : i32
    %c0_i32_2 = arith.constant 0 : i32
    return %c0_i32, %c0_i32_0, %c0_i32_1 : i32, i32, i32
  }
  func.func @transform_12(%arg0: i32) -> (i32, i32) {
    %c0_i32 = arith.constant 0 : i32
    %c0_i32_0 = arith.constant 0 : i32
    %c0_i32_1 = arith.constant 0 : i32
    return %c0_i32, %c0_i32_0 : i32, i32
  }
  func.func @transform_13(%arg0: i32) -> (i32, i32) {
    %c0_i32 = arith.constant 0 : i32
    %c0_i32_0 = arith.constant 0 : i32
    %c0_i32_1 = arith.constant 0 : i32
    return %c0_i32, %c0_i32_0 : i32, i32
  }
  func.func @transform_14(%arg0: i32) -> (i32, i32, i32) {
    %c0_i32 = arith.constant 0 : i32
    %c0_i32_0 = arith.constant 0 : i32
    %c0_i32_1 = arith.constant 0 : i32
    return %arg0, %c0_i32, %c0_i32_0 : i32, i32, i32
  }
}

</mosaic_0001>

<llo_original>
// kernel: tpu_custom_call.1
$region0: #{tpu_custom_call.1}
  #allocation0 [shape = 'u32[]', space=smem, size = 0x4, offset = 0x4, fixed_abs, tag = 'smem constant byte address 0x4 - core index']
  #allocation1 [shape = 'u32[144,128]{1,0:T(1,128)}', space=vmem, size = 0x12000, scoped, tag = 'internal scratch']
  %s0 = inlined_call_operand.vmem [shape: f32[256,3], index: 0, kind: input, shape index: {}]
  %s1 = inlined_call_operand.hbm [shape: f32[3,64], index: 1, kind: input, shape index: {}]
  %s2 = inlined_call_operand.hbm [shape: f32[1,64], index: 2, kind: input, shape index: {}]
  %s3 = inlined_call_operand.vmem [shape: bf16[64,32], index: 3, kind: input, shape index: {}]
  %s4 = inlined_call_operand.vmem [shape: bf16[64,32], index: 4, kind: input, shape index: {}]
  %s5 = inlined_call_operand.vmem [shape: bf16[4,32,32], index: 5, kind: input, shape index: {}]
  %s6 = inlined_call_operand.vmem [shape: bf16[4,32,32], index: 6, kind: input, shape index: {}]
  %s7 = inlined_call_operand.hbm [shape: f32[5,32], index: 7, kind: input, shape index: {}]
  %s8 = inlined_call_operand.vmem [shape: bf16[5,32,32], index: 8, kind: input, shape index: {}]
  %s9 = inlined_call_operand.vmem [shape: f32[5,32], index: 9, kind: input, shape index: {}]
  %s10 = inlined_call_operand.vmem [shape: bf16[4,32,32], index: 10, kind: input, shape index: {}]
  %s11 = inlined_call_operand.vmem [shape: bf16[4,32,32], index: 11, kind: input, shape index: {}]
  %s12 = inlined_call_operand.vmem [shape: bf16[32,128], index: 12, kind: input, shape index: {}]
  %s13 = inlined_call_operand.vmem [shape: f32[1,128], index: 13, kind: input, shape index: {}]
  %s14 = inlined_call_operand.hbm [shape: f32[2,4,128], index: 14, kind: output, shape index: {}]
  %s15 = sld [smem:[#allocation0]]
  $region101: #{tpu_custom_call.1} parent=0
    _
  %s17 = ssub.s32 1, %s15
  %s18 = scalar_select 0, %s17, %s15
  $region1: #{tpu_custom_call.1} parent=0
    #allocation2 [shape = 'u8[2048]{0}', space=vmem, size = 0x800, scoped, tag = 'input window, operand 1, single buffered']
    #allocation3 [shape = 's32[2]{0}', space=sflag, size = 0x8, scoped, tag = 'scoped memory for tpu_custom_call.1']
    #allocation4 [shape = 's32[2]{0}', space=sflag, size = 0x8, scoped, tag = 'scoped memory for tpu_custom_call.1']
    #allocation5 [shape = 'u8[512]{0}', space=vmem, size = 0x400, scoped, tag = 'input window, operand 2, single buffered']
    #allocation6 [shape = 's32[1]{0}', space=sflag, size = 0x4, scoped, tag = 'scoped memory for tpu_custom_call.1']
    #allocation7 [shape = 'u8[4096]{0}', space=vmem, size = 0x1000, scoped, tag = 'input window, operand 7, single buffered']
    #allocation8 [shape = 'u8[4096]{0}', space=vmem, size = 0x1000, scoped, tag = 'output window, operand 0']
    %19 = vsyncpa [#allocation3], 0
    %20 = vsyncpa [#allocation6], 0
    %21 = vsyncpa [#allocation4], 0
    %s22 = scalar_lea.sflag [#allocation4], 1
    %23 = vsyncpa %s22, 0
    loop: start=0, step=1, limit=4
    $region2: #{tpu_custom_call.1} parent=1 // loop_pre_header
      _
    $region3: #{tpu_custom_call.1} parent=1 // loop_header
      %s25 = sphi 0, %s29
      %p26 = scmp.ge.s32.totalorder %s25, 4
      %s35 = sphi 0, %s37
      %s38 = sphi 0, %s35
      %s39 = sphi 0, %s38
      %s55 = sphi 0, %s39
      %s59 = sphi 0, %s59
      %s61 = sphi 0, %s59
      %s62 = sphi 0, %s61
      %s76 = sphi 0, %s62
      %s80 = sphi 0, %s80
      %s82 = sphi 0, %s80
      %s83 = sphi 0, %s82
      %s97 = sphi 0, %s83
      %s101 = sphi 0, %s101
      %s103 = sphi 0, %s101
      %s104 = sphi 0, %s103
      %s118 = sphi 0, %s104
      %s122 = sphi 0, %s122
      %s124 = sphi 0, %s122
      %s125 = sphi 0, %s124
      %s139 = sphi 0, %s125
      %s143 = sphi 0, %s143
      %s145 = sphi 0, %s143
      %s146 = sphi 0, %s145
      %s160 = sphi 0, %s146
      %s164 = sphi 0, %s164
      %s166 = sphi 0, %s164
      %s167 = sphi 0, %s166
      %s181 = sphi 0, %s167
      %s185 = sphi 0, %s185
      %s187 = sphi 0, %s185
      %s188 = sphi 0, %s187
      %s202 = sphi 0, %s188
      %s206 = sphi 0, %s206
      %s208 = sphi 0, %s206
      %s209 = sphi 0, %s208
      %s223 = sphi 0, %s209
      %s227 = sphi 0, %s227
      %s229 = sphi 0, %s227
      %s230 = sphi 0, %s229
      %s244 = sphi 0, %s230
      %s248 = sphi 0, %s248
      %s250 = sphi 0, %s248
      %s251 = sphi 0, %s250
      %s265 = sphi 0, %s251
      %s269 = sphi 0, %s269
      %s271 = sphi 0, %s269
      %s272 = sphi 0, %s271
      %s286 = sphi 0, %s272
      %s290 = sphi 0, %s290
      %s292 = sphi 0, %s290
      %s293 = sphi 0, %s292
      %s307 = sphi 0, %s293
      %s311 = sphi 0, %s311
      %s313 = sphi 0, %s311
      %s314 = sphi 0, %s313
      %s328 = sphi 0, %s314
      %s334 = sphi 0, %s336
      %s337 = sphi 0, %s334
      %s338 = sphi 0, %s337
      %s354 = sphi 0, %s338
    $region4: #{tpu_custom_call.1} parent=1 // loop_header_branch
      %28 = sbr.rel (%p26) target = $region8
    $region5: #{tpu_custom_call.1} parent=1 // loop_body
      %s30 = ssub.s32 %s25, 1
      %s31 = ssub.s32 %s25, 2
      %s32 = sadd.s32 %s25, 1
      %s33 = ssub.s32 %s25, %s32
      %p34 = scmp.eq.s32.totalorder %s33, 0
      %s36 = sadd.s32 %s35, 1
      %s37 = scalar_select %p34, %s35, %s36
      %p40 = pneg %p34
      %p41 = scmp.eq.s32.totalorder %s25, 1
      %p42 = por %p40, %p41
      %p43 = scmp.ne.s32.totalorder %s35, %s38
      %p44 = scmp.eq.s32.totalorder %s25, 0
      %p45 = por %p43, %p44
      %p46 = scmp.ne.s32.totalorder %s35, %s38
      %p47 = scmp.eq.s32.totalorder %s30, 1
      %p48 = por %p46, %p47
      %p49 = scmp.ne.s32.totalorder %s38, %s39
      %p50 = scmp.eq.s32.totalorder %s30, 0
      %p51 = por %p49, %p50
      %p52 = scmp.ne.s32.totalorder %s38, %s39
      %p53 = scmp.eq.s32.totalorder %s31, 1
      %p54 = por %p52, %p53
      %p56 = scmp.ne.s32.totalorder %s39, %s55
      %p57 = scmp.eq.s32.totalorder %s31, 0
      %p58 = por %p56, %p57
      %s60 = sadd.s32 %s59, 1
      %p63 = scmp.eq.s32.totalorder %s25, 1
      %p64 = scmp.ne.s32.totalorder %s59, %s61
      %p65 = scmp.eq.s32.totalorder %s25, 0
      %p66 = por %p64, %p65
      %p67 = scmp.ne.s32.totalorder %s59, %s61
      %p68 = scmp.eq.s32.totalorder %s30, 1
      %p69 = por %p67, %p68
      %p70 = scmp.ne.s32.totalorder %s61, %s62
      %p71 = scmp.eq.s32.totalorder %s30, 0
      %p72 = por %p70, %p71
      %p73 = scmp.ne.s32.totalorder %s61, %s62
      %p74 = scmp.eq.s32.totalorder %s31, 1
      %p75 = por %p73, %p74
      %p77 = scmp.ne.s32.totalorder %s62, %s76
      %p78 = scmp.eq.s32.totalorder %s31, 0
      %p79 = por %p77, %p78
      %s81 = sadd.s32 %s80, 1
      %p84 = scmp.eq.s32.totalorder %s25, 1
      %p85 = scmp.ne.s32.totalorder %s80, %s82
      %p86 = scmp.eq.s32.totalorder %s25, 0
      %p87 = por %p85, %p86
      %p88 = scmp.ne.s32.totalorder %s80, %s82
      %p89 = scmp.eq.s32.totalorder %s30, 1
      %p90 = por %p88, %p89
      %p91 = scmp.ne.s32.totalorder %s82, %s83
      %p92 = scmp.eq.s32.totalorder %s30, 0
      %p93 = por %p91, %p92
      %p94 = scmp.ne.s32.totalorder %s82, %s83
      %p95 = scmp.eq.s32.totalorder %s31, 1
      %p96 = por %p94, %p95
      %p98 = scmp.ne.s32.totalorder %s83, %s97
      %p99 = scmp.eq.s32.totalorder %s31, 0
      %p100 = por %p98, %p99
      %s102 = sadd.s32 %s101, 1
      %p105 = scmp.eq.s32.totalorder %s25, 1
      %p106 = scmp.ne.s32.totalorder %s101, %s103
      %p107 = scmp.eq.s32.totalorder %s25, 0
      %p108 = por %p106, %p107
      %p109 = scmp.ne.s32.totalorder %s101, %s103
      %p110 = scmp.eq.s32.totalorder %s30, 1
      %p111 = por %p109, %p110
      %p112 = scmp.ne.s32.totalorder %s103, %s104
      %p113 = scmp.eq.s32.totalorder %s30, 0
      %p114 = por %p112, %p113
      %p115 = scmp.ne.s32.totalorder %s103, %s104
      %p116 = scmp.eq.s32.totalorder %s31, 1
      %p117 = por %p115, %p116
      %p119 = scmp.ne.s32.totalorder %s104, %s118
      %p120 = scmp.eq.s32.totalorder %s31, 0
      %p121 = por %p119, %p120
      %s123 = sadd.s32 %s122, 1
      %p126 = scmp.eq.s32.totalorder %s25, 1
      %p127 = scmp.ne.s32.totalorder %s122, %s124
      %p128 = scmp.eq.s32.totalorder %s25, 0
      %p129 = por %p127, %p128
      %p130 = scmp.ne.s32.totalorder %s122, %s124
      %p131 = scmp.eq.s32.totalorder %s30, 1
      %p132 = por %p130, %p131
      %p133 = scmp.ne.s32.totalorder %s124, %s125
      %p134 = scmp.eq.s32.totalorder %s30, 0
      %p135 = por %p133, %p134
      %p136 = scmp.ne.s32.totalorder %s124, %s125
      %p137 = scmp.eq.s32.totalorder %s31, 1
      %p138 = por %p136, %p137
      %p140 = scmp.ne.s32.totalorder %s125, %s139
      %p141 = scmp.eq.s32.totalorder %s31, 0
      %p142 = por %p140, %p141
      %s144 = sadd.s32 %s143, 1
      %p147 = scmp.eq.s32.totalorder %s25, 1
      %p148 = scmp.ne.s32.totalorder %s143, %s145
      %p149 = scmp.eq.s32.totalorder %s25, 0
      %p150 = por %p148, %p149
      %p151 = scmp.ne.s32.totalorder %s143, %s145
      %p152 = scmp.eq.s32.totalorder %s30, 1
      %p153 = por %p151, %p152
      %p154 = scmp.ne.s32.totalorder %s145, %s146
      %p155 = scmp.eq.s32.totalorder %s30, 0
      %p156 = por %p154, %p155
      %p157 = scmp.ne.s32.totalorder %s145, %s146
      %p158 = scmp.eq.s32.totalorder %s31, 1
      %p159 = por %p157, %p158
      %p161 = scmp.ne.s32.totalorder %s146, %s160
      %p162 = scmp.eq.s32.totalorder %s31, 0
      %p163 = por %p161, %p162
      %s165 = sadd.s32 %s164, 1
      %p168 = scmp.eq.s32.totalorder %s25, 1
      %p169 = scmp.ne.s32.totalorder %s164, %s166
      %p170 = scmp.eq.s32.totalorder %s25, 0
      %p171 = por %p169, %p170
      %p172 = scmp.ne.s32.totalorder %s164, %s166
      %p173 = scmp.eq.s32.totalorder %s30, 1
      %p174 = por %p172, %p173
      %p175 = scmp.ne.s32.totalorder %s166, %s167
      %p176 = scmp.eq.s32.totalorder %s30, 0
      %p177 = por %p175, %p176
      %p178 = scmp.ne.s32.totalorder %s166, %s167
      %p179 = scmp.eq.s32.totalorder %s31, 1
      %p180 = por %p178, %p179
      %p182 = scmp.ne.s32.totalorder %s167, %s181
      %p183 = scmp.eq.s32.totalorder %s31, 0
      %p184 = por %p182, %p183
      %s186 = sadd.s32 %s185, 1
      %p189 = scmp.eq.s32.totalorder %s25, 1
      %p190 = scmp.ne.s32.totalorder %s185, %s187
      %p191 = scmp.eq.s32.totalorder %s25, 0
      %p192 = por %p190, %p191
      %p193 = scmp.ne.s32.totalorder %s185, %s187
      %p194 = scmp.eq.s32.totalorder %s30, 1
      %p195 = por %p193, %p194
      %p196 = scmp.ne.s32.totalorder %s187, %s188
      %p197 = scmp.eq.s32.totalorder %s30, 0
      %p198 = por %p196, %p197
      %p199 = scmp.ne.s32.totalorder %s187, %s188
      %p200 = scmp.eq.s32.totalorder %s31, 1
      %p201 = por %p199, %p200
      %p203 = scmp.ne.s32.totalorder %s188, %s202
      %p204 = scmp.eq.s32.totalorder %s31, 0
      %p205 = por %p203, %p204
      %s207 = sadd.s32 %s206, 1
      %p210 = scmp.eq.s32.totalorder %s25, 1
      %p211 = scmp.ne.s32.totalorder %s206, %s208
      %p212 = scmp.eq.s32.totalorder %s25, 0
      %p213 = por %p211, %p212
      %p214 = scmp.ne.s32.totalorder %s206, %s208
      %p215 = scmp.eq.s32.totalorder %s30, 1
      %p216 = por %p214, %p215
      %p217 = scmp.ne.s32.totalorder %s208, %s209
      %p218 = scmp.eq.s32.totalorder %s30, 0
      %p219 = por %p217, %p218
      %p220 = scmp.ne.s32.totalorder %s208, %s209
      %p221 = scmp.eq.s32.totalorder %s31, 1
      %p222 = por %p220, %p221
      %p224 = scmp.ne.s32.totalorder %s209, %s223
      %p225 = scmp.eq.s32.totalorder %s31, 0
      %p226 = por %p224, %p225
      %s228 = sadd.s32 %s227, 1
      %p231 = scmp.eq.s32.totalorder %s25, 1
      %p232 = scmp.ne.s32.totalorder %s227, %s229
      %p233 = scmp.eq.s32.totalorder %s25, 0
      %p234 = por %p232, %p233
      %p235 = scmp.ne.s32.totalorder %s227, %s229
      %p236 = scmp.eq.s32.totalorder %s30, 1
      %p237 = por %p235, %p236
      %p238 = scmp.ne.s32.totalorder %s229, %s230
      %p239 = scmp.eq.s32.totalorder %s30, 0
      %p240 = por %p238, %p239
      %p241 = scmp.ne.s32.totalorder %s229, %s230
      %p242 = scmp.eq.s32.totalorder %s31, 1
      %p243 = por %p241, %p242
      %p245 = scmp.ne.s32.totalorder %s230, %s244
      %p246 = scmp.eq.s32.totalorder %s31, 0
      %p247 = por %p245, %p246
      %s249 = sadd.s32 %s248, 1
      %p252 = scmp.eq.s32.totalorder %s25, 1
      %p253 = scmp.ne.s32.totalorder %s248, %s250
      %p254 = scmp.eq.s32.totalorder %s25, 0
      %p255 = por %p253, %p254
      %p256 = scmp.ne.s32.totalorder %s248, %s250
      %p257 = scmp.eq.s32.totalorder %s30, 1
      %p258 = por %p256, %p257
      %p259 = scmp.ne.s32.totalorder %s250, %s251
      %p260 = scmp.eq.s32.totalorder %s30, 0
      %p261 = por %p259, %p260
      %p262 = scmp.ne.s32.totalorder %s250, %s251
      %p263 = scmp.eq.s32.totalorder %s31, 1
      %p264 = por %p262, %p263
      %p266 = scmp.ne.s32.totalorder %s251, %s265
      %p267 = scmp.eq.s32.totalorder %s31, 0
      %p268 = por %p266, %p267
      %s270 = sadd.s32 %s269, 1
      %p273 = scmp.eq.s32.totalorder %s25, 1
      %p274 = scmp.ne.s32.totalorder %s269, %s271
      %p275 = scmp.eq.s32.totalorder %s25, 0
      %p276 = por %p274, %p275
      %p277 = scmp.ne.s32.totalorder %s269, %s271
      %p278 = scmp.eq.s32.totalorder %s30, 1
      %p279 = por %p277, %p278
      %p280 = scmp.ne.s32.totalorder %s271, %s272
      %p281 = scmp.eq.s32.totalorder %s30, 0
      %p282 = por %p280, %p281
      %p283 = scmp.ne.s32.totalorder %s271, %s272
      %p284 = scmp.eq.s32.totalorder %s31, 1
      %p285 = por %p283, %p284
      %p287 = scmp.ne.s32.totalorder %s272, %s286
      %p288 = scmp.eq.s32.totalorder %s31, 0
      %p289 = por %p287, %p288
      %s291 = sadd.s32 %s290, 1
      %p294 = scmp.eq.s32.totalorder %s25, 1
      %p295 = scmp.ne.s32.totalorder %s290, %s292
      %p296 = scmp.eq.s32.totalorder %s25, 0
      %p297 = por %p295, %p296
      %p298 = scmp.ne.s32.totalorder %s290, %s292
      %p299 = scmp.eq.s32.totalorder %s30, 1
      %p300 = por %p298, %p299
      %p301 = scmp.ne.s32.totalorder %s292, %s293
      %p302 = scmp.eq.s32.totalorder %s30, 0
      %p303 = por %p301, %p302
      %p304 = scmp.ne.s32.totalorder %s292, %s293
      %p305 = scmp.eq.s32.totalorder %s31, 1
      %p306 = por %p304, %p305
      %p308 = scmp.ne.s32.totalorder %s293, %s307
      %p309 = scmp.eq.s32.totalorder %s31, 0
      %p310 = por %p308, %p309
      %s312 = sadd.s32 %s311, 1
      %p315 = scmp.eq.s32.totalorder %s25, 1
      %p316 = scmp.ne.s32.totalorder %s311, %s313
      %p317 = scmp.eq.s32.totalorder %s25, 0
      %p318 = por %p316, %p317
      %p319 = scmp.ne.s32.totalorder %s311, %s313
      %p320 = scmp.eq.s32.totalorder %s30, 1
      %p321 = por %p319, %p320
      %p322 = scmp.ne.s32.totalorder %s313, %s314
      %p323 = scmp.eq.s32.totalorder %s30, 0
      %p324 = por %p322, %p323
      %p325 = scmp.ne.s32.totalorder %s313, %s314
      %p326 = scmp.eq.s32.totalorder %s31, 1
      %p327 = por %p325, %p326
      %p329 = scmp.ne.s32.totalorder %s314, %s328
      %p330 = scmp.eq.s32.totalorder %s31, 0
      %p331 = por %p329, %p330
      %s332 = ssub.s32 %s25, %s32
      %p333 = scmp.eq.s32.totalorder %s332, 0
      %s335 = sadd.s32 %s334, 1
      %s336 = scalar_select %p333, %s334, %s335
      %p339 = pneg %p333
      %p340 = scmp.eq.s32.totalorder %s25, 1
      %p341 = por %p339, %p340
      %p342 = scmp.ne.s32.totalorder %s334, %s337
      %p343 = scmp.eq.s32.totalorder %s25, 0
      %p344 = por %p342, %p343
      %p345 = scmp.ne.s32.totalorder %s334, %s337
      %p346 = scmp.eq.s32.totalorder %s30, 1
      %p347 = por %p345, %p346
      %p348 = scmp.ne.s32.totalorder %s337, %s338
      %p349 = scmp.eq.s32.totalorder %s30, 0
      %p350 = por %p348, %p349
      %p351 = scmp.ne.s32.totalorder %s337, %s338
      %p352 = scmp.eq.s32.totalorder %s31, 1
      %p353 = por %p351, %p352
      %p355 = scmp.ne.s32.totalorder %s338, %s354
      %p356 = scmp.eq.s32.totalorder %s31, 0
      %p357 = por %p355, %p356
      %p358 = scmp.le.s32.totalorder 1, %s25
      %p359 = scmp.lt.s32.totalorder %s25, 3
      %p360 = pnand %p358, %p359
      %p361 = pneg %p360
      // Predicated region
      $region9: #{tpu_custom_call.1} parent=5 // pred_check
        _
      $region10: #{tpu_custom_call.1} parent=5 // pred_check_branch
        %363 = sbr.rel (%p360) target = $region12
      $region11: #{tpu_custom_call.1} parent=5 // pred_region
        %s364 = ssub.s32 %s25, 1
        // Predicated region
        $region13: #{tpu_custom_call.1} parent=11 // pred_check
          %p365 = pneg %p72
        $region14: #{tpu_custom_call.1} parent=11 // pred_check_branch
          %367 = sbr.rel (%p365) target = $region16
        $region15: #{tpu_custom_call.1} parent=11 // pred_region
          %s369 = ssub.s32 64, 64
          %370 = vsyncadd [#allocation3], %s369
          %s372 = sshll.u32 [#allocation2], 4
          %s373 = int_to_ptr.vmem [resolvable:$true] %s372
          %375 = dma.hbm_to_vmem [thread:$0]  %s1, 64, %s373, [#allocation3]
        $region16: #{tpu_custom_call.1} parent=11 // pred_fallthru
          _
        // Predicated region
        $region17: #{tpu_custom_call.1} parent=11 // pred_check
          %p376 = pneg %p93
        $region18: #{tpu_custom_call.1} parent=11 // pred_check_branch
          %378 = sbr.rel (%p376) target = $region20
        $region19: #{tpu_custom_call.1} parent=11 // pred_region
          %s380 = ssub.s32 16, 16
          %381 = vsyncadd [#allocation6], %s380
          %s383 = sshll.u32 [#allocation5], 4
          %s384 = int_to_ptr.vmem [resolvable:$true] %s383
          %386 = dma.hbm_to_vmem [thread:$0]  %s2, 16, %s384, [#allocation6]
        $region20: #{tpu_custom_call.1} parent=11 // pred_fallthru
          _
        // Predicated region
        $region21: #{tpu_custom_call.1} parent=11 // pred_check
          %p387 = pneg %p114
        $region22: #{tpu_custom_call.1} parent=11 // pred_check_branch
          %389 = sbr.rel (%p387) target = $region24
        $region23: #{tpu_custom_call.1} parent=11 // pred_region
          _
        $region24: #{tpu_custom_call.1} parent=11 // pred_fallthru
          _
        // Predicated region
        $region25: #{tpu_custom_call.1} parent=11 // pred_check
          %p390 = pneg %p135
        $region26: #{tpu_custom_call.1} parent=11 // pred_check_branch
          %392 = sbr.rel (%p390) target = $region28
        $region27: #{tpu_custom_call.1} parent=11 // pred_region
          _
        $region28: #{tpu_custom_call.1} parent=11 // pred_fallthru
          _
        // Predicated region
        $region29: #{tpu_custom_call.1} parent=11 // pred_check
          %p393 = pneg %p156
        $region30: #{tpu_custom_call.1} parent=11 // pred_check_branch
          %395 = sbr.rel (%p393) target = $region32
        $region31: #{tpu_custom_call.1} parent=11 // pred_region
          _
        $region32: #{tpu_custom_call.1} parent=11 // pred_fallthru
          _
        // Predicated region
        $region33: #{tpu_custom_call.1} parent=11 // pred_check
          %p396 = pneg %p177
        $region34: #{tpu_custom_call.1} parent=11 // pred_check_branch
          %398 = sbr.rel (%p396) target = $region36
        $region35: #{tpu_custom_call.1} parent=11 // pred_region
          _
        $region36: #{tpu_custom_call.1} parent=11 // pred_fallthru
          _
        // Predicated region
        $region37: #{tpu_custom_call.1} parent=11 // pred_check
          %p399 = pneg %p198
        $region38: #{tpu_custom_call.1} parent=11 // pred_check_branch
          %401 = sbr.rel (%p399) target = $region40
        $region39: #{tpu_custom_call.1} parent=11 // pred_region
          %s403 = ssub.s32 128, 128
          %404 = vsyncadd [#allocation6], %s403
          %s406 = sshll.u32 [#allocation7], 4
          %s407 = int_to_ptr.vmem [resolvable:$true] %s406
          %409 = dma.hbm_to_vmem [thread:$0]  %s7, 128, %s407, [#allocation6]
        $region40: #{tpu_custom_call.1} parent=11 // pred_fallthru
          _
        // Predicated region
        $region41: #{tpu_custom_call.1} parent=11 // pred_check
          %p410 = pneg %p219
        $region42: #{tpu_custom_call.1} parent=11 // pred_check_branch
          %412 = sbr.rel (%p410) target = $region44
        $region43: #{tpu_custom_call.1} parent=11 // pred_region
          _
        $region44: #{tpu_custom_call.1} parent=11 // pred_fallthru
          _
        // Predicated region
        $region45: #{tpu_custom_call.1} parent=11 // pred_check
          %p413 = pneg %p240
        $region46: #{tpu_custom_call.1} parent=11 // pred_check_branch
          %415 = sbr.rel (%p413) target = $region48
        $region47: #{tpu_custom_call.1} parent=11 // pred_region
          _
        $region48: #{tpu_custom_call.1} parent=11 // pred_fallthru
          _
        // Predicated region
        $region49: #{tpu_custom_call.1} parent=11 // pred_check
          %p416 = pneg %p261
        $region50: #{tpu_custom_call.1} parent=11 // pred_check_branch
          %418 = sbr.rel (%p416) target = $region52
        $region51: #{tpu_custom_call.1} parent=11 // pred_region
          _
        $region52: #{tpu_custom_call.1} parent=11 // pred_fallthru
          _
        // Predicated region
        $region53: #{tpu_custom_call.1} parent=11 // pred_check
          %p419 = pneg %p282
        $region54: #{tpu_custom_call.1} parent=11 // pred_check_branch
          %421 = sbr.rel (%p419) target = $region56
        $region55: #{tpu_custom_call.1} parent=11 // pred_region
          _
        $region56: #{tpu_custom_call.1} parent=11 // pred_fallthru
          _
        // Predicated region
        $region57: #{tpu_custom_call.1} parent=11 // pred_check
          %p422 = pneg %p303
        $region58: #{tpu_custom_call.1} parent=11 // pred_check_branch
          %424 = sbr.rel (%p422) target = $region60
        $region59: #{tpu_custom_call.1} parent=11 // pred_region
          _
        $region60: #{tpu_custom_call.1} parent=11 // pred_fallthru
          _
        // Predicated region
        $region61: #{tpu_custom_call.1} parent=11 // pred_check
          %p425 = pneg %p324
        $region62: #{tpu_custom_call.1} parent=11 // pred_check_branch
          %427 = sbr.rel (%p425) target = $region64
        $region63: #{tpu_custom_call.1} parent=11 // pred_region
          _
        $region64: #{tpu_custom_call.1} parent=11 // pred_fallthru
          _
      $region12: #{tpu_custom_call.1} parent=5 // pred_fallthru
        _
      %p428 = scmp.lt.s32.totalorder %s25, 2
      // Predicated region
      $region65: #{tpu_custom_call.1} parent=5 // pred_check
        %p429 = pneg %p428
      $region66: #{tpu_custom_call.1} parent=5 // pred_check_branch
        %431 = sbr.rel (%p429) target = $region68
      $region67: #{tpu_custom_call.1} parent=5 // pred_region
        // Predicated region
        $region69: #{tpu_custom_call.1} parent=67 // pred_check
          %p432 = pneg %p45
        $region70: #{tpu_custom_call.1} parent=67 // pred_check_branch
          %434 = sbr.rel (%p432) target = $region72
        $region71: #{tpu_custom_call.1} parent=67 // pred_region
          %s435 = smul.u32 16, %s25
          %p436 = scmp.lt.s32.totalorder %s435, 31
          %s437 = scalar_select %p436, %s435, 31
          %s438 = smul.addr %s437, 8
          %s439 = scalar_lea.vmem %s0, %s438
          %s440 = smul.u32 16, %s25
        $region72: #{tpu_custom_call.1} parent=67 // pred_fallthru
          _
      $region68: #{tpu_custom_call.1} parent=5 // pred_fallthru
        _
      %p441 = scmp.le.s32.totalorder 1, %s25
      %p442 = scmp.lt.s32.totalorder %s25, 3
      %p443 = pnand %p441, %p442
      %p444 = pneg %p443
      // Predicated region
      $region73: #{tpu_custom_call.1} parent=5 // pred_check
        _
      $region74: #{tpu_custom_call.1} parent=5 // pred_check_branch
        %446 = sbr.rel (%p443) target = $region76
      $region75: #{tpu_custom_call.1} parent=5 // pred_region
        %s447 = ssub.s32 %s25, 1
        // Predicated region
        $region77: #{tpu_custom_call.1} parent=75 // pred_check
          %p448 = pneg %p72
        $region78: #{tpu_custom_call.1} parent=75 // pred_check_branch
          %450 = sbr.rel (%p448) target = $region80
        $region79: #{tpu_custom_call.1} parent=75 // pred_region
          %451 = dma.done [#allocation3], 64
        $region80: #{tpu_custom_call.1} parent=75 // pred_fallthru
          _
        // Predicated region
        $region81: #{tpu_custom_call.1} parent=75 // pred_check
          %p452 = pneg %p93
        $region82: #{tpu_custom_call.1} parent=75 // pred_check_branch
          %454 = sbr.rel (%p452) target = $region84
        $region83: #{tpu_custom_call.1} parent=75 // pred_region
          %455 = dma.done [#allocation6], 16
        $region84: #{tpu_custom_call.1} parent=75 // pred_fallthru
          _
        // Predicated region
        $region85: #{tpu_custom_call.1} parent=75 // pred_check
          %p456 = pneg %p198
        $region86: #{tpu_custom_call.1} parent=75 // pred_check_branch
          %458 = sbr.rel (%p456) target = $region88
        $region87: #{tpu_custom_call.1} parent=75 // pred_region
          %459 = dma.done [#allocation6], 128
        $region88: #{tpu_custom_call.1} parent=75 // pred_fallthru
          _
        %s460 = smul.u32 16, %s30
        %p461 = scmp.lt.s32.totalorder %s460, 31
        %s462 = scalar_select %p461, %s460, 31
        %s463 = smul.addr %s462, 8
        %s464 = scalar_lea.vmem %s0, %s463
        %p465 = pneg %p51
        %p466 = pneg %p48
        %p467 = pneg %p72
        %p468 = pneg %p69
        %p469 = pneg %p93
        %p470 = pneg %p90
        %p471 = pneg %p114
        %p472 = pneg %p111
        %p473 = pneg %p135
        %p474 = pneg %p132
        %p475 = pneg %p156
        %p476 = pneg %p153
        %p477 = pneg %p177
        %p478 = pneg %p174
        %p479 = pneg %p198
        %p480 = pneg %p195
        %p481 = pneg %p219
        %p482 = pneg %p216
        %p483 = pneg %p240
        %p484 = pneg %p237
        %p485 = pneg %p261
        %p486 = pneg %p258
        %p487 = pneg %p282
        %p488 = pneg %p279
        %p489 = pneg %p303
        %p490 = pneg %p300
        %p491 = pneg %p324
        %p492 = pneg %p321
        %p493 = pneg %p350
        %p494 = pneg %p347
        %s495 = sand.u32 %s337, 1
        %s496 = scalar_lea.sflag [#allocation4], %s495
        %s497 = sand.u32 %s337, 1
        %s498 = smul.addr %s497, 4
        %s499 = scalar_lea.vmem [#allocation8], %s498
        %s500 = smul.u32 16, %s30
        %p501 = scmp.lt.s32.totalorder %s500, 31
        %s502 = scalar_select %p501, %s500, 31
        %s503 = smul.addr %s502, 8
        %s504 = scalar_lea.vmem %s0, %s503
        %s505 = smul.u32 16, %s30
        %v507 = vld [vmem:[%s504] sm:$0xff]
        %v508 = vld [vmem:[%s504 + $0x8] sm:$0xff]
        %v509 = vld [vmem:[%s504 + $0x10] sm:$0xff]
        %v510 = vld [vmem:[%s504 + $0x18] sm:$0xff]
        %v511 = vld [vmem:[%s504 + $0x20] sm:$0xff]
        %v512 = vld [vmem:[%s504 + $0x28] sm:$0xff]
        %v513 = vld [vmem:[%s504 + $0x30] sm:$0xff]
        %v514 = vld [vmem:[%s504 + $0x38] sm:$0xff]
        %v515 = vld [vmem:[%s504 + $0x40] sm:$0xff]
        %v516 = vld [vmem:[%s504 + $0x48] sm:$0xff]
        %v517 = vld [vmem:[%s504 + $0x50] sm:$0xff]
        %v518 = vld [vmem:[%s504 + $0x58] sm:$0xff]
        %v519 = vld [vmem:[%s504 + $0x60] sm:$0xff]
        %v520 = vld [vmem:[%s504 + $0x68] sm:$0xff]
        %v521 = vld [vmem:[%s504 + $0x70] sm:$0xff]
        %v522 = vld [vmem:[%s504 + $0x78] sm:$0xff]
        %v523 = vld [vmem:[#allocation2] sm:$0x1]
        %525 = vset.pattern.permute.xlu0 0
        %526 = vperm.xlu0 %525, %v507
        %v527 = vpop.permute.xlu0 %526
        %530 = vset.pattern.permute.xlu0 0
        %531 = vperm.xlu0 %530, %v508
        %v532 = vpop.permute.xlu0 %531
        %535 = vset.pattern.permute.xlu0 0
        %536 = vperm.xlu0 %535, %v509
        %v537 = vpop.permute.xlu0 %536
        %540 = vset.pattern.permute.xlu0 0
        %541 = vperm.xlu0 %540, %v510
        %v542 = vpop.permute.xlu0 %541
        %545 = vset.pattern.permute.xlu0 0
        %546 = vperm.xlu0 %545, %v511
        %v547 = vpop.permute.xlu0 %546
        %550 = vset.pattern.permute.xlu0 0
        %551 = vperm.xlu0 %550, %v512
        %v552 = vpop.permute.xlu0 %551
        %555 = vset.pattern.permute.xlu0 0
        %556 = vperm.xlu0 %555, %v513
        %v557 = vpop.permute.xlu0 %556
        %560 = vset.pattern.permute.xlu0 0
        %561 = vperm.xlu0 %560, %v514
        %v562 = vpop.permute.xlu0 %561
        %565 = vset.pattern.permute.xlu0 0
        %566 = vperm.xlu0 %565, %v515
        %v567 = vpop.permute.xlu0 %566
        %570 = vset.pattern.permute.xlu0 0
        %571 = vperm.xlu0 %570, %v516
        %v572 = vpop.permute.xlu0 %571
        %575 = vset.pattern.permute.xlu0 0
        %576 = vperm.xlu0 %575, %v517
        %v577 = vpop.permute.xlu0 %576
        %580 = vset.pattern.permute.xlu0 0
        %581 = vperm.xlu0 %580, %v518
        %v582 = vpop.permute.xlu0 %581
        %585 = vset.pattern.permute.xlu0 0
        %586 = vperm.xlu0 %585, %v519
        %v587 = vpop.permute.xlu0 %586
        %590 = vset.pattern.permute.xlu0 0
        %591 = vperm.xlu0 %590, %v520
        %v592 = vpop.permute.xlu0 %591
        %595 = vset.pattern.permute.xlu0 0
        %596 = vperm.xlu0 %595, %v521
        %v597 = vpop.permute.xlu0 %596
        %600 = vset.pattern.permute.xlu0 0
        %601 = vperm.xlu0 %600, %v522
        %v602 = vpop.permute.xlu0 %601
        %v604 = vlaneseq
        %v605 = vshrl.u32 %v604, 7
        %v606 = vsub.s32 0, %v605
        %v607 = vrot.slane %v523, %v606
        %v608 = vmul.f32 %v527, %v607
        %v609 = vmul.f32 %v532, %v607
        %v610 = vmul.f32 %v537, %v607
        %v611 = vmul.f32 %v542, %v607
        %v612 = vmul.f32 %v547, %v607
        %v613 = vmul.f32 %v552, %v607
        %v614 = vmul.f32 %v557, %v607
        %v615 = vmul.f32 %v562, %v607
        %v616 = vmul.f32 %v567, %v607
        %v617 = vmul.f32 %v572, %v607
        %v618 = vmul.f32 %v577, %v607
        %v619 = vmul.f32 %v582, %v607
        %v620 = vmul.f32 %v587, %v607
        %v621 = vmul.f32 %v592, %v607
        %v622 = vmul.f32 %v597, %v607
        %v623 = vmul.f32 %v602, %v607
        %v624 = vld [vmem:[#allocation2 + $0x1] sm:$0x1]
        %625 = vset.pattern.permute.xlu0 1
        %626 = vperm.xlu0 %625, %v507
        %v627 = vpop.permute.xlu0 %626
        %629 = vset.pattern.permute.xlu0 1
        %630 = vperm.xlu0 %629, %v508
        %v631 = vpop.permute.xlu0 %630
        %633 = vset.pattern.permute.xlu0 1
        %634 = vperm.xlu0 %633, %v509
        %v635 = vpop.permute.xlu0 %634
        %637 = vset.pattern.permute.xlu0 1
        %638 = vperm.xlu0 %637, %v510
        %v639 = vpop.permute.xlu0 %638
        %641 = vset.pattern.permute.xlu0 1
        %642 = vperm.xlu0 %641, %v511
        %v643 = vpop.permute.xlu0 %642
        %645 = vset.pattern.permute.xlu0 1
        %646 = vperm.xlu0 %645, %v512
        %v647 = vpop.permute.xlu0 %646
        %649 = vset.pattern.permute.xlu0 1
        %650 = vperm.xlu0 %649, %v513
        %v651 = vpop.permute.xlu0 %650
        %653 = vset.pattern.permute.xlu0 1
        %654 = vperm.xlu0 %653, %v514
        %v655 = vpop.permute.xlu0 %654
        %657 = vset.pattern.permute.xlu0 1
        %658 = vperm.xlu0 %657, %v515
        %v659 = vpop.permute.xlu0 %658
        %661 = vset.pattern.permute.xlu0 1
        %662 = vperm.xlu0 %661, %v516
        %v663 = vpop.permute.xlu0 %662
        %665 = vset.pattern.permute.xlu0 1
        %666 = vperm.xlu0 %665, %v517
        %v667 = vpop.permute.xlu0 %666
        %669 = vset.pattern.permute.xlu0 1
        %670 = vperm.xlu0 %669, %v518
        %v671 = vpop.permute.xlu0 %670
        %673 = vset.pattern.permute.xlu0 1
        %674 = vperm.xlu0 %673, %v519
        %v675 = vpop.permute.xlu0 %674
        %677 = vset.pattern.permute.xlu0 1
        %678 = vperm.xlu0 %677, %v520
        %v679 = vpop.permute.xlu0 %678
        %681 = vset.pattern.permute.xlu0 1
        %682 = vperm.xlu0 %681, %v521
        %v683 = vpop.permute.xlu0 %682
        %685 = vset.pattern.permute.xlu0 1
        %686 = vperm.xlu0 %685, %v522
        %v687 = vpop.permute.xlu0 %686
        %v689 = vlaneseq
        %v690 = vshrl.u32 %v689, 7
        %v691 = vsub.s32 0, %v690
        %v692 = vrot.slane %v624, %v691
        %v693 = vmul.f32 %v627, %v692
        %v694 = vmul.f32 %v631, %v692
        %v695 = vmul.f32 %v635, %v692
        %v696 = vmul.f32 %v639, %v692
        %v697 = vmul.f32 %v643, %v692
        %v698 = vmul.f32 %v647, %v692
        %v699 = vmul.f32 %v651, %v692
        %v700 = vmul.f32 %v655, %v692
        %v701 = vmul.f32 %v659, %v692
        %v702 = vmul.f32 %v663, %v692
        %v703 = vmul.f32 %v667, %v692
        %v704 = vmul.f32 %v671, %v692
        %v705 = vmul.f32 %v675, %v692
        %v706 = vmul.f32 %v679, %v692
        %v707 = vmul.f32 %v683, %v692
        %v708 = vmul.f32 %v687, %v692
        %v709 = vadd.f32 %v608, %v693
        %v710 = vadd.f32 %v609, %v694
        %v711 = vadd.f32 %v610, %v695
        %v712 = vadd.f32 %v611, %v696
        %v713 = vadd.f32 %v612, %v697
        %v714 = vadd.f32 %v613, %v698
        %v715 = vadd.f32 %v614, %v699
        %v716 = vadd.f32 %v615, %v700
        %v717 = vadd.f32 %v616, %v701
        %v718 = vadd.f32 %v617, %v702
        %v719 = vadd.f32 %v618, %v703
        %v720 = vadd.f32 %v619, %v704
        %v721 = vadd.f32 %v620, %v705
        %v722 = vadd.f32 %v621, %v706
        %v723 = vadd.f32 %v622, %v707
        %v724 = vadd.f32 %v623, %v708
        %v725 = vld [vmem:[#allocation2 + $0x2] sm:$0x1]
        %726 = vset.pattern.permute.xlu0 2
        %727 = vperm.xlu0 %726, %v507
        %v728 = vpop.permute.xlu0 %727
        %730 = vset.pattern.permute.xlu0 2
        %731 = vperm.xlu0 %730, %v508
        %v732 = vpop.permute.xlu0 %731
        %734 = vset.pattern.permute.xlu0 2
        %735 = vperm.xlu0 %734, %v509
        %v736 = vpop.permute.xlu0 %735
        %738 = vset.pattern.permute.xlu0 2
        %739 = vperm.xlu0 %738, %v510
        %v740 = vpop.permute.xlu0 %739
        %742 = vset.pattern.permute.xlu0 2
        %743 = vperm.xlu0 %742, %v511
        %v744 = vpop.permute.xlu0 %743
        %746 = vset.pattern.permute.xlu0 2
        %747 = vperm.xlu0 %746, %v512
        %v748 = vpop.permute.xlu0 %747
        %750 = vset.pattern.permute.xlu0 2
        %751 = vperm.xlu0 %750, %v513
        %v752 = vpop.permute.xlu0 %751
        %754 = vset.pattern.permute.xlu0 2
        %755 = vperm.xlu0 %754, %v514
        %v756 = vpop.permute.xlu0 %755
        %758 = vset.pattern.permute.xlu0 2
        %759 = vperm.xlu0 %758, %v515
        %v760 = vpop.permute.xlu0 %759
        %762 = vset.pattern.permute.xlu0 2
        %763 = vperm.xlu0 %762, %v516
        %v764 = vpop.permute.xlu0 %763
        %766 = vset.pattern.permute.xlu0 2
        %767 = vperm.xlu0 %766, %v517
        %v768 = vpop.permute.xlu0 %767
        %770 = vset.pattern.permute.xlu0 2
        %771 = vperm.xlu0 %770, %v518
        %v772 = vpop.permute.xlu0 %771
        %774 = vset.pattern.permute.xlu0 2
        %775 = vperm.xlu0 %774, %v519
        %v776 = vpop.permute.xlu0 %775
        %778 = vset.pattern.permute.xlu0 2
        %779 = vperm.xlu0 %778, %v520
        %v780 = vpop.permute.xlu0 %779
        %782 = vset.pattern.permute.xlu0 2
        %783 = vperm.xlu0 %782, %v521
        %v784 = vpop.permute.xlu0 %783
        %786 = vset.pattern.permute.xlu0 2
        %787 = vperm.xlu0 %786, %v522
        %v788 = vpop.permute.xlu0 %787
        %v790 = vlaneseq
        %v791 = vshrl.u32 %v790, 7
        %v792 = vsub.s32 0, %v791
        %v793 = vrot.slane %v725, %v792
        %v794 = vmul.f32 %v728, %v793
        %v795 = vmul.f32 %v732, %v793
        %v796 = vmul.f32 %v736, %v793
        %v797 = vmul.f32 %v740, %v793
        %v798 = vmul.f32 %v744, %v793
        %v799 = vmul.f32 %v748, %v793
        %v800 = vmul.f32 %v752, %v793
        %v801 = vmul.f32 %v756, %v793
        %v802 = vmul.f32 %v760, %v793
        %v803 = vmul.f32 %v764, %v793
        %v804 = vmul.f32 %v768, %v793
        %v805 = vmul.f32 %v772, %v793
        %v806 = vmul.f32 %v776, %v793
        %v807 = vmul.f32 %v780, %v793
        %v808 = vmul.f32 %v784, %v793
        %v809 = vmul.f32 %v788, %v793
        %v810 = vadd.f32 %v709, %v794
        %v811 = vadd.f32 %v710, %v795
        %v812 = vadd.f32 %v711, %v796
        %v813 = vadd.f32 %v712, %v797
        %v814 = vadd.f32 %v713, %v798
        %v815 = vadd.f32 %v714, %v799
        %v816 = vadd.f32 %v715, %v800
        %v817 = vadd.f32 %v716, %v801
        %v818 = vadd.f32 %v717, %v802
        %v819 = vadd.f32 %v718, %v803
        %v820 = vadd.f32 %v719, %v804
        %v821 = vadd.f32 %v720, %v805
        %v822 = vadd.f32 %v721, %v806
        %v823 = vadd.f32 %v722, %v807
        %v824 = vadd.f32 %v723, %v808
        %v825 = vadd.f32 %v724, %v809
        %v826 = vld [vmem:[#allocation5] sm:$0x1]
        %v828 = vlaneseq
        %v829 = vshrl.u32 %v828, 7
        %v830 = vsub.s32 0, %v829
        %v831 = vrot.slane %v826, %v830
        %v833 = vadd.f32 %v810, %v831
        %v834 = vadd.f32 %v811, %v831
        %v835 = vadd.f32 %v812, %v831
        %v836 = vadd.f32 %v813, %v831
        %v837 = vadd.f32 %v814, %v831
        %v838 = vadd.f32 %v815, %v831
        %v839 = vadd.f32 %v816, %v831
        %v840 = vadd.f32 %v817, %v831
        %v841 = vadd.f32 %v818, %v831
        %v842 = vadd.f32 %v819, %v831
        %v843 = vadd.f32 %v820, %v831
        %v844 = vadd.f32 %v821, %v831
        %v845 = vadd.f32 %v822, %v831
        %v846 = vadd.f32 %v823, %v831
        %v847 = vadd.f32 %v824, %v831
        %v848 = vadd.f32 %v825, %v831
        %v849 = vmax.f32 %v833, 0.0
        %v850 = vmax.f32 %v834, 0.0
        %v851 = vmax.f32 %v835, 0.0
        %v852 = vmax.f32 %v836, 0.0
        %v853 = vmax.f32 %v837, 0.0
        %v854 = vmax.f32 %v838, 0.0
        %v855 = vmax.f32 %v839, 0.0
        %v856 = vmax.f32 %v840, 0.0
        %v857 = vmax.f32 %v841, 0.0
        %v858 = vmax.f32 %v842, 0.0
        %v859 = vmax.f32 %v843, 0.0
        %v860 = vmax.f32 %v844, 0.0
        %v861 = vmax.f32 %v845, 0.0
        %v862 = vmax.f32 %v846, 0.0
        %v863 = vmax.f32 %v847, 0.0
        %v864 = vmax.f32 %v848, 0.0
        %v865 = vpack.c.bf16 %v850, %v849
        %v866 = vpack.c.bf16 %v852, %v851
        %v867 = vpack.c.bf16 %v854, %v853
        %v868 = vpack.c.bf16 %v856, %v855
        %v869 = vpack.c.bf16 %v858, %v857
        %v870 = vpack.c.bf16 %v860, %v859
        %v871 = vpack.c.bf16 %v862, %v861
        %v872 = vpack.c.bf16 %v864, %v863
        %v873 = vld [vmem:[%s3] sm:$0xf]
        %v874 = vld [vmem:[%s3 + $0x4] sm:$0xf]
        %v875 = vld [vmem:[%s3 + $0x8] sm:$0xf]
        %v876 = vld [vmem:[%s3 + $0xc] sm:$0xf]
        %v877 = vld [vmem:[%s3 + $0x10] sm:$0xf]
        %v878 = vld [vmem:[%s3 + $0x14] sm:$0xf]
        %v879 = vld [vmem:[%s3 + $0x18] sm:$0xf]
        %v880 = vld [vmem:[%s3 + $0x1c] sm:$0xf]
        %v881 = vld [vmem:[#allocation7] sm:$0x1]
        %v882 = vlaneseq
        %v883 = vshrl.u32 %v882, 7
        %v884 = vsub.s32 0, %v883
        %v885 = vrot.slane %v881, %v884
        %v894 = vunpack.c.l.b16 %v873
        %v895 = vunpack.c.l.b16 %v874
        %v896 = vunpack.c.l.b16 %v875
        %v897 = vunpack.c.l.b16 %v876
        %v898 = vunpack.c.l.b16 %v877
        %v899 = vunpack.c.l.b16 %v878
        %v900 = vunpack.c.l.b16 %v879
        %v901 = vunpack.c.l.b16 %v880
        %v902 = vpack.c.b16 %v895, %v894
        %v903 = vpack.c.b16 %v897, %v896
        %v904 = vpack.c.b16 %v899, %v898
        %v905 = vpack.c.b16 %v901, %v900
        %vm910 = vcmask 523264
        %v912 = vsel %vm910, %v865, 0
        %v915 = vsel %vm910, %v866, 0
        %v918 = vsel %vm910, %v867, 0
        %v921 = vsel %vm910, %v868, 0
        %v924 = vsel %vm910, %v869, 0
        %v927 = vsel %vm910, %v870, 0
        %v930 = vsel %vm910, %v871, 0
        %v933 = vsel %vm910, %v872, 0
        %935 = vmatprep.subr.bf16.mxu0 0
        %936 = vmatpush1.bf16.msra.mxu0 0
        %937 = vmatprep.subr.bf16.mxu0 0
        %938 = vmatpush1.bf16.msra.mxu0 0
        %939 = vmatprep.subr.bf16.mxu0 0
        %940 = vmatpush1.bf16.msra.mxu0 0
        %941 = vmatprep.subr.bf16.mxu0 0
        %942 = vmatpush1.bf16.msra.mxu0 0
        %943 = vmatprep.subr.bf16.mxu0 0
        %944 = vmatpush1.bf16.msra.mxu0 %v905
        %945 = vmatprep.subr.bf16.mxu0 0
        %946 = vmatpush1.bf16.msra.mxu0 %v904
        %947 = vmatprep.subr.bf16.mxu0 0
        %948 = vmatpush1.bf16.msra.mxu0 %v903
        %949 = vmatprep.subr.bf16.mxu0 0
        %950 = vmatpush1.bf16.msra.mxu0 %v902
        %951 = vmatprep.subr.bf16.mxu0 0
        %952 = vmatpush2.bf16.msra.mxu0 0
        %953 = vmatprep.subr.bf16.mxu0 0
        %954 = vmatpush2.bf16.msra.mxu0 0
        %955 = vmatprep.subr.bf16.mxu0 0
        %956 = vmatpush2.bf16.msra.mxu0 0
        %957 = vmatprep.subr.bf16.mxu0 0
        %958 = vmatpush2.bf16.msra.mxu0 0
        %959 = vmatprep.subr.bf16.mxu0 0
        %960 = vmatpush2.bf16.msra.mxu0 0
        %961 = vmatprep.subr.bf16.mxu0 0
        %962 = vmatpush2.bf16.msra.mxu0 0
        %963 = vmatprep.subr.bf16.mxu0 0
        %964 = vmatpush2.bf16.msra.mxu0 0
        %965 = vmatprep.subr.bf16.mxu0 0
        %966 = vmatpush2.bf16.msra.mxu0 0
        %967 = vmatprep.mubr.bf16.mxu0 0
        %968 = vmatmul.mubr.bf16.gmra.mxu0 %v912
        %v969 = vpop.f32.mrf.mxu0
        %v970 = vadd.f32 %v885, %v969
        %v971 = vpop.f32.mrf.mxu0
        %v972 = vpop.f32.mrf.mxu0
        %v973 = vadd.f32 %v885, %v972
        %v974 = vpop.f32.mrf.mxu0
        %975 = vmatprep.mubr.bf16.mxu0 0
        %976 = vmatmul.mubr.bf16.gmra.mxu0 %v915
        %v977 = vpop.f32.mrf.mxu0
        %v978 = vadd.f32 %v885, %v977
        %v979 = vpop.f32.mrf.mxu0
        %v980 = vpop.f32.mrf.mxu0
        %v981 = vadd.f32 %v885, %v980
        %v982 = vpop.f32.mrf.mxu0
        %983 = vmatprep.mubr.bf16.mxu0 0
        %984 = vmatmul.mubr.bf16.gmra.mxu0 %v918
        %v985 = vpop.f32.mrf.mxu0
        %v986 = vadd.f32 %v885, %v985
        %v987 = vpop.f32.mrf.mxu0
        %v988 = vpop.f32.mrf.mxu0
        %v989 = vadd.f32 %v885, %v988
        %v990 = vpop.f32.mrf.mxu0
        %991 = vmatprep.mubr.bf16.mxu0 0
        %992 = vmatmul.mubr.bf16.gmra.mxu0 %v921
        %v993 = vpop.f32.mrf.mxu0
        %v994 = vadd.f32 %v885, %v993
        %v995 = vpop.f32.mrf.mxu0
        %v996 = vpop.f32.mrf.mxu0
        %v997 = vadd.f32 %v885, %v996
        %v998 = vpop.f32.mrf.mxu0
        %999 = vmatprep.mubr.bf16.mxu0 0
        %1000 = vmatmul.mubr.bf16.gmra.mxu0 %v924
        %v1001 = vpop.f32.mrf.mxu0
        %v1002 = vadd.f32 %v885, %v1001
        %v1003 = vpop.f32.mrf.mxu0
        %v1004 = vpop.f32.mrf.mxu0
        %v1005 = vadd.f32 %v885, %v1004
        %v1006 = vpop.f32.mrf.mxu0
        %1007 = vmatprep.mubr.bf16.mxu0 0
        %1008 = vmatmul.mubr.bf16.gmra.mxu0 %v927
        %v1009 = vpop.f32.mrf.mxu0
        %v1010 = vadd.f32 %v885, %v1009
        %v1011 = vpop.f32.mrf.mxu0
        %v1012 = vpop.f32.mrf.mxu0
        %v1013 = vadd.f32 %v885, %v1012
        %v1014 = vpop.f32.mrf.mxu0
        %1015 = vmatprep.mubr.bf16.mxu0 0
        %1016 = vmatmul.mubr.bf16.gmra.mxu0 %v930
        %v1017 = vpop.f32.mrf.mxu0
        %v1018 = vadd.f32 %v885, %v1017
        %v1019 = vpop.f32.mrf.mxu0
        %v1020 = vpop.f32.mrf.mxu0
        %v1021 = vadd.f32 %v885, %v1020
        %v1022 = vpop.f32.mrf.mxu0
        %1023 = vmatprep.mubr.bf16.mxu0 0
        %1024 = vmatmul.mubr.bf16.gmra.mxu0 %v933
        %v1025 = vpop.f32.mrf.mxu0
        %v1026 = vadd.f32 %v885, %v1025
        %v1027 = vpop.f32.mrf.mxu0
        %v1028 = vpop.f32.mrf.mxu0
        %v1029 = vadd.f32 %v885, %v1028
        %v1030 = vpop.f32.mrf.mxu0
        %1031 = vdwg.mxu0
        %v1032 = vmax.f32 %v970, 0.0
        %v1033 = vmax.f32 %v973, 0.0
        %v1034 = vmax.f32 %v978, 0.0
        %v1035 = vmax.f32 %v981, 0.0
        %v1036 = vmax.f32 %v986, 0.0
        %v1037 = vmax.f32 %v989, 0.0
        %v1038 = vmax.f32 %v994, 0.0
        %v1039 = vmax.f32 %v997, 0.0
        %v1040 = vmax.f32 %v1002, 0.0
        %v1041 = vmax.f32 %v1005, 0.0
        %v1042 = vmax.f32 %v1010, 0.0
        %v1043 = vmax.f32 %v1013, 0.0
        %v1044 = vmax.f32 %v1018, 0.0
        %v1045 = vmax.f32 %v1021, 0.0
        %v1046 = vmax.f32 %v1026, 0.0
        %v1047 = vmax.f32 %v1029, 0.0
        %v1048 = vpack.c.bf16 %v1033, %v1032
        %v1049 = vpack.c.bf16 %v1035, %v1034
        %v1050 = vpack.c.bf16 %v1037, %v1036
        %v1051 = vpack.c.bf16 %v1039, %v1038
        %v1052 = vpack.c.bf16 %v1041, %v1040
        %v1053 = vpack.c.bf16 %v1043, %v1042
        %v1054 = vpack.c.bf16 %v1045, %v1044
        %v1055 = vpack.c.bf16 %v1047, %v1046
        %v1056 = vld [vmem:[%s8] sm:$0xf]
        %v1057 = vld [vmem:[%s8 + $0x4] sm:$0xf]
        %v1058 = vld [vmem:[%s8 + $0x8] sm:$0xf]
        %v1059 = vld [vmem:[%s8 + $0xc] sm:$0xf]
        %v1060 = vld [vmem:[%s9] sm:$0x1]
        %v1061 = vlaneseq
        %v1062 = vshrl.u32 %v1061, 7
        %v1063 = vsub.s32 0, %v1062
        %v1064 = vrot.slane %v1060, %v1063
        %v1069 = vunpack.c.l.b16 %v1056
        %v1070 = vunpack.c.l.b16 %v1057
        %v1071 = vunpack.c.l.b16 %v1058
        %v1072 = vunpack.c.l.b16 %v1059
        %v1073 = vpack.c.b16 %v1070, %v1069
        %v1074 = vpack.c.b16 %v1072, %v1071
        %vm1077 = vcmask 261120
        %v1079 = vsel %vm1077, %v1048, 0
        %v1082 = vsel %vm1077, %v1049, 0
        %v1085 = vsel %vm1077, %v1050, 0
        %v1088 = vsel %vm1077, %v1051, 0
        %v1091 = vsel %vm1077, %v1052, 0
        %v1094 = vsel %vm1077, %v1053, 0
        %v1097 = vsel %vm1077, %v1054, 0
        %v1100 = vsel %vm1077, %v1055, 0
        %1102 = vmatprep.subr.bf16.mxu0 0
        %1103 = vmatpush1.bf16.msra.mxu0 0
        %1104 = vmatprep.subr.bf16.mxu0 0
        %1105 = vmatpush1.bf16.msra.mxu0 0
        %1106 = vmatprep.subr.bf16.mxu0 0
        %1107 = vmatpush1.bf16.msra.mxu0 0
        %1108 = vmatprep.subr.bf16.mxu0 0
        %1109 = vmatpush1.bf16.msra.mxu0 0
        %1110 = vmatprep.subr.bf16.mxu0 0
        %1111 = vmatpush1.bf16.msra.mxu0 0
        %1112 = vmatprep.subr.bf16.mxu0 0
        %1113 = vmatpush1.bf16.msra.mxu0 0
        %1114 = vmatprep.subr.bf16.mxu0 0
        %1115 = vmatpush1.bf16.msra.mxu0 %v1074
        %1116 = vmatprep.subr.bf16.mxu0 0
        %1117 = vmatpush1.bf16.msra.mxu0 %v1073
        %1118 = vmatprep.subr.bf16.mxu0 0
        %1119 = vmatpush2.bf16.msra.mxu0 0
        %1120 = vmatprep.subr.bf16.mxu0 0
        %1121 = vmatpush2.bf16.msra.mxu0 0
        %1122 = vmatprep.subr.bf16.mxu0 0
        %1123 = vmatpush2.bf16.msra.mxu0 0
        %1124 = vmatprep.subr.bf16.mxu0 0
        %1125 = vmatpush2.bf16.msra.mxu0 0
        %1126 = vmatprep.subr.bf16.mxu0 0
        %1127 = vmatpush2.bf16.msra.mxu0 0
        %1128 = vmatprep.subr.bf16.mxu0 0
        %1129 = vmatpush2.bf16.msra.mxu0 0
        %1130 = vmatprep.subr.bf16.mxu0 0
        %1131 = vmatpush2.bf16.msra.mxu0 0
        %1132 = vmatprep.subr.bf16.mxu0 0
        %1133 = vmatpush2.bf16.msra.mxu0 0
        %1134 = vmatprep.mubr.bf16.mxu0 0
        %1135 = vmatmul.mubr.bf16.gmra.mxu0 %v1079
        %v1136 = vpop.f32.mrf.mxu0
        %v1137 = vadd.f32 %v1064, %v1136
        %v1138 = vpop.f32.mrf.mxu0
        %v1139 = vpop.f32.mrf.mxu0
        %v1140 = vadd.f32 %v1064, %v1139
        %v1141 = vpop.f32.mrf.mxu0
        %1142 = vmatprep.mubr.bf16.mxu0 0
        %1143 = vmatmul.mubr.bf16.gmra.mxu0 %v1082
        %v1144 = vpop.f32.mrf.mxu0
        %v1145 = vadd.f32 %v1064, %v1144
        %v1146 = vpop.f32.mrf.mxu0
        %v1147 = vpop.f32.mrf.mxu0
        %v1148 = vadd.f32 %v1064, %v1147
        %v1149 = vpop.f32.mrf.mxu0
        %1150 = vmatprep.mubr.bf16.mxu0 0
        %1151 = vmatmul.mubr.bf16.gmra.mxu0 %v1085
        %v1152 = vpop.f32.mrf.mxu0
        %v1153 = vadd.f32 %v1064, %v1152
        %v1154 = vpop.f32.mrf.mxu0
        %v1155 = vpop.f32.mrf.mxu0
        %v1156 = vadd.f32 %v1064, %v1155
        %v1157 = vpop.f32.mrf.mxu0
        %1158 = vmatprep.mubr.bf16.mxu0 0
        %1159 = vmatmul.mubr.bf16.gmra.mxu0 %v1088
        %v1160 = vpop.f32.mrf.mxu0
        %v1161 = vadd.f32 %v1064, %v1160
        %v1162 = vpop.f32.mrf.mxu0
        %v1163 = vpop.f32.mrf.mxu0
        %v1164 = vadd.f32 %v1064, %v1163
        %v1165 = vpop.f32.mrf.mxu0
        %1166 = vmatprep.mubr.bf16.mxu0 0
        %1167 = vmatmul.mubr.bf16.gmra.mxu0 %v1091
        %v1168 = vpop.f32.mrf.mxu0
        %v1169 = vadd.f32 %v1064, %v1168
        %v1170 = vpop.f32.mrf.mxu0
        %v1171 = vpop.f32.mrf.mxu0
        %v1172 = vadd.f32 %v1064, %v1171
        %v1173 = vpop.f32.mrf.mxu0
        %1174 = vmatprep.mubr.bf16.mxu0 0
        %1175 = vmatmul.mubr.bf16.gmra.mxu0 %v1094
        %v1176 = vpop.f32.mrf.mxu0
        %v1177 = vadd.f32 %v1064, %v1176
        %v1178 = vpop.f32.mrf.mxu0
        %v1179 = vpop.f32.mrf.mxu0
        %v1180 = vadd.f32 %v1064, %v1179
        %v1181 = vpop.f32.mrf.mxu0
        %1182 = vmatprep.mubr.bf16.mxu0 0
        %1183 = vmatmul.mubr.bf16.gmra.mxu0 %v1097
        %v1184 = vpop.f32.mrf.mxu0
        %v1185 = vadd.f32 %v1064, %v1184
        %v1186 = vpop.f32.mrf.mxu0
        %v1187 = vpop.f32.mrf.mxu0
        %v1188 = vadd.f32 %v1064, %v1187
        %v1189 = vpop.f32.mrf.mxu0
        %1190 = vmatprep.mubr.bf16.mxu0 0
        %1191 = vmatmul.mubr.bf16.gmra.mxu0 %v1100
        %v1192 = vpop.f32.mrf.mxu0
        %v1193 = vadd.f32 %v1064, %v1192
        %v1194 = vpop.f32.mrf.mxu0
        %v1195 = vpop.f32.mrf.mxu0
        %v1196 = vadd.f32 %v1064, %v1195
        %v1197 = vpop.f32.mrf.mxu0
        %1198 = vdwg.mxu0
        %v1199 = vpack.c.bf16 %v834, %v833
        %v1200 = vpack.c.bf16 %v836, %v835
        %v1201 = vpack.c.bf16 %v838, %v837
        %v1202 = vpack.c.bf16 %v840, %v839
        %v1203 = vpack.c.bf16 %v842, %v841
        %v1204 = vpack.c.bf16 %v844, %v843
        %v1205 = vpack.c.bf16 %v846, %v845
        %v1206 = vpack.c.bf16 %v848, %v847
        %v1207 = vld [vmem:[%s4] sm:$0xf]
        %v1208 = vld [vmem:[%s4 + $0x4] sm:$0xf]
        %v1209 = vld [vmem:[%s4 + $0x8] sm:$0xf]
        %v1210 = vld [vmem:[%s4 + $0xc] sm:$0xf]
        %v1211 = vld [vmem:[%s4 + $0x10] sm:$0xf]
        %v1212 = vld [vmem:[%s4 + $0x14] sm:$0xf]
        %v1213 = vld [vmem:[%s4 + $0x18] sm:$0xf]
        %v1214 = vld [vmem:[%s4 + $0x1c] sm:$0xf]
        %v1223 = vunpack.c.l.b16 %v1207
        %v1224 = vunpack.c.l.b16 %v1208
        %v1225 = vunpack.c.l.b16 %v1209
        %v1226 = vunpack.c.l.b16 %v1210
        %v1227 = vunpack.c.l.b16 %v1211
        %v1228 = vunpack.c.l.b16 %v1212
        %v1229 = vunpack.c.l.b16 %v1213
        %v1230 = vunpack.c.l.b16 %v1214
        %v1231 = vpack.c.b16 %v1224, %v1223
        %v1232 = vpack.c.b16 %v1226, %v1225
        %v1233 = vpack.c.b16 %v1228, %v1227
        %v1234 = vpack.c.b16 %v1230, %v1229
        %v1240 = vsel %vm910, %v1199, 0
        %v1243 = vsel %vm910, %v1200, 0
        %v1246 = vsel %vm910, %v1201, 0
        %v1249 = vsel %vm910, %v1202, 0
        %v1252 = vsel %vm910, %v1203, 0
        %v1255 = vsel %vm910, %v1204, 0
        %v1258 = vsel %vm910, %v1205, 0
        %v1261 = vsel %vm910, %v1206, 0
        %1263 = vmatprep.subr.bf16.mxu0 0
        %1264 = vmatpush1.bf16.msra.mxu0 0
        %1265 = vmatprep.subr.bf16.mxu0 0
        %1266 = vmatpush1.bf16.msra.mxu0 0
        %1267 = vmatprep.subr.bf16.mxu0 0
        %1268 = vmatpush1.bf16.msra.mxu0 0
        %1269 = vmatprep.subr.bf16.mxu0 0
        %1270 = vmatpush1.bf16.msra.mxu0 0
        %1271 = vmatprep.subr.bf16.mxu0 0
        %1272 = vmatpush1.bf16.msra.mxu0 %v1234
        %1273 = vmatprep.subr.bf16.mxu0 0
        %1274 = vmatpush1.bf16.msra.mxu0 %v1233
        %1275 = vmatprep.subr.bf16.mxu0 0
        %1276 = vmatpush1.bf16.msra.mxu0 %v1232
        %1277 = vmatprep.subr.bf16.mxu0 0
        %1278 = vmatpush1.bf16.msra.mxu0 %v1231
        %1279 = vmatprep.subr.bf16.mxu0 0
        %1280 = vmatpush2.bf16.msra.mxu0 0
        %1281 = vmatprep.subr.bf16.mxu0 0
        %1282 = vmatpush2.bf16.msra.mxu0 0
        %1283 = vmatprep.subr.bf16.mxu0 0
        %1284 = vmatpush2.bf16.msra.mxu0 0
        %1285 = vmatprep.subr.bf16.mxu0 0
        %1286 = vmatpush2.bf16.msra.mxu0 0
        %1287 = vmatprep.subr.bf16.mxu0 0
        %1288 = vmatpush2.bf16.msra.mxu0 0
        %1289 = vmatprep.subr.bf16.mxu0 0
        %1290 = vmatpush2.bf16.msra.mxu0 0
        %1291 = vmatprep.subr.bf16.mxu0 0
        %1292 = vmatpush2.bf16.msra.mxu0 0
        %1293 = vmatprep.subr.bf16.mxu0 0
        %1294 = vmatpush2.bf16.msra.mxu0 0
        %1295 = vmatprep.mubr.bf16.mxu0 0
        %1296 = vmatmul.mubr.bf16.gmra.mxu0 %v1240
        %v1297 = vpop.f32.mrf.mxu0
        %v1298 = vadd.f32 %v1137, %v1297
        %v1299 = vpop.f32.mrf.mxu0
        %v1300 = vpop.f32.mrf.mxu0
        %v1301 = vadd.f32 %v1140, %v1300
        %v1302 = vpop.f32.mrf.mxu0
        %1303 = vmatprep.mubr.bf16.mxu0 0
        %1304 = vmatmul.mubr.bf16.gmra.mxu0 %v1243
        %v1305 = vpop.f32.mrf.mxu0
        %v1306 = vadd.f32 %v1145, %v1305
        %v1307 = vpop.f32.mrf.mxu0
        %v1308 = vpop.f32.mrf.mxu0
        %v1309 = vadd.f32 %v1148, %v1308
        %v1310 = vpop.f32.mrf.mxu0
        %1311 = vmatprep.mubr.bf16.mxu0 0
        %1312 = vmatmul.mubr.bf16.gmra.mxu0 %v1246
        %v1313 = vpop.f32.mrf.mxu0
        %v1314 = vadd.f32 %v1153, %v1313
        %v1315 = vpop.f32.mrf.mxu0
        %v1316 = vpop.f32.mrf.mxu0
        %v1317 = vadd.f32 %v1156, %v1316
        %v1318 = vpop.f32.mrf.mxu0
        %1319 = vmatprep.mubr.bf16.mxu0 0
        %1320 = vmatmul.mubr.bf16.gmra.mxu0 %v1249
        %v1321 = vpop.f32.mrf.mxu0
        %v1322 = vadd.f32 %v1161, %v1321
        %v1323 = vpop.f32.mrf.mxu0
        %v1324 = vpop.f32.mrf.mxu0
        %v1325 = vadd.f32 %v1164, %v1324
        %v1326 = vpop.f32.mrf.mxu0
        %1327 = vmatprep.mubr.bf16.mxu0 0
        %1328 = vmatmul.mubr.bf16.gmra.mxu0 %v1252
        %v1329 = vpop.f32.mrf.mxu0
        %v1330 = vadd.f32 %v1169, %v1329
        %v1331 = vpop.f32.mrf.mxu0
        %v1332 = vpop.f32.mrf.mxu0
        %v1333 = vadd.f32 %v1172, %v1332
        %v1334 = vpop.f32.mrf.mxu0
        %1335 = vmatprep.mubr.bf16.mxu0 0
        %1336 = vmatmul.mubr.bf16.gmra.mxu0 %v1255
        %v1337 = vpop.f32.mrf.mxu0
        %v1338 = vadd.f32 %v1177, %v1337
        %v1339 = vpop.f32.mrf.mxu0
        %v1340 = vpop.f32.mrf.mxu0
        %v1341 = vadd.f32 %v1180, %v1340
        %v1342 = vpop.f32.mrf.mxu0
        %1343 = vmatprep.mubr.bf16.mxu0 0
        %1344 = vmatmul.mubr.bf16.gmra.mxu0 %v1258
        %v1345 = vpop.f32.mrf.mxu0
        %v1346 = vadd.f32 %v1185, %v1345
        %v1347 = vpop.f32.mrf.mxu0
        %v1348 = vpop.f32.mrf.mxu0
        %v1349 = vadd.f32 %v1188, %v1348
        %v1350 = vpop.f32.mrf.mxu0
        %1351 = vmatprep.mubr.bf16.mxu0 0
        %1352 = vmatmul.mubr.bf16.gmra.mxu0 %v1261
        %v1353 = vpop.f32.mrf.mxu0
        %v1354 = vadd.f32 %v1193, %v1353
        %v1355 = vpop.f32.mrf.mxu0
        %v1356 = vpop.f32.mrf.mxu0
        %v1357 = vadd.f32 %v1196, %v1356
        %v1358 = vpop.f32.mrf.mxu0
        %1359 = vdwg.mxu0
        %v1360 = vsel %vm1077, %v1298, -inf
        %v1361 = vsel %vm1077, %v1301, -inf
        %v1362 = vmax.f32 %v1360, %v1361
        %v1363 = vsel %vm1077, %v1306, -inf
        %v1364 = vmax.f32 %v1362, %v1363
        %v1365 = vsel %vm1077, %v1309, -inf
        %v1366 = vmax.f32 %v1364, %v1365
        %v1367 = vrot.slane %v1366, 4
        %v1368 = vmax.f32 %v1366, %v1367
        %v1369 = vrot.slane %v1368, 2
        %v1370 = vmax.f32 %v1368, %v1369
        %v1371 = vrot.slane %v1370, 1
        %v1372 = vmax.f32 %v1370, %v1371
        %v1373 = vsel %vm1077, %v1314, -inf
        %v1374 = vsel %vm1077, %v1317, -inf
        %v1375 = vmax.f32 %v1373, %v1374
        %v1376 = vsel %vm1077, %v1322, -inf
        %v1377 = vmax.f32 %v1375, %v1376
        %v1378 = vsel %vm1077, %v1325, -inf
        %v1379 = vmax.f32 %v1377, %v1378
        %v1380 = vrot.slane %v1379, 4
        %v1381 = vmax.f32 %v1379, %v1380
        %v1382 = vrot.slane %v1381, 2
        %v1383 = vmax.f32 %v1381, %v1382
        %v1384 = vrot.slane %v1383, 1
        %v1385 = vmax.f32 %v1383, %v1384
        %v1386 = vsel %vm1077, %v1330, -inf
        %v1387 = vsel %vm1077, %v1333, -inf
        %v1388 = vmax.f32 %v1386, %v1387
        %v1389 = vsel %vm1077, %v1338, -inf
        %v1390 = vmax.f32 %v1388, %v1389
        %v1391 = vsel %vm1077, %v1341, -inf
        %v1392 = vmax.f32 %v1390, %v1391
        %v1393 = vrot.slane %v1392, 4
        %v1394 = vmax.f32 %v1392, %v1393
        %v1395 = vrot.slane %v1394, 2
        %v1396 = vmax.f32 %v1394, %v1395
        %v1397 = vrot.slane %v1396, 1
        %v1398 = vmax.f32 %v1396, %v1397
        %v1399 = vsel %vm1077, %v1346, -inf
        %v1400 = vsel %vm1077, %v1349, -inf
        %v1401 = vmax.f32 %v1399, %v1400
        %v1402 = vsel %vm1077, %v1354, -inf
        %v1403 = vmax.f32 %v1401, %v1402
        %v1404 = vsel %vm1077, %v1357, -inf
        %v1405 = vmax.f32 %v1403, %v1404
        %v1406 = vrot.slane %v1405, 4
        %v1407 = vmax.f32 %v1405, %v1406
        %v1408 = vrot.slane %v1407, 2
        %v1409 = vmax.f32 %v1407, %v1408
        %v1410 = vrot.slane %v1409, 1
        %v1411 = vmax.f32 %v1409, %v1410
        %v1412 = vmax.f32 %v1372, 0.0
        %v1413 = vmax.f32 %v1385, 0.0
        %v1414 = vmax.f32 %v1398, 0.0
        %v1415 = vmax.f32 %v1411, 0.0
        %v1416 = vpack.c.bf16 %v1412, %v1412
        %v1417 = vpack.c.bf16 %v1413, %v1413
        %v1418 = vpack.c.bf16 %v1414, %v1414
        %v1419 = vpack.c.bf16 %v1415, %v1415
        %v1420 = vld [vmem:[%s6] sm:$0xf]
        %v1421 = vld [vmem:[%s6 + $0x4] sm:$0xf]
        %v1422 = vld [vmem:[%s6 + $0x8] sm:$0xf]
        %v1423 = vld [vmem:[%s6 + $0xc] sm:$0xf]
        %v1428 = vunpack.c.l.b16 %v1416
        %v1429 = vunpack.c.l.b16 %v1417
        %v1430 = vunpack.c.l.b16 %v1418
        %v1431 = vunpack.c.l.b16 %v1419
        %vm1432 = vcmask 1041409
        %v1433 = vsel %vm1432, %v1429, %v1428
        %vm1434 = vcmask 1042434
        %v1435 = vsel %vm1434, %v1430, %v1433
        %vm1436 = vcmask 1043459
        %v1437 = vsel %vm1436, %v1431, %v1435
        %v1438 = vpack.c.b16 %v1437, %v1437
        %v1443 = vunpack.c.l.b16 %v1420
        %v1444 = vunpack.c.l.b16 %v1421
        %v1445 = vunpack.c.l.b16 %v1422
        %v1446 = vunpack.c.l.b16 %v1423
        %v1447 = vpack.c.b16 %v1444, %v1443
        %v1448 = vpack.c.b16 %v1446, %v1445
        %v1452 = vsel %vm1077, %v1438, 0
        %1454 = vmatprep.subr.bf16.mxu0 0
        %1455 = vmatpush1.bf16.msra.mxu0 0
        %1456 = vmatprep.subr.bf16.mxu0 0
        %1457 = vmatpush1.bf16.msra.mxu0 0
        %1458 = vmatprep.subr.bf16.mxu0 0
        %1459 = vmatpush1.bf16.msra.mxu0 0
        %1460 = vmatprep.subr.bf16.mxu0 0
        %1461 = vmatpush1.bf16.msra.mxu0 0
        %1462 = vmatprep.subr.bf16.mxu0 0
        %1463 = vmatpush1.bf16.msra.mxu0 0
        %1464 = vmatprep.subr.bf16.mxu0 0
        %1465 = vmatpush1.bf16.msra.mxu0 0
        %1466 = vmatprep.subr.bf16.mxu0 0
        %1467 = vmatpush1.bf16.msra.mxu0 %v1448
        %1468 = vmatprep.subr.bf16.mxu0 0
        %1469 = vmatpush1.bf16.msra.mxu0 %v1447
        %1470 = vmatprep.subr.bf16.mxu0 0
        %1471 = vmatpush2.bf16.msra.mxu0 0
        %1472 = vmatprep.subr.bf16.mxu0 0
        %1473 = vmatpush2.bf16.msra.mxu0 0
        %1474 = vmatprep.subr.bf16.mxu0 0
        %1475 = vmatpush2.bf16.msra.mxu0 0
        %1476 = vmatprep.subr.bf16.mxu0 0
        %1477 = vmatpush2.bf16.msra.mxu0 0
        %1478 = vmatprep.subr.bf16.mxu0 0
        %1479 = vmatpush2.bf16.msra.mxu0 0
        %1480 = vmatprep.subr.bf16.mxu0 0
        %1481 = vmatpush2.bf16.msra.mxu0 0
        %1482 = vmatprep.subr.bf16.mxu0 0
        %1483 = vmatpush2.bf16.msra.mxu0 0
        %1484 = vmatprep.subr.bf16.mxu0 0
        %1485 = vmatpush2.bf16.msra.mxu0 0
        %1486 = vmatprep.mubr.bf16.mxu0 0
        %1487 = vmatmul.mubr.bf16.gmra.mxu0 %v1452
        %v1488 = vpop.f32.mrf.mxu0
        %v1489 = vadd.f32 0.0, %v1488
        %v1490 = vpop.f32.mrf.mxu0
        %v1491 = vpop.f32.mrf.mxu0
        %v1492 = vpop.f32.mrf.mxu0
        %1493 = vdwg.mxu0
        %v1494 = vpack.c.bf16 %v1372, %v1372
        %v1495 = vpack.c.bf16 %v1385, %v1385
        %v1496 = vpack.c.bf16 %v1398, %v1398
        %v1497 = vpack.c.bf16 %v1411, %v1411
        %v1498 = vld [vmem:[%s11] sm:$0xf]
        %v1499 = vld [vmem:[%s11 + $0x4] sm:$0xf]
        %v1500 = vld [vmem:[%s11 + $0x8] sm:$0xf]
        %v1501 = vld [vmem:[%s11 + $0xc] sm:$0xf]
        %v1506 = vunpack.c.l.b16 %v1494
        %v1507 = vunpack.c.l.b16 %v1495
        %v1508 = vunpack.c.l.b16 %v1496
        %v1509 = vunpack.c.l.b16 %v1497
        %v1510 = vsel %vm1432, %v1507, %v1506
        %v1511 = vsel %vm1434, %v1508, %v1510
        %v1512 = vsel %vm1436, %v1509, %v1511
        %v1513 = vpack.c.b16 %v1512, %v1512
        %v1518 = vunpack.c.l.b16 %v1498
        %v1519 = vunpack.c.l.b16 %v1499
        %v1520 = vunpack.c.l.b16 %v1500
        %v1521 = vunpack.c.l.b16 %v1501
        %v1522 = vpack.c.b16 %v1519, %v1518
        %v1523 = vpack.c.b16 %v1521, %v1520
        %v1527 = vsel %vm1077, %v1513, 0
        %1529 = vmatprep.subr.bf16.mxu0 0
        %1530 = vmatpush1.bf16.msra.mxu0 0
        %1531 = vmatprep.subr.bf16.mxu0 0
        %1532 = vmatpush1.bf16.msra.mxu0 0
        %1533 = vmatprep.subr.bf16.mxu0 0
        %1534 = vmatpush1.bf16.msra.mxu0 0
        %1535 = vmatprep.subr.bf16.mxu0 0
        %1536 = vmatpush1.bf16.msra.mxu0 0
        %1537 = vmatprep.subr.bf16.mxu0 0
        %1538 = vmatpush1.bf16.msra.mxu0 0
        %1539 = vmatprep.subr.bf16.mxu0 0
        %1540 = vmatpush1.bf16.msra.mxu0 0
        %1541 = vmatprep.subr.bf16.mxu0 0
        %1542 = vmatpush1.bf16.msra.mxu0 %v1523
        %1543 = vmatprep.subr.bf16.mxu0 0
        %1544 = vmatpush1.bf16.msra.mxu0 %v1522
        %1545 = vmatprep.subr.bf16.mxu0 0
        %1546 = vmatpush2.bf16.msra.mxu0 0
        %1547 = vmatprep.subr.bf16.mxu0 0
        %1548 = vmatpush2.bf16.msra.mxu0 0
        %1549 = vmatprep.subr.bf16.mxu0 0
        %1550 = vmatpush2.bf16.msra.mxu0 0
        %1551 = vmatprep.subr.bf16.mxu0 0
        %1552 = vmatpush2.bf16.msra.mxu0 0
        %1553 = vmatprep.subr.bf16.mxu0 0
        %1554 = vmatpush2.bf16.msra.mxu0 0
        %1555 = vmatprep.subr.bf16.mxu0 0
        %1556 = vmatpush2.bf16.msra.mxu0 0
        %1557 = vmatprep.subr.bf16.mxu0 0
        %1558 = vmatpush2.bf16.msra.mxu0 0
        %1559 = vmatprep.subr.bf16.mxu0 0
        %1560 = vmatpush2.bf16.msra.mxu0 0
        %1561 = vmatprep.mubr.bf16.mxu0 0
        %1562 = vmatmul.mubr.bf16.gmra.mxu0 %v1527
        %v1563 = vpop.f32.mrf.mxu0
        %v1564 = vadd.f32 0.0, %v1563
        %v1565 = vpop.f32.mrf.mxu0
        %v1566 = vpop.f32.mrf.mxu0
        %v1567 = vpop.f32.mrf.mxu0
        %1568 = vdwg.mxu0
        %v1571 = vunpack.c.l.s4 1966171168
        %v1572 = vunpack.c.0.s8 %v1571
        %v1573 = vlaneseq
        %v1574 = vshrl.u32 %v1573, 7
        %v1575 = vsub.s32 %v1572, %v1574
        %v1576 = vrot.slane %v1489, %v1575
        %v1577 = vcombine.high %v1576, %v1576
        %v1579 = vunpack.c.l.s4 1966171168
        %v1580 = vunpack.c.0.s8 %v1579
        %v1581 = vlaneseq
        %v1582 = vshrl.u32 %v1581, 7
        %v1583 = vsub.s32 %v1580, %v1582
        %v1584 = vrot.slane %v1576, %v1583
        %v1586 = vunpack.c.l.s4 1966171168
        %v1587 = vunpack.c.0.s8 %v1586
        %v1588 = vlaneseq
        %v1589 = vshrl.u32 %v1588, 7
        %v1590 = vsub.s32 %v1587, %v1589
        %v1591 = vrot.slane %v1577, %v1590
        %v1592 = vcombine.high %v1584, %v1584
        %v1593 = vcombine.high %v1591, %v1591
        %v1594 = vlaneseq
        %v1595 = vshrl.u32 %v1594, 7
        %v1596 = vsub.s32 0, %v1595
        %v1597 = vrot.slane %v1584, %v1596
        %v1598 = vlaneseq
        %v1599 = vshrl.u32 %v1598, 7
        %v1600 = vsub.s32 0, %v1599
        %v1601 = vrot.slane %v1591, %v1600
        %v1602 = vlaneseq
        %v1603 = vshrl.u32 %v1602, 7
        %v1604 = vsub.s32 0, %v1603
        %v1605 = vrot.slane %v1592, %v1604
        %v1606 = vlaneseq
        %v1607 = vshrl.u32 %v1606, 7
        %v1608 = vsub.s32 0, %v1607
        %v1609 = vrot.slane %v1593, %v1608
        %v1616 = vunpack.c.l.s4 1966171168
        %v1617 = vunpack.c.0.s8 %v1616
        %v1618 = vlaneseq
        %v1619 = vshrl.u32 %v1618, 7
        %v1620 = vsub.s32 %v1617, %v1619
        %v1621 = vrot.slane %v1564, %v1620
        %v1622 = vcombine.high %v1621, %v1621
        %v1624 = vunpack.c.l.s4 1966171168
        %v1625 = vunpack.c.0.s8 %v1624
        %v1626 = vlaneseq
        %v1627 = vshrl.u32 %v1626, 7
        %v1628 = vsub.s32 %v1625, %v1627
        %v1629 = vrot.slane %v1621, %v1628
        %v1631 = vunpack.c.l.s4 1966171168
        %v1632 = vunpack.c.0.s8 %v1631
        %v1633 = vlaneseq
        %v1634 = vshrl.u32 %v1633, 7
        %v1635 = vsub.s32 %v1632, %v1634
        %v1636 = vrot.slane %v1622, %v1635
        %v1637 = vcombine.high %v1629, %v1629
        %v1638 = vcombine.high %v1636, %v1636
        %v1639 = vlaneseq
        %v1640 = vshrl.u32 %v1639, 7
        %v1641 = vsub.s32 0, %v1640
        %v1642 = vrot.slane %v1629, %v1641
        %v1643 = vlaneseq
        %v1644 = vshrl.u32 %v1643, 7
        %v1645 = vsub.s32 0, %v1644
        %v1646 = vrot.slane %v1636, %v1645
        %v1647 = vlaneseq
        %v1648 = vshrl.u32 %v1647, 7
        %v1649 = vsub.s32 0, %v1648
        %v1650 = vrot.slane %v1637, %v1649
        %v1651 = vlaneseq
        %v1652 = vshrl.u32 %v1651, 7
        %v1653 = vsub.s32 0, %v1652
        %v1654 = vrot.slane %v1638, %v1653
        %v1659 = vmax.f32 %v1298, 0.0
        %v1660 = vmax.f32 %v1301, 0.0
        %v1661 = vmax.f32 %v1306, 0.0
        %v1662 = vmax.f32 %v1309, 0.0
        %v1663 = vmax.f32 %v1314, 0.0
        %v1664 = vmax.f32 %v1317, 0.0
        %v1665 = vmax.f32 %v1322, 0.0
        %v1666 = vmax.f32 %v1325, 0.0
        %v1667 = vmax.f32 %v1330, 0.0
        %v1668 = vmax.f32 %v1333, 0.0
        %v1669 = vmax.f32 %v1338, 0.0
        %v1670 = vmax.f32 %v1341, 0.0
        %v1671 = vmax.f32 %v1346, 0.0
        %v1672 = vmax.f32 %v1349, 0.0
        %v1673 = vmax.f32 %v1354, 0.0
        %v1674 = vmax.f32 %v1357, 0.0
        %v1675 = vpack.c.bf16 %v1660, %v1659
        %v1676 = vpack.c.bf16 %v1662, %v1661
        %v1677 = vpack.c.bf16 %v1664, %v1663
        %v1678 = vpack.c.bf16 %v1666, %v1665
        %v1679 = vpack.c.bf16 %v1668, %v1667
        %v1680 = vpack.c.bf16 %v1670, %v1669
        %v1681 = vpack.c.bf16 %v1672, %v1671
        %v1682 = vpack.c.bf16 %v1674, %v1673
        %v1683 = vld [vmem:[%s5] sm:$0xf]
        %v1684 = vld [vmem:[%s5 + $0x4] sm:$0xf]
        %v1685 = vld [vmem:[%s5 + $0x8] sm:$0xf]
        %v1686 = vld [vmem:[%s5 + $0xc] sm:$0xf]
        %v1691 = vunpack.c.l.b16 %v1683
        %v1692 = vunpack.c.l.b16 %v1684
        %v1693 = vunpack.c.l.b16 %v1685
        %v1694 = vunpack.c.l.b16 %v1686
        %v1695 = vpack.c.b16 %v1692, %v1691
        %v1696 = vpack.c.b16 %v1694, %v1693
        %v1700 = vsel %vm1077, %v1675, 0
        %v1703 = vsel %vm1077, %v1676, 0
        %v1706 = vsel %vm1077, %v1677, 0
        %v1709 = vsel %vm1077, %v1678, 0
        %v1712 = vsel %vm1077, %v1679, 0
        %v1715 = vsel %vm1077, %v1680, 0
        %v1718 = vsel %vm1077, %v1681, 0
        %v1721 = vsel %vm1077, %v1682, 0
        %1723 = vmatprep.subr.bf16.mxu0 0
        %1724 = vmatpush1.bf16.msra.mxu0 0
        %1725 = vmatprep.subr.bf16.mxu0 0
        %1726 = vmatpush1.bf16.msra.mxu0 0
        %1727 = vmatprep.subr.bf16.mxu0 0
        %1728 = vmatpush1.bf16.msra.mxu0 0
        %1729 = vmatprep.subr.bf16.mxu0 0
        %1730 = vmatpush1.bf16.msra.mxu0 0
        %1731 = vmatprep.subr.bf16.mxu0 0
        %1732 = vmatpush1.bf16.msra.mxu0 0
        %1733 = vmatprep.subr.bf16.mxu0 0
        %1734 = vmatpush1.bf16.msra.mxu0 0
        %1735 = vmatprep.subr.bf16.mxu0 0
        %1736 = vmatpush1.bf16.msra.mxu0 %v1696
        %1737 = vmatprep.subr.bf16.mxu0 0
        %1738 = vmatpush1.bf16.msra.mxu0 %v1695
        %1739 = vmatprep.subr.bf16.mxu0 0
        %1740 = vmatpush2.bf16.msra.mxu0 0
        %1741 = vmatprep.subr.bf16.mxu0 0
        %1742 = vmatpush2.bf16.msra.mxu0 0
        %1743 = vmatprep.subr.bf16.mxu0 0
        %1744 = vmatpush2.bf16.msra.mxu0 0
        %1745 = vmatprep.subr.bf16.mxu0 0
        %1746 = vmatpush2.bf16.msra.mxu0 0
        %1747 = vmatprep.subr.bf16.mxu0 0
        %1748 = vmatpush2.bf16.msra.mxu0 0
        %1749 = vmatprep.subr.bf16.mxu0 0
        %1750 = vmatpush2.bf16.msra.mxu0 0
        %1751 = vmatprep.subr.bf16.mxu0 0
        %1752 = vmatpush2.bf16.msra.mxu0 0
        %1753 = vmatprep.subr.bf16.mxu0 0
        %1754 = vmatpush2.bf16.msra.mxu0 0
        %1755 = vmatprep.mubr.bf16.mxu0 0
        %1756 = vmatmul.mubr.bf16.gmra.mxu0 %v1700
        %v1757 = vpop.f32.mrf.mxu0
        %v1758 = vadd.f32 %v1597, %v1757
        %v1759 = vpop.f32.mrf.mxu0
        %v1760 = vpop.f32.mrf.mxu0
        %v1761 = vadd.f32 %v1597, %v1760
        %v1762 = vpop.f32.mrf.mxu0
        %1763 = vmatprep.mubr.bf16.mxu0 0
        %1764 = vmatmul.mubr.bf16.gmra.mxu0 %v1703
        %v1765 = vpop.f32.mrf.mxu0
        %v1766 = vadd.f32 %v1597, %v1765
        %v1767 = vpop.f32.mrf.mxu0
        %v1768 = vpop.f32.mrf.mxu0
        %v1769 = vadd.f32 %v1597, %v1768
        %v1770 = vpop.f32.mrf.mxu0
        %1771 = vmatprep.mubr.bf16.mxu0 0
        %1772 = vmatmul.mubr.bf16.gmra.mxu0 %v1706
        %v1773 = vpop.f32.mrf.mxu0
        %v1774 = vadd.f32 %v1601, %v1773
        %v1775 = vpop.f32.mrf.mxu0
        %v1776 = vpop.f32.mrf.mxu0
        %v1777 = vadd.f32 %v1601, %v1776
        %v1778 = vpop.f32.mrf.mxu0
        %1779 = vmatprep.mubr.bf16.mxu0 0
        %1780 = vmatmul.mubr.bf16.gmra.mxu0 %v1709
        %v1781 = vpop.f32.mrf.mxu0
        %v1782 = vadd.f32 %v1601, %v1781
        %v1783 = vpop.f32.mrf.mxu0
        %v1784 = vpop.f32.mrf.mxu0
        %v1785 = vadd.f32 %v1601, %v1784
        %v1786 = vpop.f32.mrf.mxu0
        %1787 = vmatprep.mubr.bf16.mxu0 0
        %1788 = vmatmul.mubr.bf16.gmra.mxu0 %v1712
        %v1789 = vpop.f32.mrf.mxu0
        %v1790 = vadd.f32 %v1605, %v1789
        %v1791 = vpop.f32.mrf.mxu0
        %v1792 = vpop.f32.mrf.mxu0
        %v1793 = vadd.f32 %v1605, %v1792
        %v1794 = vpop.f32.mrf.mxu0
        %1795 = vmatprep.mubr.bf16.mxu0 0
        %1796 = vmatmul.mubr.bf16.gmra.mxu0 %v1715
        %v1797 = vpop.f32.mrf.mxu0
        %v1798 = vadd.f32 %v1605, %v1797
        %v1799 = vpop.f32.mrf.mxu0
        %v1800 = vpop.f32.mrf.mxu0
        %v1801 = vadd.f32 %v1605, %v1800
        %v1802 = vpop.f32.mrf.mxu0
        %1803 = vmatprep.mubr.bf16.mxu0 0
        %1804 = vmatmul.mubr.bf16.gmra.mxu0 %v1718
        %v1805 = vpop.f32.mrf.mxu0
        %v1806 = vadd.f32 %v1609, %v1805
        %v1807 = vpop.f32.mrf.mxu0
        %v1808 = vpop.f32.mrf.mxu0
        %v1809 = vadd.f32 %v1609, %v1808
        %v1810 = vpop.f32.mrf.mxu0
        %1811 = vmatprep.mubr.bf16.mxu0 0
        %1812 = vmatmul.mubr.bf16.gmra.mxu0 %v1721
        %v1813 = vpop.f32.mrf.mxu0
        %v1814 = vadd.f32 %v1609, %v1813
        %v1815 = vpop.f32.mrf.mxu0
        %v1816 = vpop.f32.mrf.mxu0
        %v1817 = vadd.f32 %v1609, %v1816
        %v1818 = vpop.f32.mrf.mxu0
        %1819 = vdwg.mxu0
        %v1820 = vld [vmem:[#allocation7 + $0x1] sm:$0x1]
        %v1821 = vlaneseq
        %v1822 = vshrl.u32 %v1821, 7
        %v1823 = vsub.s32 0, %v1822
        %v1824 = vrot.slane %v1820, %v1823
        %v1825 = vadd.f32 %v1758, %v1824
        %v1826 = vadd.f32 %v1761, %v1824
        %v1827 = vadd.f32 %v1766, %v1824
        %v1828 = vadd.f32 %v1769, %v1824
        %v1829 = vadd.f32 %v1774, %v1824
        %v1830 = vadd.f32 %v1777, %v1824
        %v1831 = vadd.f32 %v1782, %v1824
        %v1832 = vadd.f32 %v1785, %v1824
        %v1833 = vadd.f32 %v1790, %v1824
        %v1834 = vadd.f32 %v1793, %v1824
        %v1835 = vadd.f32 %v1798, %v1824
        %v1836 = vadd.f32 %v1801, %v1824
        %v1837 = vadd.f32 %v1806, %v1824
        %v1838 = vadd.f32 %v1809, %v1824
        %v1839 = vadd.f32 %v1814, %v1824
        %v1840 = vadd.f32 %v1817, %v1824
        %v1841 = vmax.f32 %v1825, 0.0
        %v1842 = vmax.f32 %v1826, 0.0
        %v1843 = vmax.f32 %v1827, 0.0
        %v1844 = vmax.f32 %v1828, 0.0
        %v1845 = vmax.f32 %v1829, 0.0
        %v1846 = vmax.f32 %v1830, 0.0
        %v1847 = vmax.f32 %v1831, 0.0
        %v1848 = vmax.f32 %v1832, 0.0
        %v1849 = vmax.f32 %v1833, 0.0
        %v1850 = vmax.f32 %v1834, 0.0
        %v1851 = vmax.f32 %v1835, 0.0
        %v1852 = vmax.f32 %v1836, 0.0
        %v1853 = vmax.f32 %v1837, 0.0
        %v1854 = vmax.f32 %v1838, 0.0
        %v1855 = vmax.f32 %v1839, 0.0
        %v1856 = vmax.f32 %v1840, 0.0
        %v1857 = vpack.c.bf16 %v1842, %v1841
        %v1858 = vpack.c.bf16 %v1844, %v1843
        %v1859 = vpack.c.bf16 %v1846, %v1845
        %v1860 = vpack.c.bf16 %v1848, %v1847
        %v1861 = vpack.c.bf16 %v1850, %v1849
        %v1862 = vpack.c.bf16 %v1852, %v1851
        %v1863 = vpack.c.bf16 %v1854, %v1853
        %v1864 = vpack.c.bf16 %v1856, %v1855
        %s1865 = scalar_lea.vmem %s8, 16
        %v1866 = vld [vmem:[%s1865] sm:$0xf]
        %v1867 = vld [vmem:[%s1865 + $0x4] sm:$0xf]
        %v1868 = vld [vmem:[%s1865 + $0x8] sm:$0xf]
        %v1869 = vld [vmem:[%s1865 + $0xc] sm:$0xf]
        %v1870 = vld [vmem:[%s9 + $0x1] sm:$0x1]
        %v1871 = vlaneseq
        %v1872 = vshrl.u32 %v1871, 7
        %v1873 = vsub.s32 0, %v1872
        %v1874 = vrot.slane %v1870, %v1873
        %v1879 = vunpack.c.l.b16 %v1866
        %v1880 = vunpack.c.l.b16 %v1867
        %v1881 = vunpack.c.l.b16 %v1868
        %v1882 = vunpack.c.l.b16 %v1869
        %v1883 = vpack.c.b16 %v1880, %v1879
        %v1884 = vpack.c.b16 %v1882, %v1881
        %v1888 = vsel %vm1077, %v1857, 0
        %v1891 = vsel %vm1077, %v1858, 0
        %v1894 = vsel %vm1077, %v1859, 0
        %v1897 = vsel %vm1077, %v1860, 0
        %v1900 = vsel %vm1077, %v1861, 0
        %v1903 = vsel %vm1077, %v1862, 0
        %v1906 = vsel %vm1077, %v1863, 0
        %v1909 = vsel %vm1077, %v1864, 0
        %1911 = vmatprep.subr.bf16.mxu0 0
        %1912 = vmatpush1.bf16.msra.mxu0 0
        %1913 = vmatprep.subr.bf16.mxu0 0
        %1914 = vmatpush1.bf16.msra.mxu0 0
        %1915 = vmatprep.subr.bf16.mxu0 0
        %1916 = vmatpush1.bf16.msra.mxu0 0
        %1917 = vmatprep.subr.bf16.mxu0 0
        %1918 = vmatpush1.bf16.msra.mxu0 0
        %1919 = vmatprep.subr.bf16.mxu0 0
        %1920 = vmatpush1.bf16.msra.mxu0 0
        %1921 = vmatprep.subr.bf16.mxu0 0
        %1922 = vmatpush1.bf16.msra.mxu0 0
        %1923 = vmatprep.subr.bf16.mxu0 0
        %1924 = vmatpush1.bf16.msra.mxu0 %v1884
        %1925 = vmatprep.subr.bf16.mxu0 0
        %1926 = vmatpush1.bf16.msra.mxu0 %v1883
        %1927 = vmatprep.subr.bf16.mxu0 0
        %1928 = vmatpush2.bf16.msra.mxu0 0
        %1929 = vmatprep.subr.bf16.mxu0 0
        %1930 = vmatpush2.bf16.msra.mxu0 0
        %1931 = vmatprep.subr.bf16.mxu0 0
        %1932 = vmatpush2.bf16.msra.mxu0 0
        %1933 = vmatprep.subr.bf16.mxu0 0
        %1934 = vmatpush2.bf16.msra.mxu0 0
        %1935 = vmatprep.subr.bf16.mxu0 0
        %1936 = vmatpush2.bf16.msra.mxu0 0
        %1937 = vmatprep.subr.bf16.mxu0 0
        %1938 = vmatpush2.bf16.msra.mxu0 0
        %1939 = vmatprep.subr.bf16.mxu0 0
        %1940 = vmatpush2.bf16.msra.mxu0 0
        %1941 = vmatprep.subr.bf16.mxu0 0
        %1942 = vmatpush2.bf16.msra.mxu0 0
        %1943 = vmatprep.mubr.bf16.mxu0 0
        %1944 = vmatmul.mubr.bf16.gmra.mxu0 %v1888
        %v1945 = vpop.f32.mrf.mxu0
        %v1946 = vadd.f32 %v1874, %v1945
        %v1947 = vpop.f32.mrf.mxu0
        %v1948 = vpop.f32.mrf.mxu0
        %v1949 = vadd.f32 %v1874, %v1948
        %v1950 = vpop.f32.mrf.mxu0
        %1951 = vmatprep.mubr.bf16.mxu0 0
        %1952 = vmatmul.mubr.bf16.gmra.mxu0 %v1891
        %v1953 = vpop.f32.mrf.mxu0
        %v1954 = vadd.f32 %v1874, %v1953
        %v1955 = vpop.f32.mrf.mxu0
        %v1956 = vpop.f32.mrf.mxu0
        %v1957 = vadd.f32 %v1874, %v1956
        %v1958 = vpop.f32.mrf.mxu0
        %1959 = vmatprep.mubr.bf16.mxu0 0
        %1960 = vmatmul.mubr.bf16.gmra.mxu0 %v1894
        %v1961 = vpop.f32.mrf.mxu0
        %v1962 = vadd.f32 %v1874, %v1961
        %v1963 = vpop.f32.mrf.mxu0
        %v1964 = vpop.f32.mrf.mxu0
        %v1965 = vadd.f32 %v1874, %v1964
        %v1966 = vpop.f32.mrf.mxu0
        %1967 = vmatprep.mubr.bf16.mxu0 0
        %1968 = vmatmul.mubr.bf16.gmra.mxu0 %v1897
        %v1969 = vpop.f32.mrf.mxu0
        %v1970 = vadd.f32 %v1874, %v1969
        %v1971 = vpop.f32.mrf.mxu0
        %v1972 = vpop.f32.mrf.mxu0
        %v1973 = vadd.f32 %v1874, %v1972
        %v1974 = vpop.f32.mrf.mxu0
        %1975 = vmatprep.mubr.bf16.mxu0 0
        %1976 = vmatmul.mubr.bf16.gmra.mxu0 %v1900
        %v1977 = vpop.f32.mrf.mxu0
        %v1978 = vadd.f32 %v1874, %v1977
        %v1979 = vpop.f32.mrf.mxu0
        %v1980 = vpop.f32.mrf.mxu0
        %v1981 = vadd.f32 %v1874, %v1980
        %v1982 = vpop.f32.mrf.mxu0
        %1983 = vmatprep.mubr.bf16.mxu0 0
        %1984 = vmatmul.mubr.bf16.gmra.mxu0 %v1903
        %v1985 = vpop.f32.mrf.mxu0
        %v1986 = vadd.f32 %v1874, %v1985
        %v1987 = vpop.f32.mrf.mxu0
        %v1988 = vpop.f32.mrf.mxu0
        %v1989 = vadd.f32 %v1874, %v1988
        %v1990 = vpop.f32.mrf.mxu0
        %1991 = vmatprep.mubr.bf16.mxu0 0
        %1992 = vmatmul.mubr.bf16.gmra.mxu0 %v1906
        %v1993 = vpop.f32.mrf.mxu0
        %v1994 = vadd.f32 %v1874, %v1993
        %v1995 = vpop.f32.mrf.mxu0
        %v1996 = vpop.f32.mrf.mxu0
        %v1997 = vadd.f32 %v1874, %v1996
        %v1998 = vpop.f32.mrf.mxu0
        %1999 = vmatprep.mubr.bf16.mxu0 0
        %2000 = vmatmul.mubr.bf16.gmra.mxu0 %v1909
        %v2001 = vpop.f32.mrf.mxu0
        %v2002 = vadd.f32 %v1874, %v2001
        %v2003 = vpop.f32.mrf.mxu0
        %v2004 = vpop.f32.mrf.mxu0
        %v2005 = vadd.f32 %v1874, %v2004
        %v2006 = vpop.f32.mrf.mxu0
        %2007 = vdwg.mxu0
        %v2008 = vpack.c.bf16 %v1301, %v1298
        %v2009 = vpack.c.bf16 %v1309, %v1306
        %v2010 = vpack.c.bf16 %v1317, %v1314
        %v2011 = vpack.c.bf16 %v1325, %v1322
        %v2012 = vpack.c.bf16 %v1333, %v1330
        %v2013 = vpack.c.bf16 %v1341, %v1338
        %v2014 = vpack.c.bf16 %v1349, %v1346
        %v2015 = vpack.c.bf16 %v1357, %v1354
        %v2016 = vld [vmem:[%s10] sm:$0xf]
        %v2017 = vld [vmem:[%s10 + $0x4] sm:$0xf]
        %v2018 = vld [vmem:[%s10 + $0x8] sm:$0xf]
        %v2019 = vld [vmem:[%s10 + $0xc] sm:$0xf]
        %v2024 = vunpack.c.l.b16 %v2016
        %v2025 = vunpack.c.l.b16 %v2017
        %v2026 = vunpack.c.l.b16 %v2018
        %v2027 = vunpack.c.l.b16 %v2019
        %v2028 = vpack.c.b16 %v2025, %v2024
        %v2029 = vpack.c.b16 %v2027, %v2026
        %v2033 = vsel %vm1077, %v2008, 0
        %v2036 = vsel %vm1077, %v2009, 0
        %v2039 = vsel %vm1077, %v2010, 0
        %v2042 = vsel %vm1077, %v2011, 0
        %v2045 = vsel %vm1077, %v2012, 0
        %v2048 = vsel %vm1077, %v2013, 0
        %v2051 = vsel %vm1077, %v2014, 0
        %v2054 = vsel %vm1077, %v2015, 0
        %2056 = vmatprep.subr.bf16.mxu0 0
        %2057 = vmatpush1.bf16.msra.mxu0 0
        %2058 = vmatprep.subr.bf16.mxu0 0
        %2059 = vmatpush1.bf16.msra.mxu0 0
        %2060 = vmatprep.subr.bf16.mxu0 0
        %2061 = vmatpush1.bf16.msra.mxu0 0
        %2062 = vmatprep.subr.bf16.mxu0 0
        %2063 = vmatpush1.bf16.msra.mxu0 0
        %2064 = vmatprep.subr.bf16.mxu0 0
        %2065 = vmatpush1.bf16.msra.mxu0 0
        %2066 = vmatprep.subr.bf16.mxu0 0
        %2067 = vmatpush1.bf16.msra.mxu0 0
        %2068 = vmatprep.subr.bf16.mxu0 0
        %2069 = vmatpush1.bf16.msra.mxu0 %v2029
        %2070 = vmatprep.subr.bf16.mxu0 0
        %2071 = vmatpush1.bf16.msra.mxu0 %v2028
        %2072 = vmatprep.subr.bf16.mxu0 0
        %2073 = vmatpush2.bf16.msra.mxu0 0
        %2074 = vmatprep.subr.bf16.mxu0 0
        %2075 = vmatpush2.bf16.msra.mxu0 0
        %2076 = vmatprep.subr.bf16.mxu0 0
        %2077 = vmatpush2.bf16.msra.mxu0 0
        %2078 = vmatprep.subr.bf16.mxu0 0
        %2079 = vmatpush2.bf16.msra.mxu0 0
        %2080 = vmatprep.subr.bf16.mxu0 0
        %2081 = vmatpush2.bf16.msra.mxu0 0
        %2082 = vmatprep.subr.bf16.mxu0 0
        %2083 = vmatpush2.bf16.msra.mxu0 0
        %2084 = vmatprep.subr.bf16.mxu0 0
        %2085 = vmatpush2.bf16.msra.mxu0 0
        %2086 = vmatprep.subr.bf16.mxu0 0
        %2087 = vmatpush2.bf16.msra.mxu0 0
        %2088 = vmatprep.mubr.bf16.mxu0 0
        %2089 = vmatmul.mubr.bf16.gmra.mxu0 %v2033
        %v2090 = vpop.f32.mrf.mxu0
        %v2091 = vadd.f32 %v1642, %v2090
        %v2092 = vpop.f32.mrf.mxu0
        %v2093 = vpop.f32.mrf.mxu0
        %v2094 = vadd.f32 %v1642, %v2093
        %v2095 = vpop.f32.mrf.mxu0
        %2096 = vmatprep.mubr.bf16.mxu0 0
        %2097 = vmatmul.mubr.bf16.gmra.mxu0 %v2036
        %v2098 = vpop.f32.mrf.mxu0
        %v2099 = vadd.f32 %v1642, %v2098
        %v2100 = vpop.f32.mrf.mxu0
        %v2101 = vpop.f32.mrf.mxu0
        %v2102 = vadd.f32 %v1642, %v2101
        %v2103 = vpop.f32.mrf.mxu0
        %2104 = vmatprep.mubr.bf16.mxu0 0
        %2105 = vmatmul.mubr.bf16.gmra.mxu0 %v2039
        %v2106 = vpop.f32.mrf.mxu0
        %v2107 = vadd.f32 %v1646, %v2106
        %v2108 = vpop.f32.mrf.mxu0
        %v2109 = vpop.f32.mrf.mxu0
        %v2110 = vadd.f32 %v1646, %v2109
        %v2111 = vpop.f32.mrf.mxu0
        %2112 = vmatprep.mubr.bf16.mxu0 0
        %2113 = vmatmul.mubr.bf16.gmra.mxu0 %v2042
        %v2114 = vpop.f32.mrf.mxu0
        %v2115 = vadd.f32 %v1646, %v2114
        %v2116 = vpop.f32.mrf.mxu0
        %v2117 = vpop.f32.mrf.mxu0
        %v2118 = vadd.f32 %v1646, %v2117
        %v2119 = vpop.f32.mrf.mxu0
        %2120 = vmatprep.mubr.bf16.mxu0 0
        %2121 = vmatmul.mubr.bf16.gmra.mxu0 %v2045
        %v2122 = vpop.f32.mrf.mxu0
        %v2123 = vadd.f32 %v1650, %v2122
        %v2124 = vpop.f32.mrf.mxu0
        %v2125 = vpop.f32.mrf.mxu0
        %v2126 = vadd.f32 %v1650, %v2125
        %v2127 = vpop.f32.mrf.mxu0
        %2128 = vmatprep.mubr.bf16.mxu0 0
        %2129 = vmatmul.mubr.bf16.gmra.mxu0 %v2048
        %v2130 = vpop.f32.mrf.mxu0
        %v2131 = vadd.f32 %v1650, %v2130
        %v2132 = vpop.f32.mrf.mxu0
        %v2133 = vpop.f32.mrf.mxu0
        %v2134 = vadd.f32 %v1650, %v2133
        %v2135 = vpop.f32.mrf.mxu0
        %2136 = vmatprep.mubr.bf16.mxu0 0
        %2137 = vmatmul.mubr.bf16.gmra.mxu0 %v2051
        %v2138 = vpop.f32.mrf.mxu0
        %v2139 = vadd.f32 %v1654, %v2138
        %v2140 = vpop.f32.mrf.mxu0
        %v2141 = vpop.f32.mrf.mxu0
        %v2142 = vadd.f32 %v1654, %v2141
        %v2143 = vpop.f32.mrf.mxu0
        %2144 = vmatprep.mubr.bf16.mxu0 0
        %2145 = vmatmul.mubr.bf16.gmra.mxu0 %v2054
        %v2146 = vpop.f32.mrf.mxu0
        %v2147 = vadd.f32 %v1654, %v2146
        %v2148 = vpop.f32.mrf.mxu0
        %v2149 = vpop.f32.mrf.mxu0
        %v2150 = vadd.f32 %v1654, %v2149
        %v2151 = vpop.f32.mrf.mxu0
        %2152 = vdwg.mxu0
        %v2153 = vadd.f32 %v2091, %v1946
        %v2154 = vadd.f32 %v2094, %v1949
        %v2155 = vadd.f32 %v2099, %v1954
        %v2156 = vadd.f32 %v2102, %v1957
        %v2157 = vadd.f32 %v2107, %v1962
        %v2158 = vadd.f32 %v2110, %v1965
        %v2159 = vadd.f32 %v2115, %v1970
        %v2160 = vadd.f32 %v2118, %v1973
        %v2161 = vadd.f32 %v2123, %v1978
        %v2162 = vadd.f32 %v2126, %v1981
        %v2163 = vadd.f32 %v2131, %v1986
        %v2164 = vadd.f32 %v2134, %v1989
        %v2165 = vadd.f32 %v2139, %v1994
        %v2166 = vadd.f32 %v2142, %v1997
        %v2167 = vadd.f32 %v2147, %v2002
        %v2168 = vadd.f32 %v2150, %v2005
        %v2169 = vsel %vm1077, %v2153, -inf
        %v2170 = vsel %vm1077, %v2154, -inf
        %v2171 = vmax.f32 %v2169, %v2170
        %v2172 = vsel %vm1077, %v2155, -inf
        %v2173 = vmax.f32 %v2171, %v2172
        %v2174 = vsel %vm1077, %v2156, -inf
        %v2175 = vmax.f32 %v2173, %v2174
        %v2176 = vrot.slane %v2175, 4
        %v2177 = vmax.f32 %v2175, %v2176
        %v2178 = vrot.slane %v2177, 2
        %v2179 = vmax.f32 %v2177, %v2178
        %v2180 = vrot.slane %v2179, 1
        %v2181 = vmax.f32 %v2179, %v2180
        %v2182 = vsel %vm1077, %v2157, -inf
        %v2183 = vsel %vm1077, %v2158, -inf
        %v2184 = vmax.f32 %v2182, %v2183
        %v2185 = vsel %vm1077, %v2159, -inf
        %v2186 = vmax.f32 %v2184, %v2185
        %v2187 = vsel %vm1077, %v2160, -inf
        %v2188 = vmax.f32 %v2186, %v2187
        %v2189 = vrot.slane %v2188, 4
        %v2190 = vmax.f32 %v2188, %v2189
        %v2191 = vrot.slane %v2190, 2
        %v2192 = vmax.f32 %v2190, %v2191
        %v2193 = vrot.slane %v2192, 1
        %v2194 = vmax.f32 %v2192, %v2193
        %v2195 = vsel %vm1077, %v2161, -inf
        %v2196 = vsel %vm1077, %v2162, -inf
        %v2197 = vmax.f32 %v2195, %v2196
        %v2198 = vsel %vm1077, %v2163, -inf
        %v2199 = vmax.f32 %v2197, %v2198
        %v2200 = vsel %vm1077, %v2164, -inf
        %v2201 = vmax.f32 %v2199, %v2200
        %v2202 = vrot.slane %v2201, 4
        %v2203 = vmax.f32 %v2201, %v2202
        %v2204 = vrot.slane %v2203, 2
        %v2205 = vmax.f32 %v2203, %v2204
        %v2206 = vrot.slane %v2205, 1
        %v2207 = vmax.f32 %v2205, %v2206
        %v2208 = vsel %vm1077, %v2165, -inf
        %v2209 = vsel %vm1077, %v2166, -inf
        %v2210 = vmax.f32 %v2208, %v2209
        %v2211 = vsel %vm1077, %v2167, -inf
        %v2212 = vmax.f32 %v2210, %v2211
        %v2213 = vsel %vm1077, %v2168, -inf
        %v2214 = vmax.f32 %v2212, %v2213
        %v2215 = vrot.slane %v2214, 4
        %v2216 = vmax.f32 %v2214, %v2215
        %v2217 = vrot.slane %v2216, 2
        %v2218 = vmax.f32 %v2216, %v2217
        %v2219 = vrot.slane %v2218, 1
        %v2220 = vmax.f32 %v2218, %v2219
        %v2221 = vmax.f32 %v2181, 0.0
        %v2222 = vmax.f32 %v2194, 0.0
        %v2223 = vmax.f32 %v2207, 0.0
        %v2224 = vmax.f32 %v2220, 0.0
        %v2225 = vpack.c.bf16 %v2221, %v2221
        %v2226 = vpack.c.bf16 %v2222, %v2222
        %v2227 = vpack.c.bf16 %v2223, %v2223
        %v2228 = vpack.c.bf16 %v2224, %v2224
        %s2229 = scalar_lea.vmem %s6, 16
        %v2230 = vld [vmem:[%s2229] sm:$0xf]
        %v2231 = vld [vmem:[%s2229 + $0x4] sm:$0xf]
        %v2232 = vld [vmem:[%s2229 + $0x8] sm:$0xf]
        %v2233 = vld [vmem:[%s2229 + $0xc] sm:$0xf]
        %v2238 = vunpack.c.l.b16 %v2225
        %v2239 = vunpack.c.l.b16 %v2226
        %v2240 = vunpack.c.l.b16 %v2227
        %v2241 = vunpack.c.l.b16 %v2228
        %v2242 = vsel %vm1432, %v2239, %v2238
        %v2243 = vsel %vm1434, %v2240, %v2242
        %v2244 = vsel %vm1436, %v2241, %v2243
        %v2245 = vpack.c.b16 %v2244, %v2244
        %v2250 = vunpack.c.l.b16 %v2230
        %v2251 = vunpack.c.l.b16 %v2231
        %v2252 = vunpack.c.l.b16 %v2232
        %v2253 = vunpack.c.l.b16 %v2233
        %v2254 = vpack.c.b16 %v2251, %v2250
        %v2255 = vpack.c.b16 %v2253, %v2252
        %v2259 = vsel %vm1077, %v2245, 0
        %2261 = vmatprep.subr.bf16.mxu0 0
        %2262 = vmatpush1.bf16.msra.mxu0 0
        %2263 = vmatprep.subr.bf16.mxu0 0
        %2264 = vmatpush1.bf16.msra.mxu0 0
        %2265 = vmatprep.subr.bf16.mxu0 0
        %2266 = vmatpush1.bf16.msra.mxu0 0
        %2267 = vmatprep.subr.bf16.mxu0 0
        %2268 = vmatpush1.bf16.msra.mxu0 0
        %2269 = vmatprep.subr.bf16.mxu0 0
        %2270 = vmatpush1.bf16.msra.mxu0 0
        %2271 = vmatprep.subr.bf16.mxu0 0
        %2272 = vmatpush1.bf16.msra.mxu0 0
        %2273 = vmatprep.subr.bf16.mxu0 0
        %2274 = vmatpush1.bf16.msra.mxu0 %v2255
        %2275 = vmatprep.subr.bf16.mxu0 0
        %2276 = vmatpush1.bf16.msra.mxu0 %v2254
        %2277 = vmatprep.subr.bf16.mxu0 0
        %2278 = vmatpush2.bf16.msra.mxu0 0
        %2279 = vmatprep.subr.bf16.mxu0 0
        %2280 = vmatpush2.bf16.msra.mxu0 0
        %2281 = vmatprep.subr.bf16.mxu0 0
        %2282 = vmatpush2.bf16.msra.mxu0 0
        %2283 = vmatprep.subr.bf16.mxu0 0
        %2284 = vmatpush2.bf16.msra.mxu0 0
        %2285 = vmatprep.subr.bf16.mxu0 0
        %2286 = vmatpush2.bf16.msra.mxu0 0
        %2287 = vmatprep.subr.bf16.mxu0 0
        %2288 = vmatpush2.bf16.msra.mxu0 0
        %2289 = vmatprep.subr.bf16.mxu0 0
        %2290 = vmatpush2.bf16.msra.mxu0 0
        %2291 = vmatprep.subr.bf16.mxu0 0
        %2292 = vmatpush2.bf16.msra.mxu0 0
        %2293 = vmatprep.mubr.bf16.mxu0 0
        %2294 = vmatmul.mubr.bf16.gmra.mxu0 %v2259
        %v2295 = vpop.f32.mrf.mxu0
        %v2296 = vadd.f32 0.0, %v2295
        %v2297 = vpop.f32.mrf.mxu0
        %v2298 = vpop.f32.mrf.mxu0
        %v2299 = vpop.f32.mrf.mxu0
        %2300 = vdwg.mxu0
        %v2301 = vpack.c.bf16 %v2181, %v2181
        %v2302 = vpack.c.bf16 %v2194, %v2194
        %v2303 = vpack.c.bf16 %v2207, %v2207
        %v2304 = vpack.c.bf16 %v2220, %v2220
        %s2305 = scalar_lea.vmem %s11, 16
        %v2306 = vld [vmem:[%s2305] sm:$0xf]
        %v2307 = vld [vmem:[%s2305 + $0x4] sm:$0xf]
        %v2308 = vld [vmem:[%s2305 + $0x8] sm:$0xf]
        %v2309 = vld [vmem:[%s2305 + $0xc] sm:$0xf]
        %v2314 = vunpack.c.l.b16 %v2301
        %v2315 = vunpack.c.l.b16 %v2302
        %v2316 = vunpack.c.l.b16 %v2303
        %v2317 = vunpack.c.l.b16 %v2304
        %v2318 = vsel %vm1432, %v2315, %v2314
        %v2319 = vsel %vm1434, %v2316, %v2318
        %v2320 = vsel %vm1436, %v2317, %v2319
        %v2321 = vpack.c.b16 %v2320, %v2320
        %v2326 = vunpack.c.l.b16 %v2306
        %v2327 = vunpack.c.l.b16 %v2307
        %v2328 = vunpack.c.l.b16 %v2308
        %v2329 = vunpack.c.l.b16 %v2309
        %v2330 = vpack.c.b16 %v2327, %v2326
        %v2331 = vpack.c.b16 %v2329, %v2328
        %v2335 = vsel %vm1077, %v2321, 0
        %2337 = vmatprep.subr.bf16.mxu0 0
        %2338 = vmatpush1.bf16.msra.mxu0 0
        %2339 = vmatprep.subr.bf16.mxu0 0
        %2340 = vmatpush1.bf16.msra.mxu0 0
        %2341 = vmatprep.subr.bf16.mxu0 0
        %2342 = vmatpush1.bf16.msra.mxu0 0
        %2343 = vmatprep.subr.bf16.mxu0 0
        %2344 = vmatpush1.bf16.msra.mxu0 0
        %2345 = vmatprep.subr.bf16.mxu0 0
        %2346 = vmatpush1.bf16.msra.mxu0 0
        %2347 = vmatprep.subr.bf16.mxu0 0
        %2348 = vmatpush1.bf16.msra.mxu0 0
        %2349 = vmatprep.subr.bf16.mxu0 0
        %2350 = vmatpush1.bf16.msra.mxu0 %v2331
        %2351 = vmatprep.subr.bf16.mxu0 0
        %2352 = vmatpush1.bf16.msra.mxu0 %v2330
        %2353 = vmatprep.subr.bf16.mxu0 0
        %2354 = vmatpush2.bf16.msra.mxu0 0
        %2355 = vmatprep.subr.bf16.mxu0 0
        %2356 = vmatpush2.bf16.msra.mxu0 0
        %2357 = vmatprep.subr.bf16.mxu0 0
        %2358 = vmatpush2.bf16.msra.mxu0 0
        %2359 = vmatprep.subr.bf16.mxu0 0
        %2360 = vmatpush2.bf16.msra.mxu0 0
        %2361 = vmatprep.subr.bf16.mxu0 0
        %2362 = vmatpush2.bf16.msra.mxu0 0
        %2363 = vmatprep.subr.bf16.mxu0 0
        %2364 = vmatpush2.bf16.msra.mxu0 0
        %2365 = vmatprep.subr.bf16.mxu0 0
        %2366 = vmatpush2.bf16.msra.mxu0 0
        %2367 = vmatprep.subr.bf16.mxu0 0
        %2368 = vmatpush2.bf16.msra.mxu0 0
        %2369 = vmatprep.mubr.bf16.mxu0 0
        %2370 = vmatmul.mubr.bf16.gmra.mxu0 %v2335
        %v2371 = vpop.f32.mrf.mxu0
        %v2372 = vadd.f32 0.0, %v2371
        %v2373 = vpop.f32.mrf.mxu0
        %v2374 = vpop.f32.mrf.mxu0
        %v2375 = vpop.f32.mrf.mxu0
        %2376 = vdwg.mxu0
        %v2379 = vunpack.c.l.s4 1966171168
        %v2380 = vunpack.c.0.s8 %v2379
        %v2381 = vlaneseq
        %v2382 = vshrl.u32 %v2381, 7
        %v2383 = vsub.s32 %v2380, %v2382
        %v2384 = vrot.slane %v2296, %v2383
        %v2385 = vcombine.high %v2384, %v2384
        %v2387 = vunpack.c.l.s4 1966171168
        %v2388 = vunpack.c.0.s8 %v2387
        %v2389 = vlaneseq
        %v2390 = vshrl.u32 %v2389, 7
        %v2391 = vsub.s32 %v2388, %v2390
        %v2392 = vrot.slane %v2384, %v2391
        %v2394 = vunpack.c.l.s4 1966171168
        %v2395 = vunpack.c.0.s8 %v2394
        %v2396 = vlaneseq
        %v2397 = vshrl.u32 %v2396, 7
        %v2398 = vsub.s32 %v2395, %v2397
        %v2399 = vrot.slane %v2385, %v2398
        %v2400 = vcombine.high %v2392, %v2392
        %v2401 = vcombine.high %v2399, %v2399
        %v2402 = vlaneseq
        %v2403 = vshrl.u32 %v2402, 7
        %v2404 = vsub.s32 0, %v2403
        %v2405 = vrot.slane %v2392, %v2404
        %v2406 = vlaneseq
        %v2407 = vshrl.u32 %v2406, 7
        %v2408 = vsub.s32 0, %v2407
        %v2409 = vrot.slane %v2399, %v2408
        %v2410 = vlaneseq
        %v2411 = vshrl.u32 %v2410, 7
        %v2412 = vsub.s32 0, %v2411
        %v2413 = vrot.slane %v2400, %v2412
        %v2414 = vlaneseq
        %v2415 = vshrl.u32 %v2414, 7
        %v2416 = vsub.s32 0, %v2415
        %v2417 = vrot.slane %v2401, %v2416
        %v2424 = vunpack.c.l.s4 1966171168
        %v2425 = vunpack.c.0.s8 %v2424
        %v2426 = vlaneseq
        %v2427 = vshrl.u32 %v2426, 7
        %v2428 = vsub.s32 %v2425, %v2427
        %v2429 = vrot.slane %v2372, %v2428
        %v2430 = vcombine.high %v2429, %v2429
        %v2432 = vunpack.c.l.s4 1966171168
        %v2433 = vunpack.c.0.s8 %v2432
        %v2434 = vlaneseq
        %v2435 = vshrl.u32 %v2434, 7
        %v2436 = vsub.s32 %v2433, %v2435
        %v2437 = vrot.slane %v2429, %v2436
        %v2439 = vunpack.c.l.s4 1966171168
        %v2440 = vunpack.c.0.s8 %v2439
        %v2441 = vlaneseq
        %v2442 = vshrl.u32 %v2441, 7
        %v2443 = vsub.s32 %v2440, %v2442
        %v2444 = vrot.slane %v2430, %v2443
        %v2445 = vcombine.high %v2437, %v2437
        %v2446 = vcombine.high %v2444, %v2444
        %v2447 = vlaneseq
        %v2448 = vshrl.u32 %v2447, 7
        %v2449 = vsub.s32 0, %v2448
        %v2450 = vrot.slane %v2437, %v2449
        %v2451 = vlaneseq
        %v2452 = vshrl.u32 %v2451, 7
        %v2453 = vsub.s32 0, %v2452
        %v2454 = vrot.slane %v2444, %v2453
        %v2455 = vlaneseq
        %v2456 = vshrl.u32 %v2455, 7
        %v2457 = vsub.s32 0, %v2456
        %v2458 = vrot.slane %v2445, %v2457
        %v2459 = vlaneseq
        %v2460 = vshrl.u32 %v2459, 7
        %v2461 = vsub.s32 0, %v2460
        %v2462 = vrot.slane %v2446, %v2461
        %v2467 = vmax.f32 %v2153, 0.0
        %v2468 = vmax.f32 %v2154, 0.0
        %v2469 = vmax.f32 %v2155, 0.0
        %v2470 = vmax.f32 %v2156, 0.0
        %v2471 = vmax.f32 %v2157, 0.0
        %v2472 = vmax.f32 %v2158, 0.0
        %v2473 = vmax.f32 %v2159, 0.0
        %v2474 = vmax.f32 %v2160, 0.0
        %v2475 = vmax.f32 %v2161, 0.0
        %v2476 = vmax.f32 %v2162, 0.0
        %v2477 = vmax.f32 %v2163, 0.0
        %v2478 = vmax.f32 %v2164, 0.0
        %v2479 = vmax.f32 %v2165, 0.0
        %v2480 = vmax.f32 %v2166, 0.0
        %v2481 = vmax.f32 %v2167, 0.0
        %v2482 = vmax.f32 %v2168, 0.0
        %v2483 = vpack.c.bf16 %v2468, %v2467
        %v2484 = vpack.c.bf16 %v2470, %v2469
        %v2485 = vpack.c.bf16 %v2472, %v2471
        %v2486 = vpack.c.bf16 %v2474, %v2473
        %v2487 = vpack.c.bf16 %v2476, %v2475
        %v2488 = vpack.c.bf16 %v2478, %v2477
        %v2489 = vpack.c.bf16 %v2480, %v2479
        %v2490 = vpack.c.bf16 %v2482, %v2481
        %s2491 = scalar_lea.vmem %s5, 16
        %v2492 = vld [vmem:[%s2491] sm:$0xf]
        %v2493 = vld [vmem:[%s2491 + $0x4] sm:$0xf]
        %v2494 = vld [vmem:[%s2491 + $0x8] sm:$0xf]
        %v2495 = vld [vmem:[%s2491 + $0xc] sm:$0xf]
        %v2500 = vunpack.c.l.b16 %v2492
        %v2501 = vunpack.c.l.b16 %v2493
        %v2502 = vunpack.c.l.b16 %v2494
        %v2503 = vunpack.c.l.b16 %v2495
        %v2504 = vpack.c.b16 %v2501, %v2500
        %v2505 = vpack.c.b16 %v2503, %v2502
        %v2509 = vsel %vm1077, %v2483, 0
        %v2512 = vsel %vm1077, %v2484, 0
        %v2515 = vsel %vm1077, %v2485, 0
        %v2518 = vsel %vm1077, %v2486, 0
        %v2521 = vsel %vm1077, %v2487, 0
        %v2524 = vsel %vm1077, %v2488, 0
        %v2527 = vsel %vm1077, %v2489, 0
        %v2530 = vsel %vm1077, %v2490, 0
        %2532 = vmatprep.subr.bf16.mxu0 0
        %2533 = vmatpush1.bf16.msra.mxu0 0
        %2534 = vmatprep.subr.bf16.mxu0 0
        %2535 = vmatpush1.bf16.msra.mxu0 0
        %2536 = vmatprep.subr.bf16.mxu0 0
        %2537 = vmatpush1.bf16.msra.mxu0 0
        %2538 = vmatprep.subr.bf16.mxu0 0
        %2539 = vmatpush1.bf16.msra.mxu0 0
        %2540 = vmatprep.subr.bf16.mxu0 0
        %2541 = vmatpush1.bf16.msra.mxu0 0
        %2542 = vmatprep.subr.bf16.mxu0 0
        %2543 = vmatpush1.bf16.msra.mxu0 0
        %2544 = vmatprep.subr.bf16.mxu0 0
        %2545 = vmatpush1.bf16.msra.mxu0 %v2505
        %2546 = vmatprep.subr.bf16.mxu0 0
        %2547 = vmatpush1.bf16.msra.mxu0 %v2504
        %2548 = vmatprep.subr.bf16.mxu0 0
        %2549 = vmatpush2.bf16.msra.mxu0 0
        %2550 = vmatprep.subr.bf16.mxu0 0
        %2551 = vmatpush2.bf16.msra.mxu0 0
        %2552 = vmatprep.subr.bf16.mxu0 0
        %2553 = vmatpush2.bf16.msra.mxu0 0
        %2554 = vmatprep.subr.bf16.mxu0 0
        %2555 = vmatpush2.bf16.msra.mxu0 0
        %2556 = vmatprep.subr.bf16.mxu0 0
        %2557 = vmatpush2.bf16.msra.mxu0 0
        %2558 = vmatprep.subr.bf16.mxu0 0
        %2559 = vmatpush2.bf16.msra.mxu0 0
        %2560 = vmatprep.subr.bf16.mxu0 0
        %2561 = vmatpush2.bf16.msra.mxu0 0
        %2562 = vmatprep.subr.bf16.mxu0 0
        %2563 = vmatpush2.bf16.msra.mxu0 0
        %2564 = vmatprep.mubr.bf16.mxu0 0
        %2565 = vmatmul.mubr.bf16.gmra.mxu0 %v2509
        %v2566 = vpop.f32.mrf.mxu0
        %v2567 = vadd.f32 %v2405, %v2566
        %v2568 = vpop.f32.mrf.mxu0
        %v2569 = vpop.f32.mrf.mxu0
        %v2570 = vadd.f32 %v2405, %v2569
        %v2571 = vpop.f32.mrf.mxu0
        %2572 = vmatprep.mubr.bf16.mxu0 0
        %2573 = vmatmul.mubr.bf16.gmra.mxu0 %v2512
        %v2574 = vpop.f32.mrf.mxu0
        %v2575 = vadd.f32 %v2405, %v2574
        %v2576 = vpop.f32.mrf.mxu0
        %v2577 = vpop.f32.mrf.mxu0
        %v2578 = vadd.f32 %v2405, %v2577
        %v2579 = vpop.f32.mrf.mxu0
        %2580 = vmatprep.mubr.bf16.mxu0 0
        %2581 = vmatmul.mubr.bf16.gmra.mxu0 %v2515
        %v2582 = vpop.f32.mrf.mxu0
        %v2583 = vadd.f32 %v2409, %v2582
        %v2584 = vpop.f32.mrf.mxu0
        %v2585 = vpop.f32.mrf.mxu0
        %v2586 = vadd.f32 %v2409, %v2585
        %v2587 = vpop.f32.mrf.mxu0
        %2588 = vmatprep.mubr.bf16.mxu0 0
        %2589 = vmatmul.mubr.bf16.gmra.mxu0 %v2518
        %v2590 = vpop.f32.mrf.mxu0
        %v2591 = vadd.f32 %v2409, %v2590
        %v2592 = vpop.f32.mrf.mxu0
        %v2593 = vpop.f32.mrf.mxu0
        %v2594 = vadd.f32 %v2409, %v2593
        %v2595 = vpop.f32.mrf.mxu0
        %2596 = vmatprep.mubr.bf16.mxu0 0
        %2597 = vmatmul.mubr.bf16.gmra.mxu0 %v2521
        %v2598 = vpop.f32.mrf.mxu0
        %v2599 = vadd.f32 %v2413, %v2598
        %v2600 = vpop.f32.mrf.mxu0
        %v2601 = vpop.f32.mrf.mxu0
        %v2602 = vadd.f32 %v2413, %v2601
        %v2603 = vpop.f32.mrf.mxu0
        %2604 = vmatprep.mubr.bf16.mxu0 0
        %2605 = vmatmul.mubr.bf16.gmra.mxu0 %v2524
        %v2606 = vpop.f32.mrf.mxu0
        %v2607 = vadd.f32 %v2413, %v2606
        %v2608 = vpop.f32.mrf.mxu0
        %v2609 = vpop.f32.mrf.mxu0
        %v2610 = vadd.f32 %v2413, %v2609
        %v2611 = vpop.f32.mrf.mxu0
        %2612 = vmatprep.mubr.bf16.mxu0 0
        %2613 = vmatmul.mubr.bf16.gmra.mxu0 %v2527
        %v2614 = vpop.f32.mrf.mxu0
        %v2615 = vadd.f32 %v2417, %v2614
        %v2616 = vpop.f32.mrf.mxu0
        %v2617 = vpop.f32.mrf.mxu0
        %v2618 = vadd.f32 %v2417, %v2617
        %v2619 = vpop.f32.mrf.mxu0
        %2620 = vmatprep.mubr.bf16.mxu0 0
        %2621 = vmatmul.mubr.bf16.gmra.mxu0 %v2530
        %v2622 = vpop.f32.mrf.mxu0
        %v2623 = vadd.f32 %v2417, %v2622
        %v2624 = vpop.f32.mrf.mxu0
        %v2625 = vpop.f32.mrf.mxu0
        %v2626 = vadd.f32 %v2417, %v2625
        %v2627 = vpop.f32.mrf.mxu0
        %2628 = vdwg.mxu0
        %v2629 = vld [vmem:[#allocation7 + $0x2] sm:$0x1]
        %v2630 = vlaneseq
        %v2631 = vshrl.u32 %v2630, 7
        %v2632 = vsub.s32 0, %v2631
        %v2633 = vrot.slane %v2629, %v2632
        %v2634 = vadd.f32 %v2567, %v2633
        %v2635 = vadd.f32 %v2570, %v2633
        %v2636 = vadd.f32 %v2575, %v2633
        %v2637 = vadd.f32 %v2578, %v2633
        %v2638 = vadd.f32 %v2583, %v2633
        %v2639 = vadd.f32 %v2586, %v2633
        %v2640 = vadd.f32 %v2591, %v2633
        %v2641 = vadd.f32 %v2594, %v2633
        %v2642 = vadd.f32 %v2599, %v2633
        %v2643 = vadd.f32 %v2602, %v2633
        %v2644 = vadd.f32 %v2607, %v2633
        %v2645 = vadd.f32 %v2610, %v2633
        %v2646 = vadd.f32 %v2615, %v2633
        %v2647 = vadd.f32 %v2618, %v2633
        %v2648 = vadd.f32 %v2623, %v2633
        %v2649 = vadd.f32 %v2626, %v2633
        %v2650 = vmax.f32 %v2634, 0.0
        %v2651 = vmax.f32 %v2635, 0.0
        %v2652 = vmax.f32 %v2636, 0.0
        %v2653 = vmax.f32 %v2637, 0.0
        %v2654 = vmax.f32 %v2638, 0.0
        %v2655 = vmax.f32 %v2639, 0.0
        %v2656 = vmax.f32 %v2640, 0.0
        %v2657 = vmax.f32 %v2641, 0.0
        %v2658 = vmax.f32 %v2642, 0.0
        %v2659 = vmax.f32 %v2643, 0.0
        %v2660 = vmax.f32 %v2644, 0.0
        %v2661 = vmax.f32 %v2645, 0.0
        %v2662 = vmax.f32 %v2646, 0.0
        %v2663 = vmax.f32 %v2647, 0.0
        %v2664 = vmax.f32 %v2648, 0.0
        %v2665 = vmax.f32 %v2649, 0.0
        %v2666 = vpack.c.bf16 %v2651, %v2650
        %v2667 = vpack.c.bf16 %v2653, %v2652
        %v2668 = vpack.c.bf16 %v2655, %v2654
        %v2669 = vpack.c.bf16 %v2657, %v2656
        %v2670 = vpack.c.bf16 %v2659, %v2658
        %v2671 = vpack.c.bf16 %v2661, %v2660
        %v2672 = vpack.c.bf16 %v2663, %v2662
        %v2673 = vpack.c.bf16 %v2665, %v2664
        %s2674 = scalar_lea.vmem %s8, 32
        %v2675 = vld [vmem:[%s2674] sm:$0xf]
        %v2676 = vld [vmem:[%s2674 + $0x4] sm:$0xf]
        %v2677 = vld [vmem:[%s2674 + $0x8] sm:$0xf]
        %v2678 = vld [vmem:[%s2674 + $0xc] sm:$0xf]
        %v2679 = vld [vmem:[%s9 + $0x2] sm:$0x1]
        %v2680 = vlaneseq
        %v2681 = vshrl.u32 %v2680, 7
        %v2682 = vsub.s32 0, %v2681
        %v2683 = vrot.slane %v2679, %v2682
        %v2688 = vunpack.c.l.b16 %v2675
        %v2689 = vunpack.c.l.b16 %v2676
        %v2690 = vunpack.c.l.b16 %v2677
        %v2691 = vunpack.c.l.b16 %v2678
        %v2692 = vpack.c.b16 %v2689, %v2688
        %v2693 = vpack.c.b16 %v2691, %v2690
        %v2697 = vsel %vm1077, %v2666, 0
        %v2700 = vsel %vm1077, %v2667, 0
        %v2703 = vsel %vm1077, %v2668, 0
        %v2706 = vsel %vm1077, %v2669, 0
        %v2709 = vsel %vm1077, %v2670, 0
        %v2712 = vsel %vm1077, %v2671, 0
        %v2715 = vsel %vm1077, %v2672, 0
        %v2718 = vsel %vm1077, %v2673, 0
        %2720 = vmatprep.subr.bf16.mxu0 0
        %2721 = vmatpush1.bf16.msra.mxu0 0
        %2722 = vmatprep.subr.bf16.mxu0 0
        %2723 = vmatpush1.bf16.msra.mxu0 0
        %2724 = vmatprep.subr.bf16.mxu0 0
        %2725 = vmatpush1.bf16.msra.mxu0 0
        %2726 = vmatprep.subr.bf16.mxu0 0
        %2727 = vmatpush1.bf16.msra.mxu0 0
        %2728 = vmatprep.subr.bf16.mxu0 0
        %2729 = vmatpush1.bf16.msra.mxu0 0
        %2730 = vmatprep.subr.bf16.mxu0 0
        %2731 = vmatpush1.bf16.msra.mxu0 0
        %2732 = vmatprep.subr.bf16.mxu0 0
        %2733 = vmatpush1.bf16.msra.mxu0 %v2693
        %2734 = vmatprep.subr.bf16.mxu0 0
        %2735 = vmatpush1.bf16.msra.mxu0 %v2692
        %2736 = vmatprep.subr.bf16.mxu0 0
        %2737 = vmatpush2.bf16.msra.mxu0 0
        %2738 = vmatprep.subr.bf16.mxu0 0
        %2739 = vmatpush2.bf16.msra.mxu0 0
        %2740 = vmatprep.subr.bf16.mxu0 0
        %2741 = vmatpush2.bf16.msra.mxu0 0
        %2742 = vmatprep.subr.bf16.mxu0 0
        %2743 = vmatpush2.bf16.msra.mxu0 0
        %2744 = vmatprep.subr.bf16.mxu0 0
        %2745 = vmatpush2.bf16.msra.mxu0 0
        %2746 = vmatprep.subr.bf16.mxu0 0
        %2747 = vmatpush2.bf16.msra.mxu0 0
        %2748 = vmatprep.subr.bf16.mxu0 0
        %2749 = vmatpush2.bf16.msra.mxu0 0
        %2750 = vmatprep.subr.bf16.mxu0 0
        %2751 = vmatpush2.bf16.msra.mxu0 0
        %2752 = vmatprep.mubr.bf16.mxu0 0
        %2753 = vmatmul.mubr.bf16.gmra.mxu0 %v2697
        %v2754 = vpop.f32.mrf.mxu0
        %v2755 = vadd.f32 %v2683, %v2754
        %v2756 = vpop.f32.mrf.mxu0
        %v2757 = vpop.f32.mrf.mxu0
        %v2758 = vadd.f32 %v2683, %v2757
        %v2759 = vpop.f32.mrf.mxu0
        %2760 = vmatprep.mubr.bf16.mxu0 0
        %2761 = vmatmul.mubr.bf16.gmra.mxu0 %v2700
        %v2762 = vpop.f32.mrf.mxu0
        %v2763 = vadd.f32 %v2683, %v2762
        %v2764 = vpop.f32.mrf.mxu0
        %v2765 = vpop.f32.mrf.mxu0
        %v2766 = vadd.f32 %v2683, %v2765
        %v2767 = vpop.f32.mrf.mxu0
        %2768 = vmatprep.mubr.bf16.mxu0 0
        %2769 = vmatmul.mubr.bf16.gmra.mxu0 %v2703
        %v2770 = vpop.f32.mrf.mxu0
        %v2771 = vadd.f32 %v2683, %v2770
        %v2772 = vpop.f32.mrf.mxu0
        %v2773 = vpop.f32.mrf.mxu0
        %v2774 = vadd.f32 %v2683, %v2773
        %v2775 = vpop.f32.mrf.mxu0
        %2776 = vmatprep.mubr.bf16.mxu0 0
        %2777 = vmatmul.mubr.bf16.gmra.mxu0 %v2706
        %v2778 = vpop.f32.mrf.mxu0
        %v2779 = vadd.f32 %v2683, %v2778
        %v2780 = vpop.f32.mrf.mxu0
        %v2781 = vpop.f32.mrf.mxu0
        %v2782 = vadd.f32 %v2683, %v2781
        %v2783 = vpop.f32.mrf.mxu0
        %2784 = vmatprep.mubr.bf16.mxu0 0
        %2785 = vmatmul.mubr.bf16.gmra.mxu0 %v2709
        %v2786 = vpop.f32.mrf.mxu0
        %v2787 = vadd.f32 %v2683, %v2786
        %v2788 = vpop.f32.mrf.mxu0
        %v2789 = vpop.f32.mrf.mxu0
        %v2790 = vadd.f32 %v2683, %v2789
        %v2791 = vpop.f32.mrf.mxu0
        %2792 = vmatprep.mubr.bf16.mxu0 0
        %2793 = vmatmul.mubr.bf16.gmra.mxu0 %v2712
        %v2794 = vpop.f32.mrf.mxu0
        %v2795 = vadd.f32 %v2683, %v2794
        %v2796 = vpop.f32.mrf.mxu0
        %v2797 = vpop.f32.mrf.mxu0
        %v2798 = vadd.f32 %v2683, %v2797
        %v2799 = vpop.f32.mrf.mxu0
        %2800 = vmatprep.mubr.bf16.mxu0 0
        %2801 = vmatmul.mubr.bf16.gmra.mxu0 %v2715
        %v2802 = vpop.f32.mrf.mxu0
        %v2803 = vadd.f32 %v2683, %v2802
        %v2804 = vpop.f32.mrf.mxu0
        %v2805 = vpop.f32.mrf.mxu0
        %v2806 = vadd.f32 %v2683, %v2805
        %v2807 = vpop.f32.mrf.mxu0
        %2808 = vmatprep.mubr.bf16.mxu0 0
        %2809 = vmatmul.mubr.bf16.gmra.mxu0 %v2718
        %v2810 = vpop.f32.mrf.mxu0
        %v2811 = vadd.f32 %v2683, %v2810
        %v2812 = vpop.f32.mrf.mxu0
        %v2813 = vpop.f32.mrf.mxu0
        %v2814 = vadd.f32 %v2683, %v2813
        %v2815 = vpop.f32.mrf.mxu0
        %2816 = vdwg.mxu0
        %v2817 = vpack.c.bf16 %v2154, %v2153
        %v2818 = vpack.c.bf16 %v2156, %v2155
        %v2819 = vpack.c.bf16 %v2158, %v2157
        %v2820 = vpack.c.bf16 %v2160, %v2159
        %v2821 = vpack.c.bf16 %v2162, %v2161
        %v2822 = vpack.c.bf16 %v2164, %v2163
        %v2823 = vpack.c.bf16 %v2166, %v2165
        %v2824 = vpack.c.bf16 %v2168, %v2167
        %s2825 = scalar_lea.vmem %s10, 16
        %v2826 = vld [vmem:[%s2825] sm:$0xf]
        %v2827 = vld [vmem:[%s2825 + $0x4] sm:$0xf]
        %v2828 = vld [vmem:[%s2825 + $0x8] sm:$0xf]
        %v2829 = vld [vmem:[%s2825 + $0xc] sm:$0xf]
        %v2834 = vunpack.c.l.b16 %v2826
        %v2835 = vunpack.c.l.b16 %v2827
        %v2836 = vunpack.c.l.b16 %v2828
        %v2837 = vunpack.c.l.b16 %v2829
        %v2838 = vpack.c.b16 %v2835, %v2834
        %v2839 = vpack.c.b16 %v2837, %v2836
        %v2843 = vsel %vm1077, %v2817, 0
        %v2846 = vsel %vm1077, %v2818, 0
        %v2849 = vsel %vm1077, %v2819, 0
        %v2852 = vsel %vm1077, %v2820, 0
        %v2855 = vsel %vm1077, %v2821, 0
        %v2858 = vsel %vm1077, %v2822, 0
        %v2861 = vsel %vm1077, %v2823, 0
        %v2864 = vsel %vm1077, %v2824, 0
        %2866 = vmatprep.subr.bf16.mxu0 0
        %2867 = vmatpush1.bf16.msra.mxu0 0
        %2868 = vmatprep.subr.bf16.mxu0 0
        %2869 = vmatpush1.bf16.msra.mxu0 0
        %2870 = vmatprep.subr.bf16.mxu0 0
        %2871 = vmatpush1.bf16.msra.mxu0 0
        %2872 = vmatprep.subr.bf16.mxu0 0
        %2873 = vmatpush1.bf16.msra.mxu0 0
        %2874 = vmatprep.subr.bf16.mxu0 0
        %2875 = vmatpush1.bf16.msra.mxu0 0
        %2876 = vmatprep.subr.bf16.mxu0 0
        %2877 = vmatpush1.bf16.msra.mxu0 0
        %2878 = vmatprep.subr.bf16.mxu0 0
        %2879 = vmatpush1.bf16.msra.mxu0 %v2839
        %2880 = vmatprep.subr.bf16.mxu0 0
        %2881 = vmatpush1.bf16.msra.mxu0 %v2838
        %2882 = vmatprep.subr.bf16.mxu0 0
        %2883 = vmatpush2.bf16.msra.mxu0 0
        %2884 = vmatprep.subr.bf16.mxu0 0
        %2885 = vmatpush2.bf16.msra.mxu0 0
        %2886 = vmatprep.subr.bf16.mxu0 0
        %2887 = vmatpush2.bf16.msra.mxu0 0
        %2888 = vmatprep.subr.bf16.mxu0 0
        %2889 = vmatpush2.bf16.msra.mxu0 0
        %2890 = vmatprep.subr.bf16.mxu0 0
        %2891 = vmatpush2.bf16.msra.mxu0 0
        %2892 = vmatprep.subr.bf16.mxu0 0
        %2893 = vmatpush2.bf16.msra.mxu0 0
        %2894 = vmatprep.subr.bf16.mxu0 0
        %2895 = vmatpush2.bf16.msra.mxu0 0
        %2896 = vmatprep.subr.bf16.mxu0 0
        %2897 = vmatpush2.bf16.msra.mxu0 0
        %2898 = vmatprep.mubr.bf16.mxu0 0
        %2899 = vmatmul.mubr.bf16.gmra.mxu0 %v2843
        %v2900 = vpop.f32.mrf.mxu0
        %v2901 = vadd.f32 %v2450, %v2900
        %v2902 = vpop.f32.mrf.mxu0
        %v2903 = vpop.f32.mrf.mxu0
        %v2904 = vadd.f32 %v2450, %v2903
        %v2905 = vpop.f32.mrf.mxu0
        %2906 = vmatprep.mubr.bf16.mxu0 0
        %2907 = vmatmul.mubr.bf16.gmra.mxu0 %v2846
        %v2908 = vpop.f32.mrf.mxu0
        %v2909 = vadd.f32 %v2450, %v2908
        %v2910 = vpop.f32.mrf.mxu0
        %v2911 = vpop.f32.mrf.mxu0
        %v2912 = vadd.f32 %v2450, %v2911
        %v2913 = vpop.f32.mrf.mxu0
        %2914 = vmatprep.mubr.bf16.mxu0 0
        %2915 = vmatmul.mubr.bf16.gmra.mxu0 %v2849
        %v2916 = vpop.f32.mrf.mxu0
        %v2917 = vadd.f32 %v2454, %v2916
        %v2918 = vpop.f32.mrf.mxu0
        %v2919 = vpop.f32.mrf.mxu0
        %v2920 = vadd.f32 %v2454, %v2919
        %v2921 = vpop.f32.mrf.mxu0
        %2922 = vmatprep.mubr.bf16.mxu0 0
        %2923 = vmatmul.mubr.bf16.gmra.mxu0 %v2852
        %v2924 = vpop.f32.mrf.mxu0
        %v2925 = vadd.f32 %v2454, %v2924
        %v2926 = vpop.f32.mrf.mxu0
        %v2927 = vpop.f32.mrf.mxu0
        %v2928 = vadd.f32 %v2454, %v2927
        %v2929 = vpop.f32.mrf.mxu0
        %2930 = vmatprep.mubr.bf16.mxu0 0
        %2931 = vmatmul.mubr.bf16.gmra.mxu0 %v2855
        %v2932 = vpop.f32.mrf.mxu0
        %v2933 = vadd.f32 %v2458, %v2932
        %v2934 = vpop.f32.mrf.mxu0
        %v2935 = vpop.f32.mrf.mxu0
        %v2936 = vadd.f32 %v2458, %v2935
        %v2937 = vpop.f32.mrf.mxu0
        %2938 = vmatprep.mubr.bf16.mxu0 0
        %2939 = vmatmul.mubr.bf16.gmra.mxu0 %v2858
        %v2940 = vpop.f32.mrf.mxu0
        %v2941 = vadd.f32 %v2458, %v2940
        %v2942 = vpop.f32.mrf.mxu0
        %v2943 = vpop.f32.mrf.mxu0
        %v2944 = vadd.f32 %v2458, %v2943
        %v2945 = vpop.f32.mrf.mxu0
        %2946 = vmatprep.mubr.bf16.mxu0 0
        %2947 = vmatmul.mubr.bf16.gmra.mxu0 %v2861
        %v2948 = vpop.f32.mrf.mxu0
        %v2949 = vadd.f32 %v2462, %v2948
        %v2950 = vpop.f32.mrf.mxu0
        %v2951 = vpop.f32.mrf.mxu0
        %v2952 = vadd.f32 %v2462, %v2951
        %v2953 = vpop.f32.mrf.mxu0
        %2954 = vmatprep.mubr.bf16.mxu0 0
        %2955 = vmatmul.mubr.bf16.gmra.mxu0 %v2864
        %v2956 = vpop.f32.mrf.mxu0
        %v2957 = vadd.f32 %v2462, %v2956
        %v2958 = vpop.f32.mrf.mxu0
        %v2959 = vpop.f32.mrf.mxu0
        %v2960 = vadd.f32 %v2462, %v2959
        %v2961 = vpop.f32.mrf.mxu0
        %2962 = vdwg.mxu0
        %v2963 = vadd.f32 %v2901, %v2755
        %v2964 = vadd.f32 %v2904, %v2758
        %v2965 = vadd.f32 %v2909, %v2763
        %v2966 = vadd.f32 %v2912, %v2766
        %v2967 = vadd.f32 %v2917, %v2771
        %v2968 = vadd.f32 %v2920, %v2774
        %v2969 = vadd.f32 %v2925, %v2779
        %v2970 = vadd.f32 %v2928, %v2782
        %v2971 = vadd.f32 %v2933, %v2787
        %v2972 = vadd.f32 %v2936, %v2790
        %v2973 = vadd.f32 %v2941, %v2795
        %v2974 = vadd.f32 %v2944, %v2798
        %v2975 = vadd.f32 %v2949, %v2803
        %v2976 = vadd.f32 %v2952, %v2806
        %v2977 = vadd.f32 %v2957, %v2811
        %v2978 = vadd.f32 %v2960, %v2814
        %v2979 = vsel %vm1077, %v2963, -inf
        %v2980 = vsel %vm1077, %v2964, -inf
        %v2981 = vmax.f32 %v2979, %v2980
        %v2982 = vsel %vm1077, %v2965, -inf
        %v2983 = vmax.f32 %v2981, %v2982
        %v2984 = vsel %vm1077, %v2966, -inf
        %v2985 = vmax.f32 %v2983, %v2984
        %v2986 = vrot.slane %v2985, 4
        %v2987 = vmax.f32 %v2985, %v2986
        %v2988 = vrot.slane %v2987, 2
        %v2989 = vmax.f32 %v2987, %v2988
        %v2990 = vrot.slane %v2989, 1
        %v2991 = vmax.f32 %v2989, %v2990
        %v2992 = vsel %vm1077, %v2967, -inf
        %v2993 = vsel %vm1077, %v2968, -inf
        %v2994 = vmax.f32 %v2992, %v2993
        %v2995 = vsel %vm1077, %v2969, -inf
        %v2996 = vmax.f32 %v2994, %v2995
        %v2997 = vsel %vm1077, %v2970, -inf
        %v2998 = vmax.f32 %v2996, %v2997
        %v2999 = vrot.slane %v2998, 4
        %v3000 = vmax.f32 %v2998, %v2999
        %v3001 = vrot.slane %v3000, 2
        %v3002 = vmax.f32 %v3000, %v3001
        %v3003 = vrot.slane %v3002, 1
        %v3004 = vmax.f32 %v3002, %v3003
        %v3005 = vsel %vm1077, %v2971, -inf
        %v3006 = vsel %vm1077, %v2972, -inf
        %v3007 = vmax.f32 %v3005, %v3006
        %v3008 = vsel %vm1077, %v2973, -inf
        %v3009 = vmax.f32 %v3007, %v3008
        %v3010 = vsel %vm1077, %v2974, -inf
        %v3011 = vmax.f32 %v3009, %v3010
        %v3012 = vrot.slane %v3011, 4
        %v3013 = vmax.f32 %v3011, %v3012
        %v3014 = vrot.slane %v3013, 2
        %v3015 = vmax.f32 %v3013, %v3014
        %v3016 = vrot.slane %v3015, 1
        %v3017 = vmax.f32 %v3015, %v3016
        %v3018 = vsel %vm1077, %v2975, -inf
        %v3019 = vsel %vm1077, %v2976, -inf
        %v3020 = vmax.f32 %v3018, %v3019
        %v3021 = vsel %vm1077, %v2977, -inf
        %v3022 = vmax.f32 %v3020, %v3021
        %v3023 = vsel %vm1077, %v2978, -inf
        %v3024 = vmax.f32 %v3022, %v3023
        %v3025 = vrot.slane %v3024, 4
        %v3026 = vmax.f32 %v3024, %v3025
        %v3027 = vrot.slane %v3026, 2
        %v3028 = vmax.f32 %v3026, %v3027
        %v3029 = vrot.slane %v3028, 1
        %v3030 = vmax.f32 %v3028, %v3029
        %v3031 = vmax.f32 %v2991, 0.0
        %v3032 = vmax.f32 %v3004, 0.0
        %v3033 = vmax.f32 %v3017, 0.0
        %v3034 = vmax.f32 %v3030, 0.0
        %v3035 = vpack.c.bf16 %v3031, %v3031
        %v3036 = vpack.c.bf16 %v3032, %v3032
        %v3037 = vpack.c.bf16 %v3033, %v3033
        %v3038 = vpack.c.bf16 %v3034, %v3034
        %s3039 = scalar_lea.vmem %s6, 32
        %v3040 = vld [vmem:[%s3039] sm:$0xf]
        %v3041 = vld [vmem:[%s3039 + $0x4] sm:$0xf]
        %v3042 = vld [vmem:[%s3039 + $0x8] sm:$0xf]
        %v3043 = vld [vmem:[%s3039 + $0xc] sm:$0xf]
        %v3048 = vunpack.c.l.b16 %v3035
        %v3049 = vunpack.c.l.b16 %v3036
        %v3050 = vunpack.c.l.b16 %v3037
        %v3051 = vunpack.c.l.b16 %v3038
        %v3052 = vsel %vm1432, %v3049, %v3048
        %v3053 = vsel %vm1434, %v3050, %v3052
        %v3054 = vsel %vm1436, %v3051, %v3053
        %v3055 = vpack.c.b16 %v3054, %v3054
        %v3060 = vunpack.c.l.b16 %v3040
        %v3061 = vunpack.c.l.b16 %v3041
        %v3062 = vunpack.c.l.b16 %v3042
        %v3063 = vunpack.c.l.b16 %v3043
        %v3064 = vpack.c.b16 %v3061, %v3060
        %v3065 = vpack.c.b16 %v3063, %v3062
        %v3069 = vsel %vm1077, %v3055, 0
        %3071 = vmatprep.subr.bf16.mxu0 0
        %3072 = vmatpush1.bf16.msra.mxu0 0
        %3073 = vmatprep.subr.bf16.mxu0 0
        %3074 = vmatpush1.bf16.msra.mxu0 0
        %3075 = vmatprep.subr.bf16.mxu0 0
        %3076 = vmatpush1.bf16.msra.mxu0 0
        %3077 = vmatprep.subr.bf16.mxu0 0
        %3078 = vmatpush1.bf16.msra.mxu0 0
        %3079 = vmatprep.subr.bf16.mxu0 0
        %3080 = vmatpush1.bf16.msra.mxu0 0
        %3081 = vmatprep.subr.bf16.mxu0 0
        %3082 = vmatpush1.bf16.msra.mxu0 0
        %3083 = vmatprep.subr.bf16.mxu0 0
        %3084 = vmatpush1.bf16.msra.mxu0 %v3065
        %3085 = vmatprep.subr.bf16.mxu0 0
        %3086 = vmatpush1.bf16.msra.mxu0 %v3064
        %3087 = vmatprep.subr.bf16.mxu0 0
        %3088 = vmatpush2.bf16.msra.mxu0 0
        %3089 = vmatprep.subr.bf16.mxu0 0
        %3090 = vmatpush2.bf16.msra.mxu0 0
        %3091 = vmatprep.subr.bf16.mxu0 0
        %3092 = vmatpush2.bf16.msra.mxu0 0
        %3093 = vmatprep.subr.bf16.mxu0 0
        %3094 = vmatpush2.bf16.msra.mxu0 0
        %3095 = vmatprep.subr.bf16.mxu0 0
        %3096 = vmatpush2.bf16.msra.mxu0 0
        %3097 = vmatprep.subr.bf16.mxu0 0
        %3098 = vmatpush2.bf16.msra.mxu0 0
        %3099 = vmatprep.subr.bf16.mxu0 0
        %3100 = vmatpush2.bf16.msra.mxu0 0
        %3101 = vmatprep.subr.bf16.mxu0 0
        %3102 = vmatpush2.bf16.msra.mxu0 0
        %3103 = vmatprep.mubr.bf16.mxu0 0
        %3104 = vmatmul.mubr.bf16.gmra.mxu0 %v3069
        %v3105 = vpop.f32.mrf.mxu0
        %v3106 = vadd.f32 0.0, %v3105
        %v3107 = vpop.f32.mrf.mxu0
        %v3108 = vpop.f32.mrf.mxu0
        %v3109 = vpop.f32.mrf.mxu0
        %3110 = vdwg.mxu0
        %v3111 = vpack.c.bf16 %v2991, %v2991
        %v3112 = vpack.c.bf16 %v3004, %v3004
        %v3113 = vpack.c.bf16 %v3017, %v3017
        %v3114 = vpack.c.bf16 %v3030, %v3030
        %s3115 = scalar_lea.vmem %s11, 32
        %v3116 = vld [vmem:[%s3115] sm:$0xf]
        %v3117 = vld [vmem:[%s3115 + $0x4] sm:$0xf]
        %v3118 = vld [vmem:[%s3115 + $0x8] sm:$0xf]
        %v3119 = vld [vmem:[%s3115 + $0xc] sm:$0xf]
        %v3124 = vunpack.c.l.b16 %v3111
        %v3125 = vunpack.c.l.b16 %v3112
        %v3126 = vunpack.c.l.b16 %v3113
        %v3127 = vunpack.c.l.b16 %v3114
        %v3128 = vsel %vm1432, %v3125, %v3124
        %v3129 = vsel %vm1434, %v3126, %v3128
        %v3130 = vsel %vm1436, %v3127, %v3129
        %v3131 = vpack.c.b16 %v3130, %v3130
        %v3136 = vunpack.c.l.b16 %v3116
        %v3137 = vunpack.c.l.b16 %v3117
        %v3138 = vunpack.c.l.b16 %v3118
        %v3139 = vunpack.c.l.b16 %v3119
        %v3140 = vpack.c.b16 %v3137, %v3136
        %v3141 = vpack.c.b16 %v3139, %v3138
        %v3145 = vsel %vm1077, %v3131, 0
        %3147 = vmatprep.subr.bf16.mxu0 0
        %3148 = vmatpush1.bf16.msra.mxu0 0
        %3149 = vmatprep.subr.bf16.mxu0 0
        %3150 = vmatpush1.bf16.msra.mxu0 0
        %3151 = vmatprep.subr.bf16.mxu0 0
        %3152 = vmatpush1.bf16.msra.mxu0 0
        %3153 = vmatprep.subr.bf16.mxu0 0
        %3154 = vmatpush1.bf16.msra.mxu0 0
        %3155 = vmatprep.subr.bf16.mxu0 0
        %3156 = vmatpush1.bf16.msra.mxu0 0
        %3157 = vmatprep.subr.bf16.mxu0 0
        %3158 = vmatpush1.bf16.msra.mxu0 0
        %3159 = vmatprep.subr.bf16.mxu0 0
        %3160 = vmatpush1.bf16.msra.mxu0 %v3141
        %3161 = vmatprep.subr.bf16.mxu0 0
        %3162 = vmatpush1.bf16.msra.mxu0 %v3140
        %3163 = vmatprep.subr.bf16.mxu0 0
        %3164 = vmatpush2.bf16.msra.mxu0 0
        %3165 = vmatprep.subr.bf16.mxu0 0
        %3166 = vmatpush2.bf16.msra.mxu0 0
        %3167 = vmatprep.subr.bf16.mxu0 0
        %3168 = vmatpush2.bf16.msra.mxu0 0
        %3169 = vmatprep.subr.bf16.mxu0 0
        %3170 = vmatpush2.bf16.msra.mxu0 0
        %3171 = vmatprep.subr.bf16.mxu0 0
        %3172 = vmatpush2.bf16.msra.mxu0 0
        %3173 = vmatprep.subr.bf16.mxu0 0
        %3174 = vmatpush2.bf16.msra.mxu0 0
        %3175 = vmatprep.subr.bf16.mxu0 0
        %3176 = vmatpush2.bf16.msra.mxu0 0
        %3177 = vmatprep.subr.bf16.mxu0 0
        %3178 = vmatpush2.bf16.msra.mxu0 0
        %3179 = vmatprep.mubr.bf16.mxu0 0
        %3180 = vmatmul.mubr.bf16.gmra.mxu0 %v3145
        %v3181 = vpop.f32.mrf.mxu0
        %v3182 = vadd.f32 0.0, %v3181
        %v3183 = vpop.f32.mrf.mxu0
        %v3184 = vpop.f32.mrf.mxu0
        %v3185 = vpop.f32.mrf.mxu0
        %3186 = vdwg.mxu0
        %v3189 = vunpack.c.l.s4 1966171168
        %v3190 = vunpack.c.0.s8 %v3189
        %v3191 = vlaneseq
        %v3192 = vshrl.u32 %v3191, 7
        %v3193 = vsub.s32 %v3190, %v3192
        %v3194 = vrot.slane %v3106, %v3193
        %v3195 = vcombine.high %v3194, %v3194
        %v3197 = vunpack.c.l.s4 1966171168
        %v3198 = vunpack.c.0.s8 %v3197
        %v3199 = vlaneseq
        %v3200 = vshrl.u32 %v3199, 7
        %v3201 = vsub.s32 %v3198, %v3200
        %v3202 = vrot.slane %v3194, %v3201
        %v3204 = vunpack.c.l.s4 1966171168
        %v3205 = vunpack.c.0.s8 %v3204
        %v3206 = vlaneseq
        %v3207 = vshrl.u32 %v3206, 7
        %v3208 = vsub.s32 %v3205, %v3207
        %v3209 = vrot.slane %v3195, %v3208
        %v3210 = vcombine.high %v3202, %v3202
        %v3211 = vcombine.high %v3209, %v3209
        %v3212 = vlaneseq
        %v3213 = vshrl.u32 %v3212, 7
        %v3214 = vsub.s32 0, %v3213
        %v3215 = vrot.slane %v3202, %v3214
        %v3216 = vlaneseq
        %v3217 = vshrl.u32 %v3216, 7
        %v3218 = vsub.s32 0, %v3217
        %v3219 = vrot.slane %v3209, %v3218
        %v3220 = vlaneseq
        %v3221 = vshrl.u32 %v3220, 7
        %v3222 = vsub.s32 0, %v3221
        %v3223 = vrot.slane %v3210, %v3222
        %v3224 = vlaneseq
        %v3225 = vshrl.u32 %v3224, 7
        %v3226 = vsub.s32 0, %v3225
        %v3227 = vrot.slane %v3211, %v3226
        %v3234 = vunpack.c.l.s4 1966171168
        %v3235 = vunpack.c.0.s8 %v3234
        %v3236 = vlaneseq
        %v3237 = vshrl.u32 %v3236, 7
        %v3238 = vsub.s32 %v3235, %v3237
        %v3239 = vrot.slane %v3182, %v3238
        %v3240 = vcombine.high %v3239, %v3239
        %v3242 = vunpack.c.l.s4 1966171168
        %v3243 = vunpack.c.0.s8 %v3242
        %v3244 = vlaneseq
        %v3245 = vshrl.u32 %v3244, 7
        %v3246 = vsub.s32 %v3243, %v3245
        %v3247 = vrot.slane %v3239, %v3246
        %v3249 = vunpack.c.l.s4 1966171168
        %v3250 = vunpack.c.0.s8 %v3249
        %v3251 = vlaneseq
        %v3252 = vshrl.u32 %v3251, 7
        %v3253 = vsub.s32 %v3250, %v3252
        %v3254 = vrot.slane %v3240, %v3253
        %v3255 = vcombine.high %v3247, %v3247
        %v3256 = vcombine.high %v3254, %v3254
        %v3257 = vlaneseq
        %v3258 = vshrl.u32 %v3257, 7
        %v3259 = vsub.s32 0, %v3258
        %v3260 = vrot.slane %v3247, %v3259
        %v3261 = vlaneseq
        %v3262 = vshrl.u32 %v3261, 7
        %v3263 = vsub.s32 0, %v3262
        %v3264 = vrot.slane %v3254, %v3263
        %v3265 = vlaneseq
        %v3266 = vshrl.u32 %v3265, 7
        %v3267 = vsub.s32 0, %v3266
        %v3268 = vrot.slane %v3255, %v3267
        %v3269 = vlaneseq
        %v3270 = vshrl.u32 %v3269, 7
        %v3271 = vsub.s32 0, %v3270
        %v3272 = vrot.slane %v3256, %v3271
        %v3277 = vmax.f32 %v2963, 0.0
        %v3278 = vmax.f32 %v2964, 0.0
        %v3279 = vmax.f32 %v2965, 0.0
        %v3280 = vmax.f32 %v2966, 0.0
        %v3281 = vmax.f32 %v2967, 0.0
        %v3282 = vmax.f32 %v2968, 0.0
        %v3283 = vmax.f32 %v2969, 0.0
        %v3284 = vmax.f32 %v2970, 0.0
        %v3285 = vmax.f32 %v2971, 0.0
        %v3286 = vmax.f32 %v2972, 0.0
        %v3287 = vmax.f32 %v2973, 0.0
        %v3288 = vmax.f32 %v2974, 0.0
        %v3289 = vmax.f32 %v2975, 0.0
        %v3290 = vmax.f32 %v2976, 0.0
        %v3291 = vmax.f32 %v2977, 0.0
        %v3292 = vmax.f32 %v2978, 0.0
        %v3293 = vpack.c.bf16 %v3278, %v3277
        %v3294 = vpack.c.bf16 %v3280, %v3279
        %v3295 = vpack.c.bf16 %v3282, %v3281
        %v3296 = vpack.c.bf16 %v3284, %v3283
        %v3297 = vpack.c.bf16 %v3286, %v3285
        %v3298 = vpack.c.bf16 %v3288, %v3287
        %v3299 = vpack.c.bf16 %v3290, %v3289
        %v3300 = vpack.c.bf16 %v3292, %v3291
        %s3301 = scalar_lea.vmem %s5, 32
        %v3302 = vld [vmem:[%s3301] sm:$0xf]
        %v3303 = vld [vmem:[%s3301 + $0x4] sm:$0xf]
        %v3304 = vld [vmem:[%s3301 + $0x8] sm:$0xf]
        %v3305 = vld [vmem:[%s3301 + $0xc] sm:$0xf]
        %v3310 = vunpack.c.l.b16 %v3302
        %v3311 = vunpack.c.l.b16 %v3303
        %v3312 = vunpack.c.l.b16 %v3304
        %v3313 = vunpack.c.l.b16 %v3305
        %v3314 = vpack.c.b16 %v3311, %v3310
        %v3315 = vpack.c.b16 %v3313, %v3312
        %v3319 = vsel %vm1077, %v3293, 0
        %v3322 = vsel %vm1077, %v3294, 0
        %v3325 = vsel %vm1077, %v3295, 0
        %v3328 = vsel %vm1077, %v3296, 0
        %v3331 = vsel %vm1077, %v3297, 0
        %v3334 = vsel %vm1077, %v3298, 0
        %v3337 = vsel %vm1077, %v3299, 0
        %v3340 = vsel %vm1077, %v3300, 0
        %3342 = vmatprep.subr.bf16.mxu0 0
        %3343 = vmatpush1.bf16.msra.mxu0 0
        %3344 = vmatprep.subr.bf16.mxu0 0
        %3345 = vmatpush1.bf16.msra.mxu0 0
        %3346 = vmatprep.subr.bf16.mxu0 0
        %3347 = vmatpush1.bf16.msra.mxu0 0
        %3348 = vmatprep.subr.bf16.mxu0 0
        %3349 = vmatpush1.bf16.msra.mxu0 0
        %3350 = vmatprep.subr.bf16.mxu0 0
        %3351 = vmatpush1.bf16.msra.mxu0 0
        %3352 = vmatprep.subr.bf16.mxu0 0
        %3353 = vmatpush1.bf16.msra.mxu0 0
        %3354 = vmatprep.subr.bf16.mxu0 0
        %3355 = vmatpush1.bf16.msra.mxu0 %v3315
        %3356 = vmatprep.subr.bf16.mxu0 0
        %3357 = vmatpush1.bf16.msra.mxu0 %v3314
        %3358 = vmatprep.subr.bf16.mxu0 0
        %3359 = vmatpush2.bf16.msra.mxu0 0
        %3360 = vmatprep.subr.bf16.mxu0 0
        %3361 = vmatpush2.bf16.msra.mxu0 0
        %3362 = vmatprep.subr.bf16.mxu0 0
        %3363 = vmatpush2.bf16.msra.mxu0 0
        %3364 = vmatprep.subr.bf16.mxu0 0
        %3365 = vmatpush2.bf16.msra.mxu0 0
        %3366 = vmatprep.subr.bf16.mxu0 0
        %3367 = vmatpush2.bf16.msra.mxu0 0
        %3368 = vmatprep.subr.bf16.mxu0 0
        %3369 = vmatpush2.bf16.msra.mxu0 0
        %3370 = vmatprep.subr.bf16.mxu0 0
        %3371 = vmatpush2.bf16.msra.mxu0 0
        %3372 = vmatprep.subr.bf16.mxu0 0
        %3373 = vmatpush2.bf16.msra.mxu0 0
        %3374 = vmatprep.mubr.bf16.mxu0 0
        %3375 = vmatmul.mubr.bf16.gmra.mxu0 %v3319
        %v3376 = vpop.f32.mrf.mxu0
        %v3377 = vadd.f32 %v3215, %v3376
        %v3378 = vpop.f32.mrf.mxu0
        %v3379 = vpop.f32.mrf.mxu0
        %v3380 = vadd.f32 %v3215, %v3379
        %v3381 = vpop.f32.mrf.mxu0
        %3382 = vmatprep.mubr.bf16.mxu0 0
        %3383 = vmatmul.mubr.bf16.gmra.mxu0 %v3322
        %v3384 = vpop.f32.mrf.mxu0
        %v3385 = vadd.f32 %v3215, %v3384
        %v3386 = vpop.f32.mrf.mxu0
        %v3387 = vpop.f32.mrf.mxu0
        %v3388 = vadd.f32 %v3215, %v3387
        %v3389 = vpop.f32.mrf.mxu0
        %3390 = vmatprep.mubr.bf16.mxu0 0
        %3391 = vmatmul.mubr.bf16.gmra.mxu0 %v3325
        %v3392 = vpop.f32.mrf.mxu0
        %v3393 = vadd.f32 %v3219, %v3392
        %v3394 = vpop.f32.mrf.mxu0
        %v3395 = vpop.f32.mrf.mxu0
        %v3396 = vadd.f32 %v3219, %v3395
        %v3397 = vpop.f32.mrf.mxu0
        %3398 = vmatprep.mubr.bf16.mxu0 0
        %3399 = vmatmul.mubr.bf16.gmra.mxu0 %v3328
        %v3400 = vpop.f32.mrf.mxu0
        %v3401 = vadd.f32 %v3219, %v3400
        %v3402 = vpop.f32.mrf.mxu0
        %v3403 = vpop.f32.mrf.mxu0
        %v3404 = vadd.f32 %v3219, %v3403
        %v3405 = vpop.f32.mrf.mxu0
        %3406 = vmatprep.mubr.bf16.mxu0 0
        %3407 = vmatmul.mubr.bf16.gmra.mxu0 %v3331
        %v3408 = vpop.f32.mrf.mxu0
        %v3409 = vadd.f32 %v3223, %v3408
        %v3410 = vpop.f32.mrf.mxu0
        %v3411 = vpop.f32.mrf.mxu0
        %v3412 = vadd.f32 %v3223, %v3411
        %v3413 = vpop.f32.mrf.mxu0
        %3414 = vmatprep.mubr.bf16.mxu0 0
        %3415 = vmatmul.mubr.bf16.gmra.mxu0 %v3334
        %v3416 = vpop.f32.mrf.mxu0
        %v3417 = vadd.f32 %v3223, %v3416
        %v3418 = vpop.f32.mrf.mxu0
        %v3419 = vpop.f32.mrf.mxu0
        %v3420 = vadd.f32 %v3223, %v3419
        %v3421 = vpop.f32.mrf.mxu0
        %3422 = vmatprep.mubr.bf16.mxu0 0
        %3423 = vmatmul.mubr.bf16.gmra.mxu0 %v3337
        %v3424 = vpop.f32.mrf.mxu0
        %v3425 = vadd.f32 %v3227, %v3424
        %v3426 = vpop.f32.mrf.mxu0
        %v3427 = vpop.f32.mrf.mxu0
        %v3428 = vadd.f32 %v3227, %v3427
        %v3429 = vpop.f32.mrf.mxu0
        %3430 = vmatprep.mubr.bf16.mxu0 0
        %3431 = vmatmul.mubr.bf16.gmra.mxu0 %v3340
        %v3432 = vpop.f32.mrf.mxu0
        %v3433 = vadd.f32 %v3227, %v3432
        %v3434 = vpop.f32.mrf.mxu0
        %v3435 = vpop.f32.mrf.mxu0
        %v3436 = vadd.f32 %v3227, %v3435
        %v3437 = vpop.f32.mrf.mxu0
        %3438 = vdwg.mxu0
        %v3439 = vld [vmem:[#allocation7 + $0x3] sm:$0x1]
        %v3440 = vlaneseq
        %v3441 = vshrl.u32 %v3440, 7
        %v3442 = vsub.s32 0, %v3441
        %v3443 = vrot.slane %v3439, %v3442
        %v3444 = vadd.f32 %v3377, %v3443
        %v3445 = vadd.f32 %v3380, %v3443
        %v3446 = vadd.f32 %v3385, %v3443
        %v3447 = vadd.f32 %v3388, %v3443
        %v3448 = vadd.f32 %v3393, %v3443
        %v3449 = vadd.f32 %v3396, %v3443
        %v3450 = vadd.f32 %v3401, %v3443
        %v3451 = vadd.f32 %v3404, %v3443
        %v3452 = vadd.f32 %v3409, %v3443
        %v3453 = vadd.f32 %v3412, %v3443
        %v3454 = vadd.f32 %v3417, %v3443
        %v3455 = vadd.f32 %v3420, %v3443
        %v3456 = vadd.f32 %v3425, %v3443
        %v3457 = vadd.f32 %v3428, %v3443
        %v3458 = vadd.f32 %v3433, %v3443
        %v3459 = vadd.f32 %v3436, %v3443
        %v3460 = vmax.f32 %v3444, 0.0
        %v3461 = vmax.f32 %v3445, 0.0
        %v3462 = vmax.f32 %v3446, 0.0
        %v3463 = vmax.f32 %v3447, 0.0
        %v3464 = vmax.f32 %v3448, 0.0
        %v3465 = vmax.f32 %v3449, 0.0
        %v3466 = vmax.f32 %v3450, 0.0
        %v3467 = vmax.f32 %v3451, 0.0
        %v3468 = vmax.f32 %v3452, 0.0
        %v3469 = vmax.f32 %v3453, 0.0
        %v3470 = vmax.f32 %v3454, 0.0
        %v3471 = vmax.f32 %v3455, 0.0
        %v3472 = vmax.f32 %v3456, 0.0
        %v3473 = vmax.f32 %v3457, 0.0
        %v3474 = vmax.f32 %v3458, 0.0
        %v3475 = vmax.f32 %v3459, 0.0
        %v3476 = vpack.c.bf16 %v3461, %v3460
        %v3477 = vpack.c.bf16 %v3463, %v3462
        %v3478 = vpack.c.bf16 %v3465, %v3464
        %v3479 = vpack.c.bf16 %v3467, %v3466
        %v3480 = vpack.c.bf16 %v3469, %v3468
        %v3481 = vpack.c.bf16 %v3471, %v3470
        %v3482 = vpack.c.bf16 %v3473, %v3472
        %v3483 = vpack.c.bf16 %v3475, %v3474
        %s3484 = scalar_lea.vmem %s8, 48
        %v3485 = vld [vmem:[%s3484] sm:$0xf]
        %v3486 = vld [vmem:[%s3484 + $0x4] sm:$0xf]
        %v3487 = vld [vmem:[%s3484 + $0x8] sm:$0xf]
        %v3488 = vld [vmem:[%s3484 + $0xc] sm:$0xf]
        %v3489 = vld [vmem:[%s9 + $0x3] sm:$0x1]
        %v3490 = vlaneseq
        %v3491 = vshrl.u32 %v3490, 7
        %v3492 = vsub.s32 0, %v3491
        %v3493 = vrot.slane %v3489, %v3492
        %v3498 = vunpack.c.l.b16 %v3485
        %v3499 = vunpack.c.l.b16 %v3486
        %v3500 = vunpack.c.l.b16 %v3487
        %v3501 = vunpack.c.l.b16 %v3488
        %v3502 = vpack.c.b16 %v3499, %v3498
        %v3503 = vpack.c.b16 %v3501, %v3500
        %v3507 = vsel %vm1077, %v3476, 0
        %v3510 = vsel %vm1077, %v3477, 0
        %v3513 = vsel %vm1077, %v3478, 0
        %v3516 = vsel %vm1077, %v3479, 0
        %v3519 = vsel %vm1077, %v3480, 0
        %v3522 = vsel %vm1077, %v3481, 0
        %v3525 = vsel %vm1077, %v3482, 0
        %v3528 = vsel %vm1077, %v3483, 0
        %3530 = vmatprep.subr.bf16.mxu0 0
        %3531 = vmatpush1.bf16.msra.mxu0 0
        %3532 = vmatprep.subr.bf16.mxu0 0
        %3533 = vmatpush1.bf16.msra.mxu0 0
        %3534 = vmatprep.subr.bf16.mxu0 0
        %3535 = vmatpush1.bf16.msra.mxu0 0
        %3536 = vmatprep.subr.bf16.mxu0 0
        %3537 = vmatpush1.bf16.msra.mxu0 0
        %3538 = vmatprep.subr.bf16.mxu0 0
        %3539 = vmatpush1.bf16.msra.mxu0 0
        %3540 = vmatprep.subr.bf16.mxu0 0
        %3541 = vmatpush1.bf16.msra.mxu0 0
        %3542 = vmatprep.subr.bf16.mxu0 0
        %3543 = vmatpush1.bf16.msra.mxu0 %v3503
        %3544 = vmatprep.subr.bf16.mxu0 0
        %3545 = vmatpush1.bf16.msra.mxu0 %v3502
        %3546 = vmatprep.subr.bf16.mxu0 0
        %3547 = vmatpush2.bf16.msra.mxu0 0
        %3548 = vmatprep.subr.bf16.mxu0 0
        %3549 = vmatpush2.bf16.msra.mxu0 0
        %3550 = vmatprep.subr.bf16.mxu0 0
        %3551 = vmatpush2.bf16.msra.mxu0 0
        %3552 = vmatprep.subr.bf16.mxu0 0
        %3553 = vmatpush2.bf16.msra.mxu0 0
        %3554 = vmatprep.subr.bf16.mxu0 0
        %3555 = vmatpush2.bf16.msra.mxu0 0
        %3556 = vmatprep.subr.bf16.mxu0 0
        %3557 = vmatpush2.bf16.msra.mxu0 0
        %3558 = vmatprep.subr.bf16.mxu0 0
        %3559 = vmatpush2.bf16.msra.mxu0 0
        %3560 = vmatprep.subr.bf16.mxu0 0
        %3561 = vmatpush2.bf16.msra.mxu0 0
        %3562 = vmatprep.mubr.bf16.mxu0 0
        %3563 = vmatmul.mubr.bf16.gmra.mxu0 %v3507
        %v3564 = vpop.f32.mrf.mxu0
        %v3565 = vadd.f32 %v3493, %v3564
        %v3566 = vpop.f32.mrf.mxu0
        %v3567 = vpop.f32.mrf.mxu0
        %v3568 = vadd.f32 %v3493, %v3567
        %v3569 = vpop.f32.mrf.mxu0
        %3570 = vmatprep.mubr.bf16.mxu0 0
        %3571 = vmatmul.mubr.bf16.gmra.mxu0 %v3510
        %v3572 = vpop.f32.mrf.mxu0
        %v3573 = vadd.f32 %v3493, %v3572
        %v3574 = vpop.f32.mrf.mxu0
        %v3575 = vpop.f32.mrf.mxu0
        %v3576 = vadd.f32 %v3493, %v3575
        %v3577 = vpop.f32.mrf.mxu0
        %3578 = vmatprep.mubr.bf16.mxu0 0
        %3579 = vmatmul.mubr.bf16.gmra.mxu0 %v3513
        %v3580 = vpop.f32.mrf.mxu0
        %v3581 = vadd.f32 %v3493, %v3580
        %v3582 = vpop.f32.mrf.mxu0
        %v3583 = vpop.f32.mrf.mxu0
        %v3584 = vadd.f32 %v3493, %v3583
        %v3585 = vpop.f32.mrf.mxu0
        %3586 = vmatprep.mubr.bf16.mxu0 0
        %3587 = vmatmul.mubr.bf16.gmra.mxu0 %v3516
        %v3588 = vpop.f32.mrf.mxu0
        %v3589 = vadd.f32 %v3493, %v3588
        %v3590 = vpop.f32.mrf.mxu0
        %v3591 = vpop.f32.mrf.mxu0
        %v3592 = vadd.f32 %v3493, %v3591
        %v3593 = vpop.f32.mrf.mxu0
        %3594 = vmatprep.mubr.bf16.mxu0 0
        %3595 = vmatmul.mubr.bf16.gmra.mxu0 %v3519
        %v3596 = vpop.f32.mrf.mxu0
        %v3597 = vadd.f32 %v3493, %v3596
        %v3598 = vpop.f32.mrf.mxu0
        %v3599 = vpop.f32.mrf.mxu0
        %v3600 = vadd.f32 %v3493, %v3599
        %v3601 = vpop.f32.mrf.mxu0
        %3602 = vmatprep.mubr.bf16.mxu0 0
        %3603 = vmatmul.mubr.bf16.gmra.mxu0 %v3522
        %v3604 = vpop.f32.mrf.mxu0
        %v3605 = vadd.f32 %v3493, %v3604
        %v3606 = vpop.f32.mrf.mxu0
        %v3607 = vpop.f32.mrf.mxu0
        %v3608 = vadd.f32 %v3493, %v3607
        %v3609 = vpop.f32.mrf.mxu0
        %3610 = vmatprep.mubr.bf16.mxu0 0
        %3611 = vmatmul.mubr.bf16.gmra.mxu0 %v3525
        %v3612 = vpop.f32.mrf.mxu0
        %v3613 = vadd.f32 %v3493, %v3612
        %v3614 = vpop.f32.mrf.mxu0
        %v3615 = vpop.f32.mrf.mxu0
        %v3616 = vadd.f32 %v3493, %v3615
        %v3617 = vpop.f32.mrf.mxu0
        %3618 = vmatprep.mubr.bf16.mxu0 0
        %3619 = vmatmul.mubr.bf16.gmra.mxu0 %v3528
        %v3620 = vpop.f32.mrf.mxu0
        %v3621 = vadd.f32 %v3493, %v3620
        %v3622 = vpop.f32.mrf.mxu0
        %v3623 = vpop.f32.mrf.mxu0
        %v3624 = vadd.f32 %v3493, %v3623
        %v3625 = vpop.f32.mrf.mxu0
        %3626 = vdwg.mxu0
        %v3627 = vpack.c.bf16 %v2964, %v2963
        %v3628 = vpack.c.bf16 %v2966, %v2965
        %v3629 = vpack.c.bf16 %v2968, %v2967
        %v3630 = vpack.c.bf16 %v2970, %v2969
        %v3631 = vpack.c.bf16 %v2972, %v2971
        %v3632 = vpack.c.bf16 %v2974, %v2973
        %v3633 = vpack.c.bf16 %v2976, %v2975
        %v3634 = vpack.c.bf16 %v2978, %v2977
        %s3635 = scalar_lea.vmem %s10, 32
        %v3636 = vld [vmem:[%s3635] sm:$0xf]
        %v3637 = vld [vmem:[%s3635 + $0x4] sm:$0xf]
        %v3638 = vld [vmem:[%s3635 + $0x8] sm:$0xf]
        %v3639 = vld [vmem:[%s3635 + $0xc] sm:$0xf]
        %v3644 = vunpack.c.l.b16 %v3636
        %v3645 = vunpack.c.l.b16 %v3637
        %v3646 = vunpack.c.l.b16 %v3638
        %v3647 = vunpack.c.l.b16 %v3639
        %v3648 = vpack.c.b16 %v3645, %v3644
        %v3649 = vpack.c.b16 %v3647, %v3646
        %v3653 = vsel %vm1077, %v3627, 0
        %v3656 = vsel %vm1077, %v3628, 0
        %v3659 = vsel %vm1077, %v3629, 0
        %v3662 = vsel %vm1077, %v3630, 0
        %v3665 = vsel %vm1077, %v3631, 0
        %v3668 = vsel %vm1077, %v3632, 0
        %v3671 = vsel %vm1077, %v3633, 0
        %v3674 = vsel %vm1077, %v3634, 0
        %3676 = vmatprep.subr.bf16.mxu0 0
        %3677 = vmatpush1.bf16.msra.mxu0 0
        %3678 = vmatprep.subr.bf16.mxu0 0
        %3679 = vmatpush1.bf16.msra.mxu0 0
        %3680 = vmatprep.subr.bf16.mxu0 0
        %3681 = vmatpush1.bf16.msra.mxu0 0
        %3682 = vmatprep.subr.bf16.mxu0 0
        %3683 = vmatpush1.bf16.msra.mxu0 0
        %3684 = vmatprep.subr.bf16.mxu0 0
        %3685 = vmatpush1.bf16.msra.mxu0 0
        %3686 = vmatprep.subr.bf16.mxu0 0
        %3687 = vmatpush1.bf16.msra.mxu0 0
        %3688 = vmatprep.subr.bf16.mxu0 0
        %3689 = vmatpush1.bf16.msra.mxu0 %v3649
        %3690 = vmatprep.subr.bf16.mxu0 0
        %3691 = vmatpush1.bf16.msra.mxu0 %v3648
        %3692 = vmatprep.subr.bf16.mxu0 0
        %3693 = vmatpush2.bf16.msra.mxu0 0
        %3694 = vmatprep.subr.bf16.mxu0 0
        %3695 = vmatpush2.bf16.msra.mxu0 0
        %3696 = vmatprep.subr.bf16.mxu0 0
        %3697 = vmatpush2.bf16.msra.mxu0 0
        %3698 = vmatprep.subr.bf16.mxu0 0
        %3699 = vmatpush2.bf16.msra.mxu0 0
        %3700 = vmatprep.subr.bf16.mxu0 0
        %3701 = vmatpush2.bf16.msra.mxu0 0
        %3702 = vmatprep.subr.bf16.mxu0 0
        %3703 = vmatpush2.bf16.msra.mxu0 0
        %3704 = vmatprep.subr.bf16.mxu0 0
        %3705 = vmatpush2.bf16.msra.mxu0 0
        %3706 = vmatprep.subr.bf16.mxu0 0
        %3707 = vmatpush2.bf16.msra.mxu0 0
        %3708 = vmatprep.mubr.bf16.mxu0 0
        %3709 = vmatmul.mubr.bf16.gmra.mxu0 %v3653
        %v3710 = vpop.f32.mrf.mxu0
        %v3711 = vadd.f32 %v3260, %v3710
        %v3712 = vpop.f32.mrf.mxu0
        %v3713 = vpop.f32.mrf.mxu0
        %v3714 = vadd.f32 %v3260, %v3713
        %v3715 = vpop.f32.mrf.mxu0
        %3716 = vmatprep.mubr.bf16.mxu0 0
        %3717 = vmatmul.mubr.bf16.gmra.mxu0 %v3656
        %v3718 = vpop.f32.mrf.mxu0
        %v3719 = vadd.f32 %v3260, %v3718
        %v3720 = vpop.f32.mrf.mxu0
        %v3721 = vpop.f32.mrf.mxu0
        %v3722 = vadd.f32 %v3260, %v3721
        %v3723 = vpop.f32.mrf.mxu0
        %3724 = vmatprep.mubr.bf16.mxu0 0
        %3725 = vmatmul.mubr.bf16.gmra.mxu0 %v3659
        %v3726 = vpop.f32.mrf.mxu0
        %v3727 = vadd.f32 %v3264, %v3726
        %v3728 = vpop.f32.mrf.mxu0
        %v3729 = vpop.f32.mrf.mxu0
        %v3730 = vadd.f32 %v3264, %v3729
        %v3731 = vpop.f32.mrf.mxu0
        %3732 = vmatprep.mubr.bf16.mxu0 0
        %3733 = vmatmul.mubr.bf16.gmra.mxu0 %v3662
        %v3734 = vpop.f32.mrf.mxu0
        %v3735 = vadd.f32 %v3264, %v3734
        %v3736 = vpop.f32.mrf.mxu0
        %v3737 = vpop.f32.mrf.mxu0
        %v3738 = vadd.f32 %v3264, %v3737
        %v3739 = vpop.f32.mrf.mxu0
        %3740 = vmatprep.mubr.bf16.mxu0 0
        %3741 = vmatmul.mubr.bf16.gmra.mxu0 %v3665
        %v3742 = vpop.f32.mrf.mxu0
        %v3743 = vadd.f32 %v3268, %v3742
        %v3744 = vpop.f32.mrf.mxu0
        %v3745 = vpop.f32.mrf.mxu0
        %v3746 = vadd.f32 %v3268, %v3745
        %v3747 = vpop.f32.mrf.mxu0
        %3748 = vmatprep.mubr.bf16.mxu0 0
        %3749 = vmatmul.mubr.bf16.gmra.mxu0 %v3668
        %v3750 = vpop.f32.mrf.mxu0
        %v3751 = vadd.f32 %v3268, %v3750
        %v3752 = vpop.f32.mrf.mxu0
        %v3753 = vpop.f32.mrf.mxu0
        %v3754 = vadd.f32 %v3268, %v3753
        %v3755 = vpop.f32.mrf.mxu0
        %3756 = vmatprep.mubr.bf16.mxu0 0
        %3757 = vmatmul.mubr.bf16.gmra.mxu0 %v3671
        %v3758 = vpop.f32.mrf.mxu0
        %v3759 = vadd.f32 %v3272, %v3758
        %v3760 = vpop.f32.mrf.mxu0
        %v3761 = vpop.f32.mrf.mxu0
        %v3762 = vadd.f32 %v3272, %v3761
        %v3763 = vpop.f32.mrf.mxu0
        %3764 = vmatprep.mubr.bf16.mxu0 0
        %3765 = vmatmul.mubr.bf16.gmra.mxu0 %v3674
        %v3766 = vpop.f32.mrf.mxu0
        %v3767 = vadd.f32 %v3272, %v3766
        %v3768 = vpop.f32.mrf.mxu0
        %v3769 = vpop.f32.mrf.mxu0
        %v3770 = vadd.f32 %v3272, %v3769
        %v3771 = vpop.f32.mrf.mxu0
        %3772 = vdwg.mxu0
        %v3773 = vadd.f32 %v3711, %v3565
        %v3774 = vadd.f32 %v3714, %v3568
        %v3775 = vadd.f32 %v3719, %v3573
        %v3776 = vadd.f32 %v3722, %v3576
        %v3777 = vadd.f32 %v3727, %v3581
        %v3778 = vadd.f32 %v3730, %v3584
        %v3779 = vadd.f32 %v3735, %v3589
        %v3780 = vadd.f32 %v3738, %v3592
        %v3781 = vadd.f32 %v3743, %v3597
        %v3782 = vadd.f32 %v3746, %v3600
        %v3783 = vadd.f32 %v3751, %v3605
        %v3784 = vadd.f32 %v3754, %v3608
        %v3785 = vadd.f32 %v3759, %v3613
        %v3786 = vadd.f32 %v3762, %v3616
        %v3787 = vadd.f32 %v3767, %v3621
        %v3788 = vadd.f32 %v3770, %v3624
        %v3789 = vsel %vm1077, %v3773, -inf
        %v3790 = vsel %vm1077, %v3774, -inf
        %v3791 = vmax.f32 %v3789, %v3790
        %v3792 = vsel %vm1077, %v3775, -inf
        %v3793 = vmax.f32 %v3791, %v3792
        %v3794 = vsel %vm1077, %v3776, -inf
        %v3795 = vmax.f32 %v3793, %v3794
        %v3796 = vrot.slane %v3795, 4
        %v3797 = vmax.f32 %v3795, %v3796
        %v3798 = vrot.slane %v3797, 2
        %v3799 = vmax.f32 %v3797, %v3798
        %v3800 = vrot.slane %v3799, 1
        %v3801 = vmax.f32 %v3799, %v3800
        %v3802 = vsel %vm1077, %v3777, -inf
        %v3803 = vsel %vm1077, %v3778, -inf
        %v3804 = vmax.f32 %v3802, %v3803
        %v3805 = vsel %vm1077, %v3779, -inf
        %v3806 = vmax.f32 %v3804, %v3805
        %v3807 = vsel %vm1077, %v3780, -inf
        %v3808 = vmax.f32 %v3806, %v3807
        %v3809 = vrot.slane %v3808, 4
        %v3810 = vmax.f32 %v3808, %v3809
        %v3811 = vrot.slane %v3810, 2
        %v3812 = vmax.f32 %v3810, %v3811
        %v3813 = vrot.slane %v3812, 1
        %v3814 = vmax.f32 %v3812, %v3813
        %v3815 = vsel %vm1077, %v3781, -inf
        %v3816 = vsel %vm1077, %v3782, -inf
        %v3817 = vmax.f32 %v3815, %v3816
        %v3818 = vsel %vm1077, %v3783, -inf
        %v3819 = vmax.f32 %v3817, %v3818
        %v3820 = vsel %vm1077, %v3784, -inf
        %v3821 = vmax.f32 %v3819, %v3820
        %v3822 = vrot.slane %v3821, 4
        %v3823 = vmax.f32 %v3821, %v3822
        %v3824 = vrot.slane %v3823, 2
        %v3825 = vmax.f32 %v3823, %v3824
        %v3826 = vrot.slane %v3825, 1
        %v3827 = vmax.f32 %v3825, %v3826
        %v3828 = vsel %vm1077, %v3785, -inf
        %v3829 = vsel %vm1077, %v3786, -inf
        %v3830 = vmax.f32 %v3828, %v3829
        %v3831 = vsel %vm1077, %v3787, -inf
        %v3832 = vmax.f32 %v3830, %v3831
        %v3833 = vsel %vm1077, %v3788, -inf
        %v3834 = vmax.f32 %v3832, %v3833
        %v3835 = vrot.slane %v3834, 4
        %v3836 = vmax.f32 %v3834, %v3835
        %v3837 = vrot.slane %v3836, 2
        %v3838 = vmax.f32 %v3836, %v3837
        %v3839 = vrot.slane %v3838, 1
        %v3840 = vmax.f32 %v3838, %v3839
        %v3841 = vmax.f32 %v3801, 0.0
        %v3842 = vmax.f32 %v3814, 0.0
        %v3843 = vmax.f32 %v3827, 0.0
        %v3844 = vmax.f32 %v3840, 0.0
        %v3845 = vpack.c.bf16 %v3841, %v3841
        %v3846 = vpack.c.bf16 %v3842, %v3842
        %v3847 = vpack.c.bf16 %v3843, %v3843
        %v3848 = vpack.c.bf16 %v3844, %v3844
        %s3849 = scalar_lea.vmem %s6, 48
        %v3850 = vld [vmem:[%s3849] sm:$0xf]
        %v3851 = vld [vmem:[%s3849 + $0x4] sm:$0xf]
        %v3852 = vld [vmem:[%s3849 + $0x8] sm:$0xf]
        %v3853 = vld [vmem:[%s3849 + $0xc] sm:$0xf]
        %v3858 = vunpack.c.l.b16 %v3845
        %v3859 = vunpack.c.l.b16 %v3846
        %v3860 = vunpack.c.l.b16 %v3847
        %v3861 = vunpack.c.l.b16 %v3848
        %v3862 = vsel %vm1432, %v3859, %v3858
        %v3863 = vsel %vm1434, %v3860, %v3862
        %v3864 = vsel %vm1436, %v3861, %v3863
        %v3865 = vpack.c.b16 %v3864, %v3864
        %v3870 = vunpack.c.l.b16 %v3850
        %v3871 = vunpack.c.l.b16 %v3851
        %v3872 = vunpack.c.l.b16 %v3852
        %v3873 = vunpack.c.l.b16 %v3853
        %v3874 = vpack.c.b16 %v3871, %v3870
        %v3875 = vpack.c.b16 %v3873, %v3872
        %v3879 = vsel %vm1077, %v3865, 0
        %3881 = vmatprep.subr.bf16.mxu0 0
        %3882 = vmatpush1.bf16.msra.mxu0 0
        %3883 = vmatprep.subr.bf16.mxu0 0
        %3884 = vmatpush1.bf16.msra.mxu0 0
        %3885 = vmatprep.subr.bf16.mxu0 0
        %3886 = vmatpush1.bf16.msra.mxu0 0
        %3887 = vmatprep.subr.bf16.mxu0 0
        %3888 = vmatpush1.bf16.msra.mxu0 0
        %3889 = vmatprep.subr.bf16.mxu0 0
        %3890 = vmatpush1.bf16.msra.mxu0 0
        %3891 = vmatprep.subr.bf16.mxu0 0
        %3892 = vmatpush1.bf16.msra.mxu0 0
        %3893 = vmatprep.subr.bf16.mxu0 0
        %3894 = vmatpush1.bf16.msra.mxu0 %v3875
        %3895 = vmatprep.subr.bf16.mxu0 0
        %3896 = vmatpush1.bf16.msra.mxu0 %v3874
        %3897 = vmatprep.subr.bf16.mxu0 0
        %3898 = vmatpush2.bf16.msra.mxu0 0
        %3899 = vmatprep.subr.bf16.mxu0 0
        %3900 = vmatpush2.bf16.msra.mxu0 0
        %3901 = vmatprep.subr.bf16.mxu0 0
        %3902 = vmatpush2.bf16.msra.mxu0 0
        %3903 = vmatprep.subr.bf16.mxu0 0
        %3904 = vmatpush2.bf16.msra.mxu0 0
        %3905 = vmatprep.subr.bf16.mxu0 0
        %3906 = vmatpush2.bf16.msra.mxu0 0
        %3907 = vmatprep.subr.bf16.mxu0 0
        %3908 = vmatpush2.bf16.msra.mxu0 0
        %3909 = vmatprep.subr.bf16.mxu0 0
        %3910 = vmatpush2.bf16.msra.mxu0 0
        %3911 = vmatprep.subr.bf16.mxu0 0
        %3912 = vmatpush2.bf16.msra.mxu0 0
        %3913 = vmatprep.mubr.bf16.mxu0 0
        %3914 = vmatmul.mubr.bf16.gmra.mxu0 %v3879
        %v3915 = vpop.f32.mrf.mxu0
        %v3916 = vadd.f32 0.0, %v3915
        %v3917 = vpop.f32.mrf.mxu0
        %v3918 = vpop.f32.mrf.mxu0
        %v3919 = vpop.f32.mrf.mxu0
        %3920 = vdwg.mxu0
        %v3921 = vpack.c.bf16 %v3801, %v3801
        %v3922 = vpack.c.bf16 %v3814, %v3814
        %v3923 = vpack.c.bf16 %v3827, %v3827
        %v3924 = vpack.c.bf16 %v3840, %v3840
        %s3925 = scalar_lea.vmem %s11, 48
        %v3926 = vld [vmem:[%s3925] sm:$0xf]
        %v3927 = vld [vmem:[%s3925 + $0x4] sm:$0xf]
        %v3928 = vld [vmem:[%s3925 + $0x8] sm:$0xf]
        %v3929 = vld [vmem:[%s3925 + $0xc] sm:$0xf]
        %v3934 = vunpack.c.l.b16 %v3921
        %v3935 = vunpack.c.l.b16 %v3922
        %v3936 = vunpack.c.l.b16 %v3923
        %v3937 = vunpack.c.l.b16 %v3924
        %v3938 = vsel %vm1432, %v3935, %v3934
        %v3939 = vsel %vm1434, %v3936, %v3938
        %v3940 = vsel %vm1436, %v3937, %v3939
        %v3941 = vpack.c.b16 %v3940, %v3940
        %v3946 = vunpack.c.l.b16 %v3926
        %v3947 = vunpack.c.l.b16 %v3927
        %v3948 = vunpack.c.l.b16 %v3928
        %v3949 = vunpack.c.l.b16 %v3929
        %v3950 = vpack.c.b16 %v3947, %v3946
        %v3951 = vpack.c.b16 %v3949, %v3948
        %v3955 = vsel %vm1077, %v3941, 0
        %3957 = vmatprep.subr.bf16.mxu0 0
        %3958 = vmatpush1.bf16.msra.mxu0 0
        %3959 = vmatprep.subr.bf16.mxu0 0
        %3960 = vmatpush1.bf16.msra.mxu0 0
        %3961 = vmatprep.subr.bf16.mxu0 0
        %3962 = vmatpush1.bf16.msra.mxu0 0
        %3963 = vmatprep.subr.bf16.mxu0 0
        %3964 = vmatpush1.bf16.msra.mxu0 0
        %3965 = vmatprep.subr.bf16.mxu0 0
        %3966 = vmatpush1.bf16.msra.mxu0 0
        %3967 = vmatprep.subr.bf16.mxu0 0
        %3968 = vmatpush1.bf16.msra.mxu0 0
        %3969 = vmatprep.subr.bf16.mxu0 0
        %3970 = vmatpush1.bf16.msra.mxu0 %v3951
        %3971 = vmatprep.subr.bf16.mxu0 0
        %3972 = vmatpush1.bf16.msra.mxu0 %v3950
        %3973 = vmatprep.subr.bf16.mxu0 0
        %3974 = vmatpush2.bf16.msra.mxu0 0
        %3975 = vmatprep.subr.bf16.mxu0 0
        %3976 = vmatpush2.bf16.msra.mxu0 0
        %3977 = vmatprep.subr.bf16.mxu0 0
        %3978 = vmatpush2.bf16.msra.mxu0 0
        %3979 = vmatprep.subr.bf16.mxu0 0
        %3980 = vmatpush2.bf16.msra.mxu0 0
        %3981 = vmatprep.subr.bf16.mxu0 0
        %3982 = vmatpush2.bf16.msra.mxu0 0
        %3983 = vmatprep.subr.bf16.mxu0 0
        %3984 = vmatpush2.bf16.msra.mxu0 0
        %3985 = vmatprep.subr.bf16.mxu0 0
        %3986 = vmatpush2.bf16.msra.mxu0 0
        %3987 = vmatprep.subr.bf16.mxu0 0
        %3988 = vmatpush2.bf16.msra.mxu0 0
        %3989 = vmatprep.mubr.bf16.mxu0 0
        %3990 = vmatmul.mubr.bf16.gmra.mxu0 %v3955
        %v3991 = vpop.f32.mrf.mxu0
        %v3992 = vadd.f32 0.0, %v3991
        %v3993 = vpop.f32.mrf.mxu0
        %v3994 = vpop.f32.mrf.mxu0
        %v3995 = vpop.f32.mrf.mxu0
        %3996 = vdwg.mxu0
        %v3999 = vunpack.c.l.s4 1966171168
        %v4000 = vunpack.c.0.s8 %v3999
        %v4001 = vlaneseq
        %v4002 = vshrl.u32 %v4001, 7
        %v4003 = vsub.s32 %v4000, %v4002
        %v4004 = vrot.slane %v3916, %v4003
        %v4005 = vcombine.high %v4004, %v4004
        %v4007 = vunpack.c.l.s4 1966171168
        %v4008 = vunpack.c.0.s8 %v4007
        %v4009 = vlaneseq
        %v4010 = vshrl.u32 %v4009, 7
        %v4011 = vsub.s32 %v4008, %v4010
        %v4012 = vrot.slane %v4004, %v4011
        %v4014 = vunpack.c.l.s4 1966171168
        %v4015 = vunpack.c.0.s8 %v4014
        %v4016 = vlaneseq
        %v4017 = vshrl.u32 %v4016, 7
        %v4018 = vsub.s32 %v4015, %v4017
        %v4019 = vrot.slane %v4005, %v4018
        %v4020 = vcombine.high %v4012, %v4012
        %v4021 = vcombine.high %v4019, %v4019
        %v4022 = vlaneseq
        %v4023 = vshrl.u32 %v4022, 7
        %v4024 = vsub.s32 0, %v4023
        %v4025 = vrot.slane %v4012, %v4024
        %v4026 = vlaneseq
        %v4027 = vshrl.u32 %v4026, 7
        %v4028 = vsub.s32 0, %v4027
        %v4029 = vrot.slane %v4019, %v4028
        %v4030 = vlaneseq
        %v4031 = vshrl.u32 %v4030, 7
        %v4032 = vsub.s32 0, %v4031
        %v4033 = vrot.slane %v4020, %v4032
        %v4034 = vlaneseq
        %v4035 = vshrl.u32 %v4034, 7
        %v4036 = vsub.s32 0, %v4035
        %v4037 = vrot.slane %v4021, %v4036
        %v4044 = vunpack.c.l.s4 1966171168
        %v4045 = vunpack.c.0.s8 %v4044
        %v4046 = vlaneseq
        %v4047 = vshrl.u32 %v4046, 7
        %v4048 = vsub.s32 %v4045, %v4047
        %v4049 = vrot.slane %v3992, %v4048
        %v4050 = vcombine.high %v4049, %v4049
        %v4052 = vunpack.c.l.s4 1966171168
        %v4053 = vunpack.c.0.s8 %v4052
        %v4054 = vlaneseq
        %v4055 = vshrl.u32 %v4054, 7
        %v4056 = vsub.s32 %v4053, %v4055
        %v4057 = vrot.slane %v4049, %v4056
        %v4059 = vunpack.c.l.s4 1966171168
        %v4060 = vunpack.c.0.s8 %v4059
        %v4061 = vlaneseq
        %v4062 = vshrl.u32 %v4061, 7
        %v4063 = vsub.s32 %v4060, %v4062
        %v4064 = vrot.slane %v4050, %v4063
        %v4065 = vcombine.high %v4057, %v4057
        %v4066 = vcombine.high %v4064, %v4064
        %v4067 = vlaneseq
        %v4068 = vshrl.u32 %v4067, 7
        %v4069 = vsub.s32 0, %v4068
        %v4070 = vrot.slane %v4057, %v4069
        %v4071 = vlaneseq
        %v4072 = vshrl.u32 %v4071, 7
        %v4073 = vsub.s32 0, %v4072
        %v4074 = vrot.slane %v4064, %v4073
        %v4075 = vlaneseq
        %v4076 = vshrl.u32 %v4075, 7
        %v4077 = vsub.s32 0, %v4076
        %v4078 = vrot.slane %v4065, %v4077
        %v4079 = vlaneseq
        %v4080 = vshrl.u32 %v4079, 7
        %v4081 = vsub.s32 0, %v4080
        %v4082 = vrot.slane %v4066, %v4081
        %v4087 = vmax.f32 %v3773, 0.0
        %v4088 = vmax.f32 %v3774, 0.0
        %v4089 = vmax.f32 %v3775, 0.0
        %v4090 = vmax.f32 %v3776, 0.0
        %v4091 = vmax.f32 %v3777, 0.0
        %v4092 = vmax.f32 %v3778, 0.0
        %v4093 = vmax.f32 %v3779, 0.0
        %v4094 = vmax.f32 %v3780, 0.0
        %v4095 = vmax.f32 %v3781, 0.0
        %v4096 = vmax.f32 %v3782, 0.0
        %v4097 = vmax.f32 %v3783, 0.0
        %v4098 = vmax.f32 %v3784, 0.0
        %v4099 = vmax.f32 %v3785, 0.0
        %v4100 = vmax.f32 %v3786, 0.0
        %v4101 = vmax.f32 %v3787, 0.0
        %v4102 = vmax.f32 %v3788, 0.0
        %v4103 = vpack.c.bf16 %v4088, %v4087
        %v4104 = vpack.c.bf16 %v4090, %v4089
        %v4105 = vpack.c.bf16 %v4092, %v4091
        %v4106 = vpack.c.bf16 %v4094, %v4093
        %v4107 = vpack.c.bf16 %v4096, %v4095
        %v4108 = vpack.c.bf16 %v4098, %v4097
        %v4109 = vpack.c.bf16 %v4100, %v4099
        %v4110 = vpack.c.bf16 %v4102, %v4101
        %s4111 = scalar_lea.vmem %s5, 48
        %v4112 = vld [vmem:[%s4111] sm:$0xf]
        %v4113 = vld [vmem:[%s4111 + $0x4] sm:$0xf]
        %v4114 = vld [vmem:[%s4111 + $0x8] sm:$0xf]
        %v4115 = vld [vmem:[%s4111 + $0xc] sm:$0xf]
        %v4120 = vunpack.c.l.b16 %v4112
        %v4121 = vunpack.c.l.b16 %v4113
        %v4122 = vunpack.c.l.b16 %v4114
        %v4123 = vunpack.c.l.b16 %v4115
        %v4124 = vpack.c.b16 %v4121, %v4120
        %v4125 = vpack.c.b16 %v4123, %v4122
        %v4129 = vsel %vm1077, %v4103, 0
        %v4132 = vsel %vm1077, %v4104, 0
        %v4135 = vsel %vm1077, %v4105, 0
        %v4138 = vsel %vm1077, %v4106, 0
        %v4141 = vsel %vm1077, %v4107, 0
        %v4144 = vsel %vm1077, %v4108, 0
        %v4147 = vsel %vm1077, %v4109, 0
        %v4150 = vsel %vm1077, %v4110, 0
        %4152 = vmatprep.subr.bf16.mxu0 0
        %4153 = vmatpush1.bf16.msra.mxu0 0
        %4154 = vmatprep.subr.bf16.mxu0 0
        %4155 = vmatpush1.bf16.msra.mxu0 0
        %4156 = vmatprep.subr.bf16.mxu0 0
        %4157 = vmatpush1.bf16.msra.mxu0 0
        %4158 = vmatprep.subr.bf16.mxu0 0
        %4159 = vmatpush1.bf16.msra.mxu0 0
        %4160 = vmatprep.subr.bf16.mxu0 0
        %4161 = vmatpush1.bf16.msra.mxu0 0
        %4162 = vmatprep.subr.bf16.mxu0 0
        %4163 = vmatpush1.bf16.msra.mxu0 0
        %4164 = vmatprep.subr.bf16.mxu0 0
        %4165 = vmatpush1.bf16.msra.mxu0 %v4125
        %4166 = vmatprep.subr.bf16.mxu0 0
        %4167 = vmatpush1.bf16.msra.mxu0 %v4124
        %4168 = vmatprep.subr.bf16.mxu0 0
        %4169 = vmatpush2.bf16.msra.mxu0 0
        %4170 = vmatprep.subr.bf16.mxu0 0
        %4171 = vmatpush2.bf16.msra.mxu0 0
        %4172 = vmatprep.subr.bf16.mxu0 0
        %4173 = vmatpush2.bf16.msra.mxu0 0
        %4174 = vmatprep.subr.bf16.mxu0 0
        %4175 = vmatpush2.bf16.msra.mxu0 0
        %4176 = vmatprep.subr.bf16.mxu0 0
        %4177 = vmatpush2.bf16.msra.mxu0 0
        %4178 = vmatprep.subr.bf16.mxu0 0
        %4179 = vmatpush2.bf16.msra.mxu0 0
        %4180 = vmatprep.subr.bf16.mxu0 0
        %4181 = vmatpush2.bf16.msra.mxu0 0
        %4182 = vmatprep.subr.bf16.mxu0 0
        %4183 = vmatpush2.bf16.msra.mxu0 0
        %4184 = vmatprep.mubr.bf16.mxu0 0
        %4185 = vmatmul.mubr.bf16.gmra.mxu0 %v4129
        %v4186 = vpop.f32.mrf.mxu0
        %v4187 = vadd.f32 %v4025, %v4186
        %v4188 = vpop.f32.mrf.mxu0
        %v4189 = vpop.f32.mrf.mxu0
        %v4190 = vadd.f32 %v4025, %v4189
        %v4191 = vpop.f32.mrf.mxu0
        %4192 = vmatprep.mubr.bf16.mxu0 0
        %4193 = vmatmul.mubr.bf16.gmra.mxu0 %v4132
        %v4194 = vpop.f32.mrf.mxu0
        %v4195 = vadd.f32 %v4025, %v4194
        %v4196 = vpop.f32.mrf.mxu0
        %v4197 = vpop.f32.mrf.mxu0
        %v4198 = vadd.f32 %v4025, %v4197
        %v4199 = vpop.f32.mrf.mxu0
        %4200 = vmatprep.mubr.bf16.mxu0 0
        %4201 = vmatmul.mubr.bf16.gmra.mxu0 %v4135
        %v4202 = vpop.f32.mrf.mxu0
        %v4203 = vadd.f32 %v4029, %v4202
        %v4204 = vpop.f32.mrf.mxu0
        %v4205 = vpop.f32.mrf.mxu0
        %v4206 = vadd.f32 %v4029, %v4205
        %v4207 = vpop.f32.mrf.mxu0
        %4208 = vmatprep.mubr.bf16.mxu0 0
        %4209 = vmatmul.mubr.bf16.gmra.mxu0 %v4138
        %v4210 = vpop.f32.mrf.mxu0
        %v4211 = vadd.f32 %v4029, %v4210
        %v4212 = vpop.f32.mrf.mxu0
        %v4213 = vpop.f32.mrf.mxu0
        %v4214 = vadd.f32 %v4029, %v4213
        %v4215 = vpop.f32.mrf.mxu0
        %4216 = vmatprep.mubr.bf16.mxu0 0
        %4217 = vmatmul.mubr.bf16.gmra.mxu0 %v4141
        %v4218 = vpop.f32.mrf.mxu0
        %v4219 = vadd.f32 %v4033, %v4218
        %v4220 = vpop.f32.mrf.mxu0
        %v4221 = vpop.f32.mrf.mxu0
        %v4222 = vadd.f32 %v4033, %v4221
        %v4223 = vpop.f32.mrf.mxu0
        %4224 = vmatprep.mubr.bf16.mxu0 0
        %4225 = vmatmul.mubr.bf16.gmra.mxu0 %v4144
        %v4226 = vpop.f32.mrf.mxu0
        %v4227 = vadd.f32 %v4033, %v4226
        %v4228 = vpop.f32.mrf.mxu0
        %v4229 = vpop.f32.mrf.mxu0
        %v4230 = vadd.f32 %v4033, %v4229
        %v4231 = vpop.f32.mrf.mxu0
        %4232 = vmatprep.mubr.bf16.mxu0 0
        %4233 = vmatmul.mubr.bf16.gmra.mxu0 %v4147
        %v4234 = vpop.f32.mrf.mxu0
        %v4235 = vadd.f32 %v4037, %v4234
        %v4236 = vpop.f32.mrf.mxu0
        %v4237 = vpop.f32.mrf.mxu0
        %v4238 = vadd.f32 %v4037, %v4237
        %v4239 = vpop.f32.mrf.mxu0
        %4240 = vmatprep.mubr.bf16.mxu0 0
        %4241 = vmatmul.mubr.bf16.gmra.mxu0 %v4150
        %v4242 = vpop.f32.mrf.mxu0
        %v4243 = vadd.f32 %v4037, %v4242
        %v4244 = vpop.f32.mrf.mxu0
        %v4245 = vpop.f32.mrf.mxu0
        %v4246 = vadd.f32 %v4037, %v4245
        %v4247 = vpop.f32.mrf.mxu0
        %4248 = vdwg.mxu0
        %v4249 = vld [vmem:[#allocation7 + $0x4] sm:$0x1]
        %v4250 = vlaneseq
        %v4251 = vshrl.u32 %v4250, 7
        %v4252 = vsub.s32 0, %v4251
        %v4253 = vrot.slane %v4249, %v4252
        %v4254 = vadd.f32 %v4187, %v4253
        %v4255 = vadd.f32 %v4190, %v4253
        %v4256 = vadd.f32 %v4195, %v4253
        %v4257 = vadd.f32 %v4198, %v4253
        %v4258 = vadd.f32 %v4203, %v4253
        %v4259 = vadd.f32 %v4206, %v4253
        %v4260 = vadd.f32 %v4211, %v4253
        %v4261 = vadd.f32 %v4214, %v4253
        %v4262 = vadd.f32 %v4219, %v4253
        %v4263 = vadd.f32 %v4222, %v4253
        %v4264 = vadd.f32 %v4227, %v4253
        %v4265 = vadd.f32 %v4230, %v4253
        %v4266 = vadd.f32 %v4235, %v4253
        %v4267 = vadd.f32 %v4238, %v4253
        %v4268 = vadd.f32 %v4243, %v4253
        %v4269 = vadd.f32 %v4246, %v4253
        %v4270 = vmax.f32 %v4254, 0.0
        %v4271 = vmax.f32 %v4255, 0.0
        %v4272 = vmax.f32 %v4256, 0.0
        %v4273 = vmax.f32 %v4257, 0.0
        %v4274 = vmax.f32 %v4258, 0.0
        %v4275 = vmax.f32 %v4259, 0.0
        %v4276 = vmax.f32 %v4260, 0.0
        %v4277 = vmax.f32 %v4261, 0.0
        %v4278 = vmax.f32 %v4262, 0.0
        %v4279 = vmax.f32 %v4263, 0.0
        %v4280 = vmax.f32 %v4264, 0.0
        %v4281 = vmax.f32 %v4265, 0.0
        %v4282 = vmax.f32 %v4266, 0.0
        %v4283 = vmax.f32 %v4267, 0.0
        %v4284 = vmax.f32 %v4268, 0.0
        %v4285 = vmax.f32 %v4269, 0.0
        %v4286 = vpack.c.bf16 %v4271, %v4270
        %v4287 = vpack.c.bf16 %v4273, %v4272
        %v4288 = vpack.c.bf16 %v4275, %v4274
        %v4289 = vpack.c.bf16 %v4277, %v4276
        %v4290 = vpack.c.bf16 %v4279, %v4278
        %v4291 = vpack.c.bf16 %v4281, %v4280
        %v4292 = vpack.c.bf16 %v4283, %v4282
        %v4293 = vpack.c.bf16 %v4285, %v4284
        %s4294 = scalar_lea.vmem %s8, 64
        %v4295 = vld [vmem:[%s4294] sm:$0xf]
        %v4296 = vld [vmem:[%s4294 + $0x4] sm:$0xf]
        %v4297 = vld [vmem:[%s4294 + $0x8] sm:$0xf]
        %v4298 = vld [vmem:[%s4294 + $0xc] sm:$0xf]
        %v4299 = vld [vmem:[%s9 + $0x4] sm:$0x1]
        %v4300 = vlaneseq
        %v4301 = vshrl.u32 %v4300, 7
        %v4302 = vsub.s32 0, %v4301
        %v4303 = vrot.slane %v4299, %v4302
        %v4308 = vunpack.c.l.b16 %v4295
        %v4309 = vunpack.c.l.b16 %v4296
        %v4310 = vunpack.c.l.b16 %v4297
        %v4311 = vunpack.c.l.b16 %v4298
        %v4312 = vpack.c.b16 %v4309, %v4308
        %v4313 = vpack.c.b16 %v4311, %v4310
        %v4317 = vsel %vm1077, %v4286, 0
        %v4320 = vsel %vm1077, %v4287, 0
        %v4323 = vsel %vm1077, %v4288, 0
        %v4326 = vsel %vm1077, %v4289, 0
        %v4329 = vsel %vm1077, %v4290, 0
        %v4332 = vsel %vm1077, %v4291, 0
        %v4335 = vsel %vm1077, %v4292, 0
        %v4338 = vsel %vm1077, %v4293, 0
        %4340 = vmatprep.subr.bf16.mxu0 0
        %4341 = vmatpush1.bf16.msra.mxu0 0
        %4342 = vmatprep.subr.bf16.mxu0 0
        %4343 = vmatpush1.bf16.msra.mxu0 0
        %4344 = vmatprep.subr.bf16.mxu0 0
        %4345 = vmatpush1.bf16.msra.mxu0 0
        %4346 = vmatprep.subr.bf16.mxu0 0
        %4347 = vmatpush1.bf16.msra.mxu0 0
        %4348 = vmatprep.subr.bf16.mxu0 0
        %4349 = vmatpush1.bf16.msra.mxu0 0
        %4350 = vmatprep.subr.bf16.mxu0 0
        %4351 = vmatpush1.bf16.msra.mxu0 0
        %4352 = vmatprep.subr.bf16.mxu0 0
        %4353 = vmatpush1.bf16.msra.mxu0 %v4313
        %4354 = vmatprep.subr.bf16.mxu0 0
        %4355 = vmatpush1.bf16.msra.mxu0 %v4312
        %4356 = vmatprep.subr.bf16.mxu0 0
        %4357 = vmatpush2.bf16.msra.mxu0 0
        %4358 = vmatprep.subr.bf16.mxu0 0
        %4359 = vmatpush2.bf16.msra.mxu0 0
        %4360 = vmatprep.subr.bf16.mxu0 0
        %4361 = vmatpush2.bf16.msra.mxu0 0
        %4362 = vmatprep.subr.bf16.mxu0 0
        %4363 = vmatpush2.bf16.msra.mxu0 0
        %4364 = vmatprep.subr.bf16.mxu0 0
        %4365 = vmatpush2.bf16.msra.mxu0 0
        %4366 = vmatprep.subr.bf16.mxu0 0
        %4367 = vmatpush2.bf16.msra.mxu0 0
        %4368 = vmatprep.subr.bf16.mxu0 0
        %4369 = vmatpush2.bf16.msra.mxu0 0
        %4370 = vmatprep.subr.bf16.mxu0 0
        %4371 = vmatpush2.bf16.msra.mxu0 0
        %4372 = vmatprep.mubr.bf16.mxu0 0
        %4373 = vmatmul.mubr.bf16.gmra.mxu0 %v4317
        %v4374 = vpop.f32.mrf.mxu0
        %v4375 = vadd.f32 %v4303, %v4374
        %v4376 = vpop.f32.mrf.mxu0
        %v4377 = vpop.f32.mrf.mxu0
        %v4378 = vadd.f32 %v4303, %v4377
        %v4379 = vpop.f32.mrf.mxu0
        %4380 = vmatprep.mubr.bf16.mxu0 0
        %4381 = vmatmul.mubr.bf16.gmra.mxu0 %v4320
        %v4382 = vpop.f32.mrf.mxu0
        %v4383 = vadd.f32 %v4303, %v4382
        %v4384 = vpop.f32.mrf.mxu0
        %v4385 = vpop.f32.mrf.mxu0
        %v4386 = vadd.f32 %v4303, %v4385
        %v4387 = vpop.f32.mrf.mxu0
        %4388 = vmatprep.mubr.bf16.mxu0 0
        %4389 = vmatmul.mubr.bf16.gmra.mxu0 %v4323
        %v4390 = vpop.f32.mrf.mxu0
        %v4391 = vadd.f32 %v4303, %v4390
        %v4392 = vpop.f32.mrf.mxu0
        %v4393 = vpop.f32.mrf.mxu0
        %v4394 = vadd.f32 %v4303, %v4393
        %v4395 = vpop.f32.mrf.mxu0
        %4396 = vmatprep.mubr.bf16.mxu0 0
        %4397 = vmatmul.mubr.bf16.gmra.mxu0 %v4326
        %v4398 = vpop.f32.mrf.mxu0
        %v4399 = vadd.f32 %v4303, %v4398
        %v4400 = vpop.f32.mrf.mxu0
        %v4401 = vpop.f32.mrf.mxu0
        %v4402 = vadd.f32 %v4303, %v4401
        %v4403 = vpop.f32.mrf.mxu0
        %4404 = vmatprep.mubr.bf16.mxu0 0
        %4405 = vmatmul.mubr.bf16.gmra.mxu0 %v4329
        %v4406 = vpop.f32.mrf.mxu0
        %v4407 = vadd.f32 %v4303, %v4406
        %v4408 = vpop.f32.mrf.mxu0
        %v4409 = vpop.f32.mrf.mxu0
        %v4410 = vadd.f32 %v4303, %v4409
        %v4411 = vpop.f32.mrf.mxu0
        %4412 = vmatprep.mubr.bf16.mxu0 0
        %4413 = vmatmul.mubr.bf16.gmra.mxu0 %v4332
        %v4414 = vpop.f32.mrf.mxu0
        %v4415 = vadd.f32 %v4303, %v4414
        %v4416 = vpop.f32.mrf.mxu0
        %v4417 = vpop.f32.mrf.mxu0
        %v4418 = vadd.f32 %v4303, %v4417
        %v4419 = vpop.f32.mrf.mxu0
        %4420 = vmatprep.mubr.bf16.mxu0 0
        %4421 = vmatmul.mubr.bf16.gmra.mxu0 %v4335
        %v4422 = vpop.f32.mrf.mxu0
        %v4423 = vadd.f32 %v4303, %v4422
        %v4424 = vpop.f32.mrf.mxu0
        %v4425 = vpop.f32.mrf.mxu0
        %v4426 = vadd.f32 %v4303, %v4425
        %v4427 = vpop.f32.mrf.mxu0
        %4428 = vmatprep.mubr.bf16.mxu0 0
        %4429 = vmatmul.mubr.bf16.gmra.mxu0 %v4338
        %v4430 = vpop.f32.mrf.mxu0
        %v4431 = vadd.f32 %v4303, %v4430
        %v4432 = vpop.f32.mrf.mxu0
        %v4433 = vpop.f32.mrf.mxu0
        %v4434 = vadd.f32 %v4303, %v4433
        %v4435 = vpop.f32.mrf.mxu0
        %4436 = vdwg.mxu0
        %v4437 = vpack.c.bf16 %v3774, %v3773
        %v4438 = vpack.c.bf16 %v3776, %v3775
        %v4439 = vpack.c.bf16 %v3778, %v3777
        %v4440 = vpack.c.bf16 %v3780, %v3779
        %v4441 = vpack.c.bf16 %v3782, %v3781
        %v4442 = vpack.c.bf16 %v3784, %v3783
        %v4443 = vpack.c.bf16 %v3786, %v3785
        %v4444 = vpack.c.bf16 %v3788, %v3787
        %s4445 = scalar_lea.vmem %s10, 48
        %v4446 = vld [vmem:[%s4445] sm:$0xf]
        %v4447 = vld [vmem:[%s4445 + $0x4] sm:$0xf]
        %v4448 = vld [vmem:[%s4445 + $0x8] sm:$0xf]
        %v4449 = vld [vmem:[%s4445 + $0xc] sm:$0xf]
        %v4454 = vunpack.c.l.b16 %v4446
        %v4455 = vunpack.c.l.b16 %v4447
        %v4456 = vunpack.c.l.b16 %v4448
        %v4457 = vunpack.c.l.b16 %v4449
        %v4458 = vpack.c.b16 %v4455, %v4454
        %v4459 = vpack.c.b16 %v4457, %v4456
        %v4463 = vsel %vm1077, %v4437, 0
        %v4466 = vsel %vm1077, %v4438, 0
        %v4469 = vsel %vm1077, %v4439, 0
        %v4472 = vsel %vm1077, %v4440, 0
        %v4475 = vsel %vm1077, %v4441, 0
        %v4478 = vsel %vm1077, %v4442, 0
        %v4481 = vsel %vm1077, %v4443, 0
        %v4484 = vsel %vm1077, %v4444, 0
        %4486 = vmatprep.subr.bf16.mxu0 0
        %4487 = vmatpush1.bf16.msra.mxu0 0
        %4488 = vmatprep.subr.bf16.mxu0 0
        %4489 = vmatpush1.bf16.msra.mxu0 0
        %4490 = vmatprep.subr.bf16.mxu0 0
        %4491 = vmatpush1.bf16.msra.mxu0 0
        %4492 = vmatprep.subr.bf16.mxu0 0
        %4493 = vmatpush1.bf16.msra.mxu0 0
        %4494 = vmatprep.subr.bf16.mxu0 0
        %4495 = vmatpush1.bf16.msra.mxu0 0
        %4496 = vmatprep.subr.bf16.mxu0 0
        %4497 = vmatpush1.bf16.msra.mxu0 0
        %4498 = vmatprep.subr.bf16.mxu0 0
        %4499 = vmatpush1.bf16.msra.mxu0 %v4459
        %4500 = vmatprep.subr.bf16.mxu0 0
        %4501 = vmatpush1.bf16.msra.mxu0 %v4458
        %4502 = vmatprep.subr.bf16.mxu0 0
        %4503 = vmatpush2.bf16.msra.mxu0 0
        %4504 = vmatprep.subr.bf16.mxu0 0
        %4505 = vmatpush2.bf16.msra.mxu0 0
        %4506 = vmatprep.subr.bf16.mxu0 0
        %4507 = vmatpush2.bf16.msra.mxu0 0
        %4508 = vmatprep.subr.bf16.mxu0 0
        %4509 = vmatpush2.bf16.msra.mxu0 0
        %4510 = vmatprep.subr.bf16.mxu0 0
        %4511 = vmatpush2.bf16.msra.mxu0 0
        %4512 = vmatprep.subr.bf16.mxu0 0
        %4513 = vmatpush2.bf16.msra.mxu0 0
        %4514 = vmatprep.subr.bf16.mxu0 0
        %4515 = vmatpush2.bf16.msra.mxu0 0
        %4516 = vmatprep.subr.bf16.mxu0 0
        %4517 = vmatpush2.bf16.msra.mxu0 0
        %4518 = vmatprep.mubr.bf16.mxu0 0
        %4519 = vmatmul.mubr.bf16.gmra.mxu0 %v4463
        %v4520 = vpop.f32.mrf.mxu0
        %v4521 = vadd.f32 %v4070, %v4520
        %v4522 = vpop.f32.mrf.mxu0
        %v4523 = vpop.f32.mrf.mxu0
        %v4524 = vadd.f32 %v4070, %v4523
        %v4525 = vpop.f32.mrf.mxu0
        %4526 = vmatprep.mubr.bf16.mxu0 0
        %4527 = vmatmul.mubr.bf16.gmra.mxu0 %v4466
        %v4528 = vpop.f32.mrf.mxu0
        %v4529 = vadd.f32 %v4070, %v4528
        %v4530 = vpop.f32.mrf.mxu0
        %v4531 = vpop.f32.mrf.mxu0
        %v4532 = vadd.f32 %v4070, %v4531
        %v4533 = vpop.f32.mrf.mxu0
        %4534 = vmatprep.mubr.bf16.mxu0 0
        %4535 = vmatmul.mubr.bf16.gmra.mxu0 %v4469
        %v4536 = vpop.f32.mrf.mxu0
        %v4537 = vadd.f32 %v4074, %v4536
        %v4538 = vpop.f32.mrf.mxu0
        %v4539 = vpop.f32.mrf.mxu0
        %v4540 = vadd.f32 %v4074, %v4539
        %v4541 = vpop.f32.mrf.mxu0
        %4542 = vmatprep.mubr.bf16.mxu0 0
        %4543 = vmatmul.mubr.bf16.gmra.mxu0 %v4472
        %v4544 = vpop.f32.mrf.mxu0
        %v4545 = vadd.f32 %v4074, %v4544
        %v4546 = vpop.f32.mrf.mxu0
        %v4547 = vpop.f32.mrf.mxu0
        %v4548 = vadd.f32 %v4074, %v4547
        %v4549 = vpop.f32.mrf.mxu0
        %4550 = vmatprep.mubr.bf16.mxu0 0
        %4551 = vmatmul.mubr.bf16.gmra.mxu0 %v4475
        %v4552 = vpop.f32.mrf.mxu0
        %v4553 = vadd.f32 %v4078, %v4552
        %v4554 = vpop.f32.mrf.mxu0
        %v4555 = vpop.f32.mrf.mxu0
        %v4556 = vadd.f32 %v4078, %v4555
        %v4557 = vpop.f32.mrf.mxu0
        %4558 = vmatprep.mubr.bf16.mxu0 0
        %4559 = vmatmul.mubr.bf16.gmra.mxu0 %v4478
        %v4560 = vpop.f32.mrf.mxu0
        %v4561 = vadd.f32 %v4078, %v4560
        %v4562 = vpop.f32.mrf.mxu0
        %v4563 = vpop.f32.mrf.mxu0
        %v4564 = vadd.f32 %v4078, %v4563
        %v4565 = vpop.f32.mrf.mxu0
        %4566 = vmatprep.mubr.bf16.mxu0 0
        %4567 = vmatmul.mubr.bf16.gmra.mxu0 %v4481
        %v4568 = vpop.f32.mrf.mxu0
        %v4569 = vadd.f32 %v4082, %v4568
        %v4570 = vpop.f32.mrf.mxu0
        %v4571 = vpop.f32.mrf.mxu0
        %v4572 = vadd.f32 %v4082, %v4571
        %v4573 = vpop.f32.mrf.mxu0
        %4574 = vmatprep.mubr.bf16.mxu0 0
        %4575 = vmatmul.mubr.bf16.gmra.mxu0 %v4484
        %v4576 = vpop.f32.mrf.mxu0
        %v4577 = vadd.f32 %v4082, %v4576
        %v4578 = vpop.f32.mrf.mxu0
        %v4579 = vpop.f32.mrf.mxu0
        %v4580 = vadd.f32 %v4082, %v4579
        %v4581 = vpop.f32.mrf.mxu0
        %4582 = vdwg.mxu0
        %v4583 = vadd.f32 %v4521, %v4375
        %v4584 = vadd.f32 %v4524, %v4378
        %v4585 = vadd.f32 %v4529, %v4383
        %v4586 = vadd.f32 %v4532, %v4386
        %v4587 = vadd.f32 %v4537, %v4391
        %v4588 = vadd.f32 %v4540, %v4394
        %v4589 = vadd.f32 %v4545, %v4399
        %v4590 = vadd.f32 %v4548, %v4402
        %v4591 = vadd.f32 %v4553, %v4407
        %v4592 = vadd.f32 %v4556, %v4410
        %v4593 = vadd.f32 %v4561, %v4415
        %v4594 = vadd.f32 %v4564, %v4418
        %v4595 = vadd.f32 %v4569, %v4423
        %v4596 = vadd.f32 %v4572, %v4426
        %v4597 = vadd.f32 %v4577, %v4431
        %v4598 = vadd.f32 %v4580, %v4434
        %v4599 = vsel %vm1077, %v4583, -inf
        %v4600 = vsel %vm1077, %v4584, -inf
        %v4601 = vmax.f32 %v4599, %v4600
        %v4602 = vsel %vm1077, %v4585, -inf
        %v4603 = vmax.f32 %v4601, %v4602
        %v4604 = vsel %vm1077, %v4586, -inf
        %v4605 = vmax.f32 %v4603, %v4604
        %v4606 = vrot.slane %v4605, 4
        %v4607 = vmax.f32 %v4605, %v4606
        %v4608 = vrot.slane %v4607, 2
        %v4609 = vmax.f32 %v4607, %v4608
        %v4610 = vrot.slane %v4609, 1
        %v4611 = vmax.f32 %v4609, %v4610
        %v4612 = vsel %vm1077, %v4587, -inf
        %v4613 = vsel %vm1077, %v4588, -inf
        %v4614 = vmax.f32 %v4612, %v4613
        %v4615 = vsel %vm1077, %v4589, -inf
        %v4616 = vmax.f32 %v4614, %v4615
        %v4617 = vsel %vm1077, %v4590, -inf
        %v4618 = vmax.f32 %v4616, %v4617
        %v4619 = vrot.slane %v4618, 4
        %v4620 = vmax.f32 %v4618, %v4619
        %v4621 = vrot.slane %v4620, 2
        %v4622 = vmax.f32 %v4620, %v4621
        %v4623 = vrot.slane %v4622, 1
        %v4624 = vmax.f32 %v4622, %v4623
        %v4625 = vsel %vm1077, %v4591, -inf
        %v4626 = vsel %vm1077, %v4592, -inf
        %v4627 = vmax.f32 %v4625, %v4626
        %v4628 = vsel %vm1077, %v4593, -inf
        %v4629 = vmax.f32 %v4627, %v4628
        %v4630 = vsel %vm1077, %v4594, -inf
        %v4631 = vmax.f32 %v4629, %v4630
        %v4632 = vrot.slane %v4631, 4
        %v4633 = vmax.f32 %v4631, %v4632
        %v4634 = vrot.slane %v4633, 2
        %v4635 = vmax.f32 %v4633, %v4634
        %v4636 = vrot.slane %v4635, 1
        %v4637 = vmax.f32 %v4635, %v4636
        %v4638 = vsel %vm1077, %v4595, -inf
        %v4639 = vsel %vm1077, %v4596, -inf
        %v4640 = vmax.f32 %v4638, %v4639
        %v4641 = vsel %vm1077, %v4597, -inf
        %v4642 = vmax.f32 %v4640, %v4641
        %v4643 = vsel %vm1077, %v4598, -inf
        %v4644 = vmax.f32 %v4642, %v4643
        %v4645 = vrot.slane %v4644, 4
        %v4646 = vmax.f32 %v4644, %v4645
        %v4647 = vrot.slane %v4646, 2
        %v4648 = vmax.f32 %v4646, %v4647
        %v4649 = vrot.slane %v4648, 1
        %v4650 = vmax.f32 %v4648, %v4649
        %v4651 = vmax.f32 %v4611, 0.0
        %v4652 = vmax.f32 %v4624, 0.0
        %v4653 = vmax.f32 %v4637, 0.0
        %v4654 = vmax.f32 %v4650, 0.0
        %v4655 = vpack.c.bf16 %v4651, %v4651
        %v4656 = vpack.c.bf16 %v4652, %v4652
        %v4657 = vpack.c.bf16 %v4653, %v4653
        %v4658 = vpack.c.bf16 %v4654, %v4654
        %v4659 = vld [vmem:[%s12] sm:$0xf]
        %v4660 = vld [vmem:[%s12 + $0x4] sm:$0xf]
        %v4661 = vld [vmem:[%s12 + $0x8] sm:$0xf]
        %v4662 = vld [vmem:[%s12 + $0xc] sm:$0xf]
        %v4663 = vld [vmem:[%s13] sm:$0x1]
        %v4665 = vlaneseq
        %v4666 = vshrl.u32 %v4665, 7
        %v4667 = vsub.s32 0, %v4666
        %v4668 = vrot.slane %v4663, %v4667
        %v4674 = vunpack.c.l.b16 %v4655
        %v4675 = vunpack.c.l.b16 %v4656
        %v4676 = vunpack.c.l.b16 %v4657
        %v4677 = vunpack.c.l.b16 %v4658
        %v4678 = vsel %vm1432, %v4675, %v4674
        %v4679 = vsel %vm1434, %v4676, %v4678
        %v4680 = vsel %vm1436, %v4677, %v4679
        %v4681 = vpack.c.b16 %v4680, %v4680
        %v4686 = vunpack.c.l.b16 %v4659
        %v4687 = vunpack.c.l.b16 %v4660
        %v4688 = vunpack.c.l.b16 %v4661
        %v4689 = vunpack.c.l.b16 %v4662
        %v4690 = vpack.c.b16 %v4687, %v4686
        %v4691 = vpack.c.b16 %v4689, %v4688
        %v4695 = vsel %vm1077, %v4681, 0
        %4697 = vmatprep.subr.bf16.mxu0 0
        %4698 = vmatpush1.bf16.msra.mxu0 0
        %4699 = vmatprep.subr.bf16.mxu0 0
        %4700 = vmatpush1.bf16.msra.mxu0 0
        %4701 = vmatprep.subr.bf16.mxu0 0
        %4702 = vmatpush1.bf16.msra.mxu0 0
        %4703 = vmatprep.subr.bf16.mxu0 0
        %4704 = vmatpush1.bf16.msra.mxu0 0
        %4705 = vmatprep.subr.bf16.mxu0 0
        %4706 = vmatpush1.bf16.msra.mxu0 0
        %4707 = vmatprep.subr.bf16.mxu0 0
        %4708 = vmatpush1.bf16.msra.mxu0 0
        %4709 = vmatprep.subr.bf16.mxu0 0
        %4710 = vmatpush1.bf16.msra.mxu0 %v4691
        %4711 = vmatprep.subr.bf16.mxu0 0
        %4712 = vmatpush1.bf16.msra.mxu0 %v4690
        %4713 = vmatprep.subr.bf16.mxu0 0
        %4714 = vmatpush2.bf16.msra.mxu0 0
        %4715 = vmatprep.subr.bf16.mxu0 0
        %4716 = vmatpush2.bf16.msra.mxu0 0
        %4717 = vmatprep.subr.bf16.mxu0 0
        %4718 = vmatpush2.bf16.msra.mxu0 0
        %4719 = vmatprep.subr.bf16.mxu0 0
        %4720 = vmatpush2.bf16.msra.mxu0 0
        %4721 = vmatprep.subr.bf16.mxu0 0
        %4722 = vmatpush2.bf16.msra.mxu0 0
        %4723 = vmatprep.subr.bf16.mxu0 0
        %4724 = vmatpush2.bf16.msra.mxu0 0
        %4725 = vmatprep.subr.bf16.mxu0 0
        %4726 = vmatpush2.bf16.msra.mxu0 0
        %4727 = vmatprep.subr.bf16.mxu0 0
        %4728 = vmatpush2.bf16.msra.mxu0 0
        %4729 = vmatprep.mubr.bf16.mxu0 0
        %4730 = vmatmul.mubr.bf16.gmra.mxu0 %v4695
        %v4731 = vpop.f32.mrf.mxu0
        %v4732 = vadd.f32 %v4668, %v4731
        %v4733 = vpop.f32.mrf.mxu0
        %v4734 = vpop.f32.mrf.mxu0
        %v4735 = vpop.f32.mrf.mxu0
        %4736 = vdwg.mxu0
        %4737 = vst [vmem:[%s499] sm:$0xf] %v4732
        %s4738 = sand.u32 %s337, 1
        %s4739 = scalar_lea.sflag [#allocation4], %s4738
        %s4740 = sand.u32 %s337, 1
        %s4741 = smul.addr %s4740, 4
        %s4742 = scalar_lea.vmem [#allocation8], %s4741
        // Predicated region
        $region89: #{tpu_custom_call.1} parent=75 // pred_check
          %p4743 = pneg %p347
        $region90: #{tpu_custom_call.1} parent=75 // pred_check_branch
          %4745 = sbr.rel (%p4743) target = $region92
        $region91: #{tpu_custom_call.1} parent=75 // pred_region
          %s4747 = ssub.s32 64, 64
          %4748 = vsyncadd %s4739, %s4747
          %s4749 = smul.addr %s30, 64
          %s4750 = scalar_lea.hbm %s14, %s4749
          %s4752 = sshll.u32 %s4742, 4
          %s4753 = int_to_ptr.vmem [resolvable:$true] %s4752
          %4755 = dma.vmem_to_hbm [thread:$0]  %s4753, 64, %s4750, %s4739
        $region92: #{tpu_custom_call.1} parent=75 // pred_fallthru
          _
      $region76: #{tpu_custom_call.1} parent=5 // pred_fallthru
        _
      %p4756 = scmp.le.s32.totalorder 2, %s25
      // Predicated region
      $region93: #{tpu_custom_call.1} parent=5 // pred_check
        %p4757 = pneg %p4756
      $region94: #{tpu_custom_call.1} parent=5 // pred_check_branch
        %4759 = sbr.rel (%p4757) target = $region96
      $region95: #{tpu_custom_call.1} parent=5 // pred_region
        %s4760 = ssub.s32 %s25, 2
        // Predicated region
        $region97: #{tpu_custom_call.1} parent=95 // pred_check
          %p4761 = pneg %p353
        $region98: #{tpu_custom_call.1} parent=95 // pred_check_branch
          %4763 = sbr.rel (%p4761) target = $region100
        $region99: #{tpu_custom_call.1} parent=95 // pred_region
          %s4764 = sand.u32 %s338, 1
          %s4765 = scalar_lea.sflag [#allocation4], %s4764
          %s4766 = sand.u32 %s338, 1
          %s4767 = smul.addr %s4766, 4
          %s4768 = scalar_lea.vmem [#allocation8], %s4767
          %4769 = dma.done %s4765, 64
        $region100: #{tpu_custom_call.1} parent=95 // pred_fallthru
          _
      $region96: #{tpu_custom_call.1} parent=5 // pred_fallthru
        _
    $region6: #{tpu_custom_call.1} parent=1 // loop_footer
      %s29 = sadd.s32 1, %s25
    $region7: #{tpu_custom_call.1} parent=1 // loop_footer_branch
      %24 = sbr.rel target = $region3
    $region8: #{tpu_custom_call.1} parent=1 // loop_exit
      _
    %4770 = vsyncpa [#allocation3], 1
    %s4771 = scalar_lea.sflag [#allocation3], 1
    %4772 = vsyncpa %s4771, 1
    %4773 = vsyncpa [#allocation6], 1
    %4774 = vsyncpa [#allocation4], 1
    %s4775 = scalar_lea.sflag [#allocation4], 1
    %4776 = vsyncpa %s4775, 1

</llo_original>
